<compile_context>
chip_gen: v5e
topology: v5e:2x2
jax: 0.10.0
libtpu: 0.0.40
codegen_flags: <defaults>
</compile_context>

<pallas_src>
import math

import jax
import jax.numpy as jnp
from jax import lax
from jax.experimental import pallas as pl
from jax.experimental.pallas import tpu as pltpu


FRONTEND_NOUT = 24
FRONTEND_NPAD = 128      # lane-dense channel padding of the frontend output
BACKEND_OUT = 1024       # ShuffleNetV2 stage_out_channels[-1] for width_mult=1.0
K_SPATIAL = 7 * 7 * 3    # spatial im2col depth (kh, kw, cin)
K_PAD = 256              # padded to a multiple of 128 lanes
KT = 5                   # temporal taps of the Conv3d kernel


# ----------------------------- Pallas kernels ------------------------------

def conv_pool_kernel(p_ref, w_ref, scale_ref, shift_ref, alpha_ref, o_ref, scr_ref):
    """Fused frontend3D for one frame group:
       Conv3d(3->24, k=(5,7,7), s=(1,2,2), p=(2,3,3)) as 5 temporal-tap matmuls
       over the spatial im2col, + folded BatchNorm3d + PReLU
       + MaxPool3d((1,3,3), s=(1,2,2), p=(0,1,1)); bf16 output."""
    g = pl.program_id(1)
    Fb, Ho2, Wo2, C = o_ref.shape
    Tp, Ho, Wo, Kp = p_ref.shape
    t0 = g * Fb                                   # first (temporally padded) frame

    # ---- Conv3d: accumulate the 5 temporal taps, bf16 matmul / f32 acc ----
    acc = None
    for kt in range(KT):
        slab = p_ref[pl.ds(t0 + kt, Fb), :, :, :]          # (Fb, Ho, Wo, Kp) bf16
        slab = slab.reshape(Fb * Ho * Wo, Kp)
        part = jnp.dot(slab, w_ref[kt], preferred_element_type=jnp.float32)
        acc = part if acc is None else acc + part          # (Fb*Ho*Wo, 128) f32

    # ---- folded BatchNorm3d + PReLU (padded lanes 24..127 stay exactly 0) ----
    y = acc * scale_ref[...] + shift_ref[...]
    y = jnp.where(y >= 0.0, y, alpha_ref[...] * y)
    y = y.reshape(Fb, Ho, Wo, C)

    # ---- MaxPool3d((1,3,3), s=(1,2,2), p=(0,1,1)) in VMEM (no HBM halo copy) ----
    neg = jnp.finfo(jnp.float32).min
    scr_ref[...] = jnp.full(scr_ref.shape, neg, jnp.float32)   # halo ring = -inf-ish
    scr_ref[:, 1:Ho + 1, 1:Wo + 1, :] = y                      # interior store
    m = scr_ref[:, pl.ds(0, Ho2, 2), pl.ds(0, Wo2, 2), :]
    for kh in range(3):
        for kw in range(3):
            if kh == 0 and kw == 0:
                continue
            m = jnp.maximum(m, scr_ref[:, pl.ds(kh, Ho2, 2), pl.ds(kw, Wo2, 2), :])
    o_ref[...] = m.astype(o_ref.dtype)                         # bf16 store


def trunk_norm_kernel(x_ref, w_ref, scale_ref, shift_ref, o_ref):
    """conv_last 1x1 conv (+BN) + ReLU, global avg pool, L2 normalize, for a
       group of Gf frames per grid step."""
    Gf, Ho2, Wo2, C = x_ref.shape
    S = Ho2 * Wo2
    x = x_ref[...].reshape(Gf * S, C)                               # bf16
    y = jnp.dot(x, w_ref[...], preferred_element_type=jnp.float32)  # (Gf*S, D)
    y = jnp.maximum(y * scale_ref[...] + shift_ref[...], 0.0)       # BN + ReLU
    v = jnp.mean(y.reshape(Gf, S, -1), axis=1)                      # avg pool (Gf, D)
    # F.normalize(p=2, dim=-1): x / max(||x||, 1e-12)  (rsqrt -> EUP slot)
    inv = lax.rsqrt(jnp.maximum(jnp.sum(v * v, axis=1, keepdims=True), 1e-24))
    o_ref[...] = v * inv


# ------------------------------- glue (JAX) --------------------------------

def _fold_bn(gamma, beta, mean, var, eps=1e-5):
    scale = gamma / jnp.sqrt(var + eps)
    shift = beta - mean * scale
    return scale[None, :], shift[None, :]


def _compiler_params(dims, est_bytes):
    kwargs = dict(dimension_semantics=dims)
    if est_bytes > 16 * 2 ** 20:          # above the smallest (v5e) scoped default
        kwargs["vmem_limit_bytes"] = int(min(est_bytes, 96 * 2 ** 20))
    return pltpu.CompilerParams(**kwargs)


# ------------------------------ parameters ---------------------------------

def init_params(key):
    k1, k2 = jax.random.split(key)
    # frontend3D: Conv3d(3, 24, k=(5,7,7), bias=False)
    n1 = 5 * 7 * 7 * FRONTEND_NOUT
    w3d = jax.random.normal(k1, (FRONTEND_NOUT, 3, 5, 7, 7), jnp.float32) * math.sqrt(2.0 / n1)
    bn1 = dict(gamma=jnp.ones((FRONTEND_NOUT,), jnp.float32),
               beta=jnp.zeros((FRONTEND_NOUT,), jnp.float32),
               mean=jnp.zeros((FRONTEND_NOUT,), jnp.float32),
               var=jnp.ones((FRONTEND_NOUT,), jnp.float32))
    alpha = jnp.full((FRONTEND_NOUT,), 0.25, jnp.float32)   # PReLU default init
    # trunk tail: conv_last 1x1 conv (bias=False) + BN + ReLU
    n2 = 1 * 1 * BACKEND_OUT
    w_last = jax.random.normal(k2, (BACKEND_OUT, FRONTEND_NOUT), jnp.float32) * math.sqrt(2.0 / n2)
    bn2 = dict(gamma=jnp.ones((BACKEND_OUT,), jnp.float32),
               beta=jnp.zeros((BACKEND_OUT,), jnp.float32),
               mean=jnp.zeros((BACKEND_OUT,), jnp.float32),
               var=jnp.ones((BACKEND_OUT,), jnp.float32))
    return dict(w3d=w3d, bn1=bn1, alpha=alpha, w_last=w_last, bn2=bn2)


# ------------------------------ forward pass --------------------------------

def video_extractor_forward(x_ncdhw, params):
    """x_ncdhw: (B, 3, T, H, W) float32 — PyTorch NCDHW convention."""
    B, C, T, H, W = x_ncdhw.shape
    assert C == 3
    x = jnp.transpose(x_ncdhw, (0, 2, 3, 4, 1)).astype(jnp.bfloat16)   # NDHWC

    Ho = (H + 2 * 3 - 7) // 2 + 1
    Wo = (W + 2 * 3 - 7) // 2 + 1
    Ho2 = (Ho + 2 - 3) // 2 + 1
    Wo2 = (Wo + 2 - 3) // 2 + 1

    # ---- spatial (kh, kw, cin) im2col only; temporal taps handled in-kernel ----
    xp = jnp.pad(x, ((0, 0), (0, 0), (3, 3), (3, 3), (0, 0)))
    cols = []
    for kh in range(7):
        for kw in range(7):
            cols.append(xp[:, :, kh:kh + 2 * (Ho - 1) + 1:2,
                              kw:kw + 2 * (Wo - 1) + 1:2, :])
    patches = jnp.stack(cols, axis=4).reshape(B, T, Ho, Wo, K_SPATIAL)
    patches = jnp.pad(patches, ((0, 0), (0, 0), (0, 0), (0, 0), (0, K_PAD - K_SPATIAL)))

    # frame-group size: keep the matmul M dim around >= 512 rows for small frames
    Fb = max(1, min(T, max(1, 512 // (Ho * Wo))))
    T_round = pl.cdiv(T, Fb) * Fb
    G = T_round // Fb
    # temporal pad: 2 front (conv padding), 2 + rounding back
    patches = jnp.pad(patches, ((0, 0), (2, 2 + T_round - T), (0, 0), (0, 0), (0, 0)))
    Tp = T_round + 4

    # ---- frontend weights / BN / PReLU (channel-padded 24 -> 128, pads -> 0) ----
    npad = FRONTEND_NPAD - FRONTEND_NOUT
    w_conv = jnp.transpose(params["w3d"], (2, 3, 4, 1, 0)).reshape(KT, K_SPATIAL, FRONTEND_NOUT)
    w_conv = jnp.pad(w_conv, ((0, 0), (0, K_PAD - K_SPATIAL), (0, npad))).astype(jnp.bfloat16)
    scale1, shift1 = _fold_bn(**params["bn1"])
    scale1 = jnp.pad(scale1, ((0, 0), (0, npad)), constant_values=1.0)
    shift1 = jnp.pad(shift1, ((0, 0), (0, npad)))
    alpha1 = jnp.pad(params["alpha"][None, :], ((0, 0), (0, npad)), constant_values=0.25)

    patches_blk = Tp * Ho * Wo * K_PAD * 2
    w_blk = KT * K_PAD * FRONTEND_NPAD * 2
    out_blk = Fb * Ho2 * Wo2 * FRONTEND_NPAD * 2
    scr_blk = Fb * (Ho + 2) * (Wo + 2) * FRONTEND_NPAD * 4
    est1 = 2 * (patches_blk + w_blk + out_blk) + scr_blk + (1 << 20)

    # ---- fused Conv3d + BN + PReLU + MaxPool3d, one frame group per step ----
    pooled = pl.pallas_call(
        conv_pool_kernel,
        out_shape=jax.ShapeDtypeStruct((B, T_round, Ho2, Wo2, FRONTEND_NPAD), jnp.bfloat16),
        grid=(B, G),
        in_specs=[
            # whole per-batch patch block stays VMEM-resident across the G steps
            pl.BlockSpec((None, Tp, Ho, Wo, K_PAD), lambda b, g: (b, 0, 0, 0, 0)),
            pl.BlockSpec((KT, K_PAD, FRONTEND_NPAD), lambda b, g: (0, 0, 0)),
            pl.BlockSpec((1, FRONTEND_NPAD), lambda b, g: (0, 0)),
            pl.BlockSpec((1, FRONTEND_NPAD), lambda b, g: (0, 0)),
            pl.BlockSpec((1, FRONTEND_NPAD), lambda b, g: (0, 0)),
        ],
        out_specs=pl.BlockSpec((None, Fb, Ho2, Wo2, FRONTEND_NPAD),
                               lambda b, g: (b, g, 0, 0, 0)),
        scratch_shapes=[pltpu.VMEM((Fb, Ho + 2, Wo + 2, FRONTEND_NPAD), jnp.float32)],
        compiler_params=_compiler_params(("parallel", "parallel"), est1),
    )(patches, w_conv, scale1, shift1, alpha1)

    # ---- trunk tail + global avg pool + L2 normalize (frame-batched) ----
    F = B * T_round
    S = Ho2 * Wo2
    pooled2 = pooled.reshape(F, Ho2, Wo2, FRONTEND_NPAD)

    # frames per grid step: fill the MXU M dim, cap the f32 (Gf*S, 1024) intermediate
    cap = max(1, min(F, max(1, 1024 // S), max(1, (8 << 20) // (S * BACKEND_OUT * 4))))
    Gf = 1
    for g in range(cap, 0, -1):
        if F % g == 0:
            Gf = g
            break

    w2 = jnp.pad(jnp.transpose(params["w_last"], (1, 0)),   # (24, D) -> (128, D)
                 ((0, npad), (0, 0))).astype(jnp.bfloat16)
    scale2, shift2 = _fold_bn(**params["bn2"])

    est2 = 2 * (Gf * S * FRONTEND_NPAD * 2 + FRONTEND_NPAD * BACKEND_OUT * 2
                + Gf * BACKEND_OUT * 4) + Gf * S * BACKEND_OUT * 4 + (1 << 20)

    feats = pl.pallas_call(
        trunk_norm_kernel,
        out_shape=jax.ShapeDtypeStruct((F, BACKEND_OUT), jnp.float32),
        grid=(F // Gf,),
        in_specs=[
            pl.BlockSpec((Gf, Ho2, Wo2, FRONTEND_NPAD), lambda i: (i, 0, 0, 0)),
            pl.BlockSpec((FRONTEND_NPAD, BACKEND_OUT), lambda i: (0, 0)),
            pl.BlockSpec((1, BACKEND_OUT), lambda i: (0, 0)),
            pl.BlockSpec((1, BACKEND_OUT), lambda i: (0, 0)),
        ],
        out_specs=pl.BlockSpec((Gf, BACKEND_OUT), lambda i: (i, 0)),
        compiler_params=_compiler_params(("parallel",), est2),
    )(pooled2, w2, scale2, shift2)

    return feats.reshape(B, T_round, BACKEND_OUT)[:, :T, :]   # (B, Tnew, backend_out)


# ---------------------------------- main ------------------------------------

if __name__ == "__main__":
    key = jax.random.PRNGKey(0)
    B, C, T, H, W = 2, 3, 4, 16, 16
    x = jax.random.normal(key, (B, C, T, H, W), jnp.float32)
    params = init_params(jax.random.PRNGKey(1))

    fwd = jax.jit(video_extractor_forward)
    out = jax.block_until_ready(fwd(x, params))

    assert out.shape == (B, T, BACKEND_OUT), out.shape
    assert bool(jnp.all(jnp.isfinite(out)))
    norms = jnp.linalg.norm(out, axis=2)
    assert bool(jnp.allclose(norms, 1.0, atol=1e-3)), norms
    print("KERNEL_OK")
</pallas_src>

<mosaic_0001>
module attributes {stable_mosaic.version = 11 : i64} {
  func.func @conv_pool_kernel(%arg0: i32, %arg1: i32, %arg2: memref<1x8x8x8x256xbf16, #tpu.memory_space<vmem>>, %arg3: memref<5x256x128xbf16, #tpu.memory_space<vmem>>, %arg4: memref<1x128xf32, #tpu.memory_space<vmem>>, %arg5: memref<1x128xf32, #tpu.memory_space<vmem>>, %arg6: memref<1x128xf32, #tpu.memory_space<vmem>>, %arg7: memref<1x4x4x4x128xbf16, #tpu.memory_space<vmem>>, %arg8: memref<4x10x10x128xf32, #tpu.memory_space<vmem>>) attributes {dimension_semantics = [#tpu.dimension_semantics<parallel>, #tpu.dimension_semantics<parallel>], iteration_bounds = array<i64: 2, 1>, scalar_prefetch = 0 : i64, scratch_operands = 1 : i64, tpu.core_type = #tpu.core_type<tc>, window_params = [{transform_indices = @transform_0, window_bounds = array<i64: 1, 8, 8, 8, 256>}, {pipeline_mode = #tpu.pipeline_mode<synchronous>, transform_indices = @transform_1, window_bounds = array<i64: 5, 256, 128>}, {pipeline_mode = #tpu.pipeline_mode<synchronous>, transform_indices = @transform_2, window_bounds = array<i64: 1, 128>}, {pipeline_mode = #tpu.pipeline_mode<synchronous>, transform_indices = @transform_3, window_bounds = array<i64: 1, 128>}, {pipeline_mode = #tpu.pipeline_mode<synchronous>, transform_indices = @transform_4, window_bounds = array<i64: 1, 128>}, {transform_indices = @transform_5, window_bounds = array<i64: 1, 4, 4, 4, 128>}]} {
    %c4_i32 = arith.constant 4 : i32
    %0 = arith.muli %arg1, %c4_i32 : i32
    %c0_i32 = arith.constant 0 : i32
    %1 = arith.addi %0, %c0_i32 : i32
    %c0 = arith.constant 0 : index
    %2 = arith.index_cast %1 : i32 to index
    %c0_0 = arith.constant 0 : index
    %c0_1 = arith.constant 0 : index
    %c0_2 = arith.constant 0 : index
    %3 = vector.load %arg2[%c0, %2, %c0_0, %c0_1, %c0_2] : memref<1x8x8x8x256xbf16, #tpu.memory_space<vmem>>, vector<1x4x8x8x256xbf16>
    %4 = vector.shape_cast %3 : vector<1x4x8x8x256xbf16> to vector<4x8x8x256xbf16>
    %5 = vector.shape_cast %4 : vector<4x8x8x256xbf16> to vector<256x256xbf16>
    %c0_3 = arith.constant 0 : index
    %c0_4 = arith.constant 0 : index
    %c0_5 = arith.constant 0 : index
    %6 = vector.load %arg3[%c0_3, %c0_4, %c0_5] : memref<5x256x128xbf16, #tpu.memory_space<vmem>>, vector<1x256x128xbf16>
    %7 = vector.shape_cast %6 : vector<1x256x128xbf16> to vector<256x128xbf16>
    %cst = arith.constant dense<0.000000e+00> : vector<256x128xf32>
    %8 = tpu.matmul %5, %7, %cst {dimension_numbers = #tpu.dot_dimension_numbers<[1], [0], [0], [1], [0, 0, 1, 1], [], []>} : vector<256x256xbf16>, vector<256x128xbf16>, vector<256x128xf32> -> vector<256x128xf32>
    %c1_i32 = arith.constant 1 : i32
    %9 = arith.addi %0, %c1_i32 : i32
    %c0_6 = arith.constant 0 : index
    %10 = arith.index_cast %9 : i32 to index
    %c0_7 = arith.constant 0 : index
    %c0_8 = arith.constant 0 : index
    %c0_9 = arith.constant 0 : index
    %11 = vector.load %arg2[%c0_6, %10, %c0_7, %c0_8, %c0_9] : memref<1x8x8x8x256xbf16, #tpu.memory_space<vmem>>, vector<1x4x8x8x256xbf16>
    %12 = vector.shape_cast %11 : vector<1x4x8x8x256xbf16> to vector<4x8x8x256xbf16>
    %13 = vector.shape_cast %12 : vector<4x8x8x256xbf16> to vector<256x256xbf16>
    %c1 = arith.constant 1 : index
    %c0_10 = arith.constant 0 : index
    %c0_11 = arith.constant 0 : index
    %14 = vector.load %arg3[%c1, %c0_10, %c0_11] : memref<5x256x128xbf16, #tpu.memory_space<vmem>>, vector<1x256x128xbf16>
    %15 = vector.shape_cast %14 : vector<1x256x128xbf16> to vector<256x128xbf16>
    %cst_12 = arith.constant dense<0.000000e+00> : vector<256x128xf32>
    %16 = tpu.matmul %13, %15, %cst_12 {dimension_numbers = #tpu.dot_dimension_numbers<[1], [0], [0], [1], [0, 0, 1, 1], [], []>} : vector<256x256xbf16>, vector<256x128xbf16>, vector<256x128xf32> -> vector<256x128xf32>
    %17 = arith.addf %8, %16 : vector<256x128xf32>
    %c2_i32 = arith.constant 2 : i32
    %18 = arith.addi %0, %c2_i32 : i32
    %c0_13 = arith.constant 0 : index
    %19 = arith.index_cast %18 : i32 to index
    %c0_14 = arith.constant 0 : index
    %c0_15 = arith.constant 0 : index
    %c0_16 = arith.constant 0 : index
    %20 = vector.load %arg2[%c0_13, %19, %c0_14, %c0_15, %c0_16] : memref<1x8x8x8x256xbf16, #tpu.memory_space<vmem>>, vector<1x4x8x8x256xbf16>
    %21 = vector.shape_cast %20 : vector<1x4x8x8x256xbf16> to vector<4x8x8x256xbf16>
    %22 = vector.shape_cast %21 : vector<4x8x8x256xbf16> to vector<256x256xbf16>
    %c2 = arith.constant 2 : index
    %c0_17 = arith.constant 0 : index
    %c0_18 = arith.constant 0 : index
    %23 = vector.load %arg3[%c2, %c0_17, %c0_18] : memref<5x256x128xbf16, #tpu.memory_space<vmem>>, vector<1x256x128xbf16>
    %24 = vector.shape_cast %23 : vector<1x256x128xbf16> to vector<256x128xbf16>
    %cst_19 = arith.constant dense<0.000000e+00> : vector<256x128xf32>
    %25 = tpu.matmul %22, %24, %cst_19 {dimension_numbers = #tpu.dot_dimension_numbers<[1], [0], [0], [1], [0, 0, 1, 1], [], []>} : vector<256x256xbf16>, vector<256x128xbf16>, vector<256x128xf32> -> vector<256x128xf32>
    %26 = arith.addf %17, %25 : vector<256x128xf32>
    %c3_i32 = arith.constant 3 : i32
    %27 = arith.addi %0, %c3_i32 : i32
    %c0_20 = arith.constant 0 : index
    %28 = arith.index_cast %27 : i32 to index
    %c0_21 = arith.constant 0 : index
    %c0_22 = arith.constant 0 : index
    %c0_23 = arith.constant 0 : index
    %29 = vector.load %arg2[%c0_20, %28, %c0_21, %c0_22, %c0_23] : memref<1x8x8x8x256xbf16, #tpu.memory_space<vmem>>, vector<1x4x8x8x256xbf16>
    %30 = vector.shape_cast %29 : vector<1x4x8x8x256xbf16> to vector<4x8x8x256xbf16>
    %31 = vector.shape_cast %30 : vector<4x8x8x256xbf16> to vector<256x256xbf16>
    %c3 = arith.constant 3 : index
    %c0_24 = arith.constant 0 : index
    %c0_25 = arith.constant 0 : index
    %32 = vector.load %arg3[%c3, %c0_24, %c0_25] : memref<5x256x128xbf16, #tpu.memory_space<vmem>>, vector<1x256x128xbf16>
    %33 = vector.shape_cast %32 : vector<1x256x128xbf16> to vector<256x128xbf16>
    %cst_26 = arith.constant dense<0.000000e+00> : vector<256x128xf32>
    %34 = tpu.matmul %31, %33, %cst_26 {dimension_numbers = #tpu.dot_dimension_numbers<[1], [0], [0], [1], [0, 0, 1, 1], [], []>} : vector<256x256xbf16>, vector<256x128xbf16>, vector<256x128xf32> -> vector<256x128xf32>
    %35 = arith.addf %26, %34 : vector<256x128xf32>
    %c4_i32_27 = arith.constant 4 : i32
    %36 = arith.addi %0, %c4_i32_27 : i32
    %c0_28 = arith.constant 0 : index
    %37 = arith.index_cast %36 : i32 to index
    %c0_29 = arith.constant 0 : index
    %c0_30 = arith.constant 0 : index
    %c0_31 = arith.constant 0 : index
    %38 = vector.load %arg2[%c0_28, %37, %c0_29, %c0_30, %c0_31] : memref<1x8x8x8x256xbf16, #tpu.memory_space<vmem>>, vector<1x4x8x8x256xbf16>
    %39 = vector.shape_cast %38 : vector<1x4x8x8x256xbf16> to vector<4x8x8x256xbf16>
    %40 = vector.shape_cast %39 : vector<4x8x8x256xbf16> to vector<256x256xbf16>
    %c4 = arith.constant 4 : index
    %c0_32 = arith.constant 0 : index
    %c0_33 = arith.constant 0 : index
    %41 = vector.load %arg3[%c4, %c0_32, %c0_33] : memref<5x256x128xbf16, #tpu.memory_space<vmem>>, vector<1x256x128xbf16>
    %42 = vector.shape_cast %41 : vector<1x256x128xbf16> to vector<256x128xbf16>
    %cst_34 = arith.constant dense<0.000000e+00> : vector<256x128xf32>
    %43 = tpu.matmul %40, %42, %cst_34 {dimension_numbers = #tpu.dot_dimension_numbers<[1], [0], [0], [1], [0, 0, 1, 1], [], []>} : vector<256x256xbf16>, vector<256x128xbf16>, vector<256x128xf32> -> vector<256x128xf32>
    %44 = arith.addf %35, %43 : vector<256x128xf32>
    %c0_35 = arith.constant 0 : index
    %c0_36 = arith.constant 0 : index
    %45 = vector.load %arg4[%c0_35, %c0_36] : memref<1x128xf32, #tpu.memory_space<vmem>>, vector<1x128xf32>
    %46 = vector.broadcast %45 : vector<1x128xf32> to vector<256x128xf32>
    %47 = arith.mulf %44, %46 : vector<256x128xf32>
    %c0_37 = arith.constant 0 : index
    %c0_38 = arith.constant 0 : index
    %48 = vector.load %arg5[%c0_37, %c0_38] : memref<1x128xf32, #tpu.memory_space<vmem>>, vector<1x128xf32>
    %49 = vector.broadcast %48 : vector<1x128xf32> to vector<256x128xf32>
    %50 = arith.addf %47, %49 : vector<256x128xf32>
    %cst_39 = arith.constant 0.000000e+00 : f32
    %51 = vector.broadcast %cst_39 : f32 to vector<256x128xf32>
    %52 = arith.cmpf oge, %50, %51 : vector<256x128xf32>
    %c0_40 = arith.constant 0 : index
    %c0_41 = arith.constant 0 : index
    %53 = vector.load %arg6[%c0_40, %c0_41] : memref<1x128xf32, #tpu.memory_space<vmem>>, vector<1x128xf32>
    %54 = vector.broadcast %53 : vector<1x128xf32> to vector<256x128xf32>
    %55 = arith.mulf %54, %50 : vector<256x128xf32>
    %56 = arith.select %52, %50, %55 : vector<256x128xi1>, vector<256x128xf32>
    %57 = vector.shape_cast %56 : vector<256x128xf32> to vector<4x8x8x128xf32>
    %cst_42 = arith.constant -3.40282347E+38 : f32
    %58 = vector.broadcast %cst_42 : f32 to vector<4x10x10x128xf32>
    %c0_43 = arith.constant 0 : index
    %c0_44 = arith.constant 0 : index
    %c0_45 = arith.constant 0 : index
    %c0_46 = arith.constant 0 : index
    %59 = vector.load %arg8[%c0_43, %c0_44, %c0_45, %c0_46] : memref<4x10x10x128xf32, #tpu.memory_space<vmem>>, vector<4x10x10x128xf32>
    tpu.vector_store %arg8[%c0_43, %c0_44, %c0_45, %c0_46], %58 {strides = array<i32>} : memref<4x10x10x128xf32, #tpu.memory_space<vmem>>, vector<4x10x10x128xf32>,
    %c0_47 = arith.constant 0 : index
    %c1_48 = arith.constant 1 : index
    %c1_49 = arith.constant 1 : index
    %c0_50 = arith.constant 0 : index
    %60 = vector.load %arg8[%c0_47, %c1_48, %c1_49, %c0_50] : memref<4x10x10x128xf32, #tpu.memory_space<vmem>>, vector<4x8x8x128xf32>
    tpu.vector_store %arg8[%c0_47, %c1_48, %c1_49, %c0_50], %57 {strides = array<i32>} : memref<4x10x10x128xf32, #tpu.memory_space<vmem>>, vector<4x8x8x128xf32>,
    %c0_51 = arith.constant 0 : index
    %c0_52 = arith.constant 0 : index
    %c0_53 = arith.constant 0 : index
    %c0_54 = arith.constant 0 : index
    %61 = tpu.strided_load %arg8[%c0_51, %c0_52, %c0_53, %c0_54] {strides = array<i32: 1, 2, 2, 1>} : memref<4x10x10x128xf32, #tpu.memory_space<vmem>>, vector<4x4x4x128xf32>
    %c0_55 = arith.constant 0 : index
    %c0_56 = arith.constant 0 : index
    %c1_57 = arith.constant 1 : index
    %c0_58 = arith.constant 0 : index
    %62 = tpu.strided_load %arg8[%c0_55, %c0_56, %c1_57, %c0_58] {strides = array<i32: 1, 2, 2, 1>} : memref<4x10x10x128xf32, #tpu.memory_space<vmem>>, vector<4x4x4x128xf32>
    %63 = arith.maximumf %61, %62 : vector<4x4x4x128xf32>
    %c0_59 = arith.constant 0 : index
    %c0_60 = arith.constant 0 : index
    %c2_61 = arith.constant 2 : index
    %c0_62 = arith.constant 0 : index
    %64 = tpu.strided_load %arg8[%c0_59, %c0_60, %c2_61, %c0_62] {strides = array<i32: 1, 2, 2, 1>} : memref<4x10x10x128xf32, #tpu.memory_space<vmem>>, vector<4x4x4x128xf32>
    %65 = arith.maximumf %63, %64 : vector<4x4x4x128xf32>
    %c0_63 = arith.constant 0 : index
    %c1_64 = arith.constant 1 : index
    %c0_65 = arith.constant 0 : index
    %c0_66 = arith.constant 0 : index
    %66 = tpu.strided_load %arg8[%c0_63, %c1_64, %c0_65, %c0_66] {strides = array<i32: 1, 2, 2, 1>} : memref<4x10x10x128xf32, #tpu.memory_space<vmem>>, vector<4x4x4x128xf32>
    %67 = arith.maximumf %65, %66 : vector<4x4x4x128xf32>
    %c0_67 = arith.constant 0 : index
    %c1_68 = arith.constant 1 : index
    %c1_69 = arith.constant 1 : index
    %c0_70 = arith.constant 0 : index
    %68 = tpu.strided_load %arg8[%c0_67, %c1_68, %c1_69, %c0_70] {strides = array<i32: 1, 2, 2, 1>} : memref<4x10x10x128xf32, #tpu.memory_space<vmem>>, vector<4x4x4x128xf32>
    %69 = arith.maximumf %67, %68 : vector<4x4x4x128xf32>
    %c0_71 = arith.constant 0 : index
    %c1_72 = arith.constant 1 : index
    %c2_73 = arith.constant 2 : index
    %c0_74 = arith.constant 0 : index
    %70 = tpu.strided_load %arg8[%c0_71, %c1_72, %c2_73, %c0_74] {strides = array<i32: 1, 2, 2, 1>} : memref<4x10x10x128xf32, #tpu.memory_space<vmem>>, vector<4x4x4x128xf32>
    %71 = arith.maximumf %69, %70 : vector<4x4x4x128xf32>
    %c0_75 = arith.constant 0 : index
    %c2_76 = arith.constant 2 : index
    %c0_77 = arith.constant 0 : index
    %c0_78 = arith.constant 0 : index
    %72 = tpu.strided_load %arg8[%c0_75, %c2_76, %c0_77, %c0_78] {strides = array<i32: 1, 2, 2, 1>} : memref<4x10x10x128xf32, #tpu.memory_space<vmem>>, vector<4x4x4x128xf32>
    %73 = arith.maximumf %71, %72 : vector<4x4x4x128xf32>
    %c0_79 = arith.constant 0 : index
    %c2_80 = arith.constant 2 : index
    %c1_81 = arith.constant 1 : index
    %c0_82 = arith.constant 0 : index
    %74 = tpu.strided_load %arg8[%c0_79, %c2_80, %c1_81, %c0_82] {strides = array<i32: 1, 2, 2, 1>} : memref<4x10x10x128xf32, #tpu.memory_space<vmem>>, vector<4x4x4x128xf32>
    %75 = arith.maximumf %73, %74 : vector<4x4x4x128xf32>
    %c0_83 = arith.constant 0 : index
    %c2_84 = arith.constant 2 : index
    %c2_85 = arith.constant 2 : index
    %c0_86 = arith.constant 0 : index
    %76 = tpu.strided_load %arg8[%c0_83, %c2_84, %c2_85, %c0_86] {strides = array<i32: 1, 2, 2, 1>} : memref<4x10x10x128xf32, #tpu.memory_space<vmem>>, vector<4x4x4x128xf32>
    %77 = arith.maximumf %75, %76 : vector<4x4x4x128xf32>
    %78 = arith.truncf %77 : vector<4x4x4x128xf32> to vector<4x4x4x128xbf16>
    %c0_87 = arith.constant 0 : index
    %c0_88 = arith.constant 0 : index
    %c0_89 = arith.constant 0 : index
    %c0_90 = arith.constant 0 : index
    %c0_91 = arith.constant 0 : index
    %79 = vector.load %arg7[%c0_87, %c0_88, %c0_89, %c0_90, %c0_91] : memref<1x4x4x4x128xbf16, #tpu.memory_space<vmem>>, vector<1x4x4x4x128xbf16>
    %80 = vector.shape_cast %79 : vector<1x4x4x4x128xbf16> to vector<4x4x4x128xbf16>
    %81 = vector.shape_cast %78 : vector<4x4x4x128xbf16> to vector<1x4x4x4x128xbf16>
    tpu.vector_store %arg7[%c0_87, %c0_88, %c0_89, %c0_90, %c0_91], %81 {strides = array<i32>} : memref<1x4x4x4x128xbf16, #tpu.memory_space<vmem>>, vector<1x4x4x4x128xbf16>,
    return
  }
  func.func @transform_0(%arg0: i32, %arg1: i32) -> (i32, i32, i32, i32, i32) {
    %c0_i32 = arith.constant 0 : i32
    %c0_i32_0 = arith.constant 0 : i32
    %c0_i32_1 = arith.constant 0 : i32
    %c0_i32_2 = arith.constant 0 : i32
    %c0_i32_3 = arith.constant 0 : i32
    return %arg0, %c0_i32, %c0_i32_0, %c0_i32_1, %c0_i32_2 : i32, i32, i32, i32, i32
  }
  func.func @transform_1(%arg0: i32, %arg1: i32) -> (i32, i32, i32) {
    %c0_i32 = arith.constant 0 : i32
    %c0_i32_0 = arith.constant 0 : i32
    %c0_i32_1 = arith.constant 0 : i32
    %c0_i32_2 = arith.constant 0 : i32
    return %c0_i32, %c0_i32_0, %c0_i32_1 : i32, i32, i32
  }
  func.func @transform_2(%arg0: i32, %arg1: i32) -> (i32, i32) {
    %c0_i32 = arith.constant 0 : i32
    %c0_i32_0 = arith.constant 0 : i32
    %c0_i32_1 = arith.constant 0 : i32
    return %c0_i32, %c0_i32_0 : i32, i32
  }
  func.func @transform_3(%arg0: i32, %arg1: i32) -> (i32, i32) {
    %c0_i32 = arith.constant 0 : i32
    %c0_i32_0 = arith.constant 0 : i32
    %c0_i32_1 = arith.constant 0 : i32
    return %c0_i32, %c0_i32_0 : i32, i32
  }
  func.func @transform_4(%arg0: i32, %arg1: i32) -> (i32, i32) {
    %c0_i32 = arith.constant 0 : i32
    %c0_i32_0 = arith.constant 0 : i32
    %c0_i32_1 = arith.constant 0 : i32
    return %c0_i32, %c0_i32_0 : i32, i32
  }
  func.func @transform_5(%arg0: i32, %arg1: i32) -> (i32, i32, i32, i32, i32) {
    %c0_i32 = arith.constant 0 : i32
    %c0_i32_0 = arith.constant 0 : i32
    %c0_i32_1 = arith.constant 0 : i32
    %c0_i32_2 = arith.constant 0 : i32
    return %arg0, %arg1, %c0_i32, %c0_i32_0, %c0_i32_1 : i32, i32, i32, i32, i32
  }
}

module attributes {stable_mosaic.version = 11 : i64} {
  func.func @trunk_norm_kernel(%arg0: i32, %arg1: memref<8x4x4x128xbf16, #tpu.memory_space<vmem>>, %arg2: memref<128x1024xbf16, #tpu.memory_space<vmem>>, %arg3: memref<1x1024xf32, #tpu.memory_space<vmem>>, %arg4: memref<1x1024xf32, #tpu.memory_space<vmem>>, %arg5: memref<8x1024xf32, #tpu.memory_space<vmem>>) attributes {dimension_semantics = [#tpu.dimension_semantics<parallel>], iteration_bounds = array<i64: 1>, scalar_prefetch = 0 : i64, scratch_operands = 0 : i64, tpu.core_type = #tpu.core_type<tc>, window_params = [{transform_indices = @transform_0, window_bounds = array<i64: 8, 4, 4, 128>}, {pipeline_mode = #tpu.pipeline_mode<synchronous>, transform_indices = @transform_1, window_bounds = array<i64: 128, 1024>}, {pipeline_mode = #tpu.pipeline_mode<synchronous>, transform_indices = @transform_2, window_bounds = array<i64: 1, 1024>}, {pipeline_mode = #tpu.pipeline_mode<synchronous>, transform_indices = @transform_3, window_bounds = array<i64: 1, 1024>}, {transform_indices = @transform_4, window_bounds = array<i64: 8, 1024>}]} {
    %c0 = arith.constant 0 : index
    %c0_0 = arith.constant 0 : index
    %c0_1 = arith.constant 0 : index
    %c0_2 = arith.constant 0 : index
    %0 = vector.load %arg1[%c0, %c0_0, %c0_1, %c0_2] : memref<8x4x4x128xbf16, #tpu.memory_space<vmem>>, vector<8x4x4x128xbf16>
    %1 = vector.shape_cast %0 : vector<8x4x4x128xbf16> to vector<128x128xbf16>
    %c0_3 = arith.constant 0 : index
    %c0_4 = arith.constant 0 : index
    %2 = vector.load %arg2[%c0_3, %c0_4] : memref<128x1024xbf16, #tpu.memory_space<vmem>>, vector<128x1024xbf16>
    %cst = arith.constant dense<0.000000e+00> : vector<128x1024xf32>
    %3 = tpu.matmul %1, %2, %cst {dimension_numbers = #tpu.dot_dimension_numbers<[1], [0], [0], [1], [0, 0, 1, 1], [], []>} : vector<128x128xbf16>, vector<128x1024xbf16>, vector<128x1024xf32> -> vector<128x1024xf32>
    %c0_5 = arith.constant 0 : index
    %c0_6 = arith.constant 0 : index
    %4 = vector.load %arg3[%c0_5, %c0_6] : memref<1x1024xf32, #tpu.memory_space<vmem>>, vector<1x1024xf32>
    %5 = vector.broadcast %4 : vector<1x1024xf32> to vector<128x1024xf32>
    %6 = arith.mulf %3, %5 : vector<128x1024xf32>
    %c0_7 = arith.constant 0 : index
    %c0_8 = arith.constant 0 : index
    %7 = vector.load %arg4[%c0_7, %c0_8] : memref<1x1024xf32, #tpu.memory_space<vmem>>, vector<1x1024xf32>
    %8 = vector.broadcast %7 : vector<1x1024xf32> to vector<128x1024xf32>
    %9 = arith.addf %6, %8 : vector<128x1024xf32>
    %cst_9 = arith.constant 0.000000e+00 : f32
    %10 = vector.broadcast %cst_9 : f32 to vector<128x1024xf32>
    %11 = arith.maximumf %9, %10 : vector<128x1024xf32>
    %12 = vector.shape_cast %11 : vector<128x1024xf32> to vector<8x16x1024xf32>
    %cst_10 = arith.constant dense<0.000000e+00> : vector<8x1024xf32>
    %13 = vector.multi_reduction <add>, %12, %cst_10 [1] : vector<8x16x1024xf32> to vector<8x1024xf32>
    %cst_11 = arith.constant 1.600000e+01 : f32
    %14 = vector.broadcast %cst_11 : f32 to vector<8x1024xf32>
    %15 = arith.divf %13, %14 : vector<8x1024xf32>
    %16 = arith.mulf %15, %15 : vector<8x1024xf32>
    %cst_12 = arith.constant dense<0.000000e+00> : vector<8xf32>
    %17 = vector.multi_reduction <add>, %16, %cst_12 [1] : vector<8x1024xf32> to vector<8xf32>
    %18 = vector.shape_cast %17 : vector<8xf32> to vector<8x1xf32>
    %cst_13 = arith.constant 1.000000e-24 : f32
    %19 = vector.broadcast %cst_13 : f32 to vector<8x1xf32>
    %20 = arith.maximumf %18, %19 : vector<8x1xf32>
    %21 = math.rsqrt %20 : vector<8x1xf32>
    %22 = vector.broadcast %21 : vector<8x1xf32> to vector<8x1024xf32>
    %23 = arith.mulf %15, %22 : vector<8x1024xf32>
    %c0_14 = arith.constant 0 : index
    %c0_15 = arith.constant 0 : index
    %24 = vector.load %arg5[%c0_14, %c0_15] : memref<8x1024xf32, #tpu.memory_space<vmem>>, vector<8x1024xf32>
    tpu.vector_store %arg5[%c0_14, %c0_15], %23 {strides = array<i32>} : memref<8x1024xf32, #tpu.memory_space<vmem>>, vector<8x1024xf32>,
    return
  }
  func.func @transform_0(%arg0: i32) -> (i32, i32, i32, i32) {
    %c0_i32 = arith.constant 0 : i32
    %c0_i32_0 = arith.constant 0 : i32
    %c0_i32_1 = arith.constant 0 : i32
    %c0_i32_2 = arith.constant 0 : i32
    return %arg0, %c0_i32, %c0_i32_0, %c0_i32_1 : i32, i32, i32, i32
  }
  func.func @transform_1(%arg0: i32) -> (i32, i32) {
    %c0_i32 = arith.constant 0 : i32
    %c0_i32_0 = arith.constant 0 : i32
    %c0_i32_1 = arith.constant 0 : i32
    return %c0_i32, %c0_i32_0 : i32, i32
  }
  func.func @transform_2(%arg0: i32) -> (i32, i32) {
    %c0_i32 = arith.constant 0 : i32
    %c0_i32_0 = arith.constant 0 : i32
    %c0_i32_1 = arith.constant 0 : i32
    return %c0_i32, %c0_i32_0 : i32, i32
  }
  func.func @transform_3(%arg0: i32) -> (i32, i32) {
    %c0_i32 = arith.constant 0 : i32
    %c0_i32_0 = arith.constant 0 : i32
    %c0_i32_1 = arith.constant 0 : i32
    return %c0_i32, %c0_i32_0 : i32, i32
  }
  func.func @transform_4(%arg0: i32) -> (i32, i32) {
    %c0_i32 = arith.constant 0 : i32
    %c0_i32_0 = arith.constant 0 : i32
    return %arg0, %c0_i32 : i32, i32
  }
}

</mosaic_0001>

<llo_original>
// kernel: video_extractor_forward.3
$region0: #{video_extractor_forward.3}
  #allocation0 [shape = 'u32[]', space=smem, size = 0x4, offset = 0x4, fixed_abs, tag = 'smem constant byte address 0x4 - core index']
  #allocation1 [shape = 'u32[72,128]{1,0:T(1,128)}', space=vmem, size = 0x9000, scoped, tag = 'internal scratch']
  %s0 = inlined_call_operand.vmem [shape: bf16[8,4,4,128], index: 0, kind: input, shape index: {}]
  %s1 = inlined_call_operand.vmem [shape: bf16[128,1024], index: 1, kind: input, shape index: {}]
  %s2 = inlined_call_operand.vmem [shape: f32[1,1024], index: 2, kind: input, shape index: {}]
  %s3 = inlined_call_operand.vmem [shape: f32[1,1024], index: 3, kind: input, shape index: {}]
  %s4 = inlined_call_operand.vmem [shape: f32[8,1024], index: 4, kind: output, shape index: {}]
  %s5 = sld [smem:[#allocation0]]
  $region26: #{video_extractor_forward.3} parent=0
    _
  %s7 = ssub.s32 1, %s5
  %s8 = scalar_select 0, %s7, %s5
  // Predicated region
  $region2: #{video_extractor_forward.3} parent=0 // pred_check
    _
  $region3: #{video_extractor_forward.3} parent=0 // pred_check_branch
    %10 = sbr.rel (0) target = $region5
  $region4: #{video_extractor_forward.3} parent=0 // pred_region
    _
  $region5: #{video_extractor_forward.3} parent=0 // pred_fallthru
    _
  // Predicated region
  $region6: #{video_extractor_forward.3} parent=0 // pred_check
    _
  $region7: #{video_extractor_forward.3} parent=0 // pred_check_branch
    %12 = sbr.rel (0) target = $region9
  $region8: #{video_extractor_forward.3} parent=0 // pred_region
    _
  $region9: #{video_extractor_forward.3} parent=0 // pred_fallthru
    _
  // Predicated region
  $region10: #{video_extractor_forward.3} parent=0 // pred_check
    _
  $region11: #{video_extractor_forward.3} parent=0 // pred_check_branch
    %14 = sbr.rel (0) target = $region13
  $region12: #{video_extractor_forward.3} parent=0 // pred_region
    _
  $region13: #{video_extractor_forward.3} parent=0 // pred_fallthru
    _
  // Predicated region
  $region14: #{video_extractor_forward.3} parent=0 // pred_check
    _
  $region15: #{video_extractor_forward.3} parent=0 // pred_check_branch
    %16 = sbr.rel (0) target = $region17
  $region16: #{video_extractor_forward.3} parent=0 // pred_region
    _
  $region17: #{video_extractor_forward.3} parent=0 // pred_fallthru
    _
  %v17 = vld [vmem:[%s0] sm:$0x3]
  %v18 = vld [vmem:[%s0 + $0x2] sm:$0x3]
  %v19 = vld [vmem:[%s0 + $0x4] sm:$0x3]
  %v20 = vld [vmem:[%s0 + $0x6] sm:$0x3]
  %v21 = vld [vmem:[%s0 + $0x8] sm:$0x3]
  %v22 = vld [vmem:[%s0 + $0xa] sm:$0x3]
  %v23 = vld [vmem:[%s0 + $0xc] sm:$0x3]
  %v24 = vld [vmem:[%s0 + $0xe] sm:$0x3]
  %v25 = vld [vmem:[%s0 + $0x10] sm:$0x3]
  %v26 = vld [vmem:[%s0 + $0x12] sm:$0x3]
  %v27 = vld [vmem:[%s0 + $0x14] sm:$0x3]
  %v28 = vld [vmem:[%s0 + $0x16] sm:$0x3]
  %v29 = vld [vmem:[%s0 + $0x18] sm:$0x3]
  %v30 = vld [vmem:[%s0 + $0x1a] sm:$0x3]
  %v31 = vld [vmem:[%s0 + $0x1c] sm:$0x3]
  %v32 = vld [vmem:[%s0 + $0x1e] sm:$0x3]
  %v33 = vld [vmem:[%s0 + $0x20] sm:$0x3]
  %v34 = vld [vmem:[%s0 + $0x22] sm:$0x3]
  %v35 = vld [vmem:[%s0 + $0x24] sm:$0x3]
  %v36 = vld [vmem:[%s0 + $0x26] sm:$0x3]
  %v37 = vld [vmem:[%s0 + $0x28] sm:$0x3]
  %v38 = vld [vmem:[%s0 + $0x2a] sm:$0x3]
  %v39 = vld [vmem:[%s0 + $0x2c] sm:$0x3]
  %v40 = vld [vmem:[%s0 + $0x2e] sm:$0x3]
  %v41 = vld [vmem:[%s0 + $0x30] sm:$0x3]
  %v42 = vld [vmem:[%s0 + $0x32] sm:$0x3]
  %v43 = vld [vmem:[%s0 + $0x34] sm:$0x3]
  %v44 = vld [vmem:[%s0 + $0x36] sm:$0x3]
  %v45 = vld [vmem:[%s0 + $0x38] sm:$0x3]
  %v46 = vld [vmem:[%s0 + $0x3a] sm:$0x3]
  %v47 = vld [vmem:[%s0 + $0x3c] sm:$0x3]
  %v48 = vld [vmem:[%s0 + $0x3e] sm:$0x3]
  %v49 = vld [vmem:[%s1] sm:$0xff]
  %v50 = vld [vmem:[%s1 + $0x8] sm:$0xff]
  %v51 = vld [vmem:[%s1 + $0x10] sm:$0xff]
  %v52 = vld [vmem:[%s1 + $0x18] sm:$0xff]
  %v53 = vld [vmem:[%s1 + $0x20] sm:$0xff]
  %v54 = vld [vmem:[%s1 + $0x28] sm:$0xff]
  %v55 = vld [vmem:[%s1 + $0x30] sm:$0xff]
  %v56 = vld [vmem:[%s1 + $0x38] sm:$0xff]
  %v57 = vld [vmem:[%s1 + $0x40] sm:$0xff]
  %v58 = vld [vmem:[%s1 + $0x48] sm:$0xff]
  %v59 = vld [vmem:[%s1 + $0x50] sm:$0xff]
  %v60 = vld [vmem:[%s1 + $0x58] sm:$0xff]
  %v61 = vld [vmem:[%s1 + $0x60] sm:$0xff]
  %v62 = vld [vmem:[%s1 + $0x68] sm:$0xff]
  %v63 = vld [vmem:[%s1 + $0x70] sm:$0xff]
  %v64 = vld [vmem:[%s1 + $0x78] sm:$0xff]
  %v65 = vld [vmem:[%s1 + $0x80] sm:$0xff]
  %v66 = vld [vmem:[%s1 + $0x88] sm:$0xff]
  %v67 = vld [vmem:[%s1 + $0x90] sm:$0xff]
  %v68 = vld [vmem:[%s1 + $0x98] sm:$0xff]
  %v69 = vld [vmem:[%s1 + $0xa0] sm:$0xff]
  %v70 = vld [vmem:[%s1 + $0xa8] sm:$0xff]
  %v71 = vld [vmem:[%s1 + $0xb0] sm:$0xff]
  %v72 = vld [vmem:[%s1 + $0xb8] sm:$0xff]
  %v73 = vld [vmem:[%s1 + $0xc0] sm:$0xff]
  %v74 = vld [vmem:[%s1 + $0xc8] sm:$0xff]
  %v75 = vld [vmem:[%s1 + $0xd0] sm:$0xff]
  %v76 = vld [vmem:[%s1 + $0xd8] sm:$0xff]
  %v77 = vld [vmem:[%s1 + $0xe0] sm:$0xff]
  %v78 = vld [vmem:[%s1 + $0xe8] sm:$0xff]
  %v79 = vld [vmem:[%s1 + $0xf0] sm:$0xff]
  %v80 = vld [vmem:[%s1 + $0xf8] sm:$0xff]
  %v81 = vld [vmem:[%s1 + $0x100] sm:$0xff]
  %v82 = vld [vmem:[%s1 + $0x108] sm:$0xff]
  %v83 = vld [vmem:[%s1 + $0x110] sm:$0xff]
  %v84 = vld [vmem:[%s1 + $0x118] sm:$0xff]
  %v85 = vld [vmem:[%s1 + $0x120] sm:$0xff]
  %v86 = vld [vmem:[%s1 + $0x128] sm:$0xff]
  %v87 = vld [vmem:[%s1 + $0x130] sm:$0xff]
  %v88 = vld [vmem:[%s1 + $0x138] sm:$0xff]
  %v89 = vld [vmem:[%s1 + $0x140] sm:$0xff]
  %v90 = vld [vmem:[%s1 + $0x148] sm:$0xff]
  %v91 = vld [vmem:[%s1 + $0x150] sm:$0xff]
  %v92 = vld [vmem:[%s1 + $0x158] sm:$0xff]
  %v93 = vld [vmem:[%s1 + $0x160] sm:$0xff]
  %v94 = vld [vmem:[%s1 + $0x168] sm:$0xff]
  %v95 = vld [vmem:[%s1 + $0x170] sm:$0xff]
  %v96 = vld [vmem:[%s1 + $0x178] sm:$0xff]
  %v97 = vld [vmem:[%s1 + $0x180] sm:$0xff]
  %v98 = vld [vmem:[%s1 + $0x188] sm:$0xff]
  %v99 = vld [vmem:[%s1 + $0x190] sm:$0xff]
  %v100 = vld [vmem:[%s1 + $0x198] sm:$0xff]
  %v101 = vld [vmem:[%s1 + $0x1a0] sm:$0xff]
  %v102 = vld [vmem:[%s1 + $0x1a8] sm:$0xff]
  %v103 = vld [vmem:[%s1 + $0x1b0] sm:$0xff]
  %v104 = vld [vmem:[%s1 + $0x1b8] sm:$0xff]
  %v105 = vld [vmem:[%s1 + $0x1c0] sm:$0xff]
  %v106 = vld [vmem:[%s1 + $0x1c8] sm:$0xff]
  %v107 = vld [vmem:[%s1 + $0x1d0] sm:$0xff]
  %v108 = vld [vmem:[%s1 + $0x1d8] sm:$0xff]
  %v109 = vld [vmem:[%s1 + $0x1e0] sm:$0xff]
  %v110 = vld [vmem:[%s1 + $0x1e8] sm:$0xff]
  %v111 = vld [vmem:[%s1 + $0x1f0] sm:$0xff]
  %v112 = vld [vmem:[%s1 + $0x1f8] sm:$0xff]
  %114 = vst [vmem:[#allocation1] ss:$4 sm:$0xff] %v17
  %s116 = scalar_lea.vmem [#allocation1], 1
  %117 = vst [vmem:[%s116] ss:$4 sm:$0xff] %v18
  %s119 = scalar_lea.vmem [#allocation1], 2
  %120 = vst [vmem:[%s119] ss:$4 sm:$0xff] %v19
  %s122 = scalar_lea.vmem [#allocation1], 3
  %123 = vst [vmem:[%s122] ss:$4 sm:$0xff] %v20
  %s125 = scalar_lea.vmem [#allocation1], 32
  %126 = vst [vmem:[%s125] ss:$4 sm:$0xff] %v21
  %s128 = scalar_lea.vmem [#allocation1], 33
  %129 = vst [vmem:[%s128] ss:$4 sm:$0xff] %v22
  %s131 = scalar_lea.vmem [#allocation1], 34
  %132 = vst [vmem:[%s131] ss:$4 sm:$0xff] %v23
  %s134 = scalar_lea.vmem [#allocation1], 35
  %135 = vst [vmem:[%s134] ss:$4 sm:$0xff] %v24
  %v136 = vld.sshfl [vmem:[#allocation1] sm:$0xff pattern:$0x73625140]
  %v137 = vld.sshfl [vmem:[#allocation1 + $0x20] sm:$0xff pattern:$0x73625140]
  %139 = vst [vmem:[#allocation1] ss:$4 sm:$0xff] %v25
  %141 = vst [vmem:[%s116] ss:$4 sm:$0xff] %v26
  %143 = vst [vmem:[%s119] ss:$4 sm:$0xff] %v27
  %145 = vst [vmem:[%s122] ss:$4 sm:$0xff] %v28
  %147 = vst [vmem:[%s125] ss:$4 sm:$0xff] %v29
  %149 = vst [vmem:[%s128] ss:$4 sm:$0xff] %v30
  %151 = vst [vmem:[%s131] ss:$4 sm:$0xff] %v31
  %153 = vst [vmem:[%s134] ss:$4 sm:$0xff] %v32
  %v154 = vld.sshfl [vmem:[#allocation1] sm:$0xff pattern:$0x73625140]
  %v155 = vld.sshfl [vmem:[#allocation1 + $0x20] sm:$0xff pattern:$0x73625140]
  %157 = vst [vmem:[#allocation1] ss:$4 sm:$0xff] %v33
  %159 = vst [vmem:[%s116] ss:$4 sm:$0xff] %v34
  %161 = vst [vmem:[%s119] ss:$4 sm:$0xff] %v35
  %163 = vst [vmem:[%s122] ss:$4 sm:$0xff] %v36
  %165 = vst [vmem:[%s125] ss:$4 sm:$0xff] %v37
  %167 = vst [vmem:[%s128] ss:$4 sm:$0xff] %v38
  %169 = vst [vmem:[%s131] ss:$4 sm:$0xff] %v39
  %171 = vst [vmem:[%s134] ss:$4 sm:$0xff] %v40
  %v172 = vld.sshfl [vmem:[#allocation1] sm:$0xff pattern:$0x73625140]
  %v173 = vld.sshfl [vmem:[#allocation1 + $0x20] sm:$0xff pattern:$0x73625140]
  %175 = vst [vmem:[#allocation1] ss:$4 sm:$0xff] %v41
  %177 = vst [vmem:[%s116] ss:$4 sm:$0xff] %v42
  %179 = vst [vmem:[%s119] ss:$4 sm:$0xff] %v43
  %181 = vst [vmem:[%s122] ss:$4 sm:$0xff] %v44
  %183 = vst [vmem:[%s125] ss:$4 sm:$0xff] %v45
  %185 = vst [vmem:[%s128] ss:$4 sm:$0xff] %v46
  %187 = vst [vmem:[%s131] ss:$4 sm:$0xff] %v47
  %189 = vst [vmem:[%s134] ss:$4 sm:$0xff] %v48
  %v190 = vld.sshfl [vmem:[#allocation1] sm:$0xff pattern:$0x73625140]
  %v191 = vld.sshfl [vmem:[#allocation1 + $0x20] sm:$0xff pattern:$0x73625140]
  %v264 = vunpack.c.l.b16 %v49
  %v265 = vunpack.c.h.b16 %v49
  %v266 = vunpack.c.l.b16 %v50
  %v267 = vunpack.c.h.b16 %v50
  %v268 = vunpack.c.l.b16 %v51
  %v269 = vunpack.c.h.b16 %v51
  %v270 = vunpack.c.l.b16 %v52
  %v271 = vunpack.c.h.b16 %v52
  %v272 = vunpack.c.l.b16 %v53
  %v273 = vunpack.c.h.b16 %v53
  %v274 = vunpack.c.l.b16 %v54
  %v275 = vunpack.c.h.b16 %v54
  %v276 = vunpack.c.l.b16 %v55
  %v277 = vunpack.c.h.b16 %v55
  %v278 = vunpack.c.l.b16 %v56
  %v279 = vunpack.c.h.b16 %v56
  %v280 = vunpack.c.l.b16 %v57
  %v281 = vunpack.c.h.b16 %v57
  %v282 = vunpack.c.l.b16 %v58
  %v283 = vunpack.c.h.b16 %v58
  %v284 = vunpack.c.l.b16 %v59
  %v285 = vunpack.c.h.b16 %v59
  %v286 = vunpack.c.l.b16 %v60
  %v287 = vunpack.c.h.b16 %v60
  %v288 = vunpack.c.l.b16 %v61
  %v289 = vunpack.c.h.b16 %v61
  %v290 = vunpack.c.l.b16 %v62
  %v291 = vunpack.c.h.b16 %v62
  %v292 = vunpack.c.l.b16 %v63
  %v293 = vunpack.c.h.b16 %v63
  %v294 = vunpack.c.l.b16 %v64
  %v295 = vunpack.c.h.b16 %v64
  %v296 = vunpack.c.l.b16 %v65
  %v297 = vunpack.c.h.b16 %v65
  %v298 = vunpack.c.l.b16 %v66
  %v299 = vunpack.c.h.b16 %v66
  %v300 = vunpack.c.l.b16 %v67
  %v301 = vunpack.c.h.b16 %v67
  %v302 = vunpack.c.l.b16 %v68
  %v303 = vunpack.c.h.b16 %v68
  %v304 = vunpack.c.l.b16 %v69
  %v305 = vunpack.c.h.b16 %v69
  %v306 = vunpack.c.l.b16 %v70
  %v307 = vunpack.c.h.b16 %v70
  %v308 = vunpack.c.l.b16 %v71
  %v309 = vunpack.c.h.b16 %v71
  %v310 = vunpack.c.l.b16 %v72
  %v311 = vunpack.c.h.b16 %v72
  %v312 = vunpack.c.l.b16 %v73
  %v313 = vunpack.c.h.b16 %v73
  %v314 = vunpack.c.l.b16 %v74
  %v315 = vunpack.c.h.b16 %v74
  %v316 = vunpack.c.l.b16 %v75
  %v317 = vunpack.c.h.b16 %v75
  %v318 = vunpack.c.l.b16 %v76
  %v319 = vunpack.c.h.b16 %v76
  %v320 = vunpack.c.l.b16 %v77
  %v321 = vunpack.c.h.b16 %v77
  %v322 = vunpack.c.l.b16 %v78
  %v323 = vunpack.c.h.b16 %v78
  %v324 = vunpack.c.l.b16 %v79
  %v325 = vunpack.c.h.b16 %v79
  %v326 = vunpack.c.l.b16 %v80
  %v327 = vunpack.c.h.b16 %v80
  %v328 = vunpack.c.l.b16 %v81
  %v329 = vunpack.c.h.b16 %v81
  %v330 = vunpack.c.l.b16 %v82
  %v331 = vunpack.c.h.b16 %v82
  %v332 = vunpack.c.l.b16 %v83
  %v333 = vunpack.c.h.b16 %v83
  %v334 = vunpack.c.l.b16 %v84
  %v335 = vunpack.c.h.b16 %v84
  %v336 = vunpack.c.l.b16 %v85
  %v337 = vunpack.c.h.b16 %v85
  %v338 = vunpack.c.l.b16 %v86
  %v339 = vunpack.c.h.b16 %v86
  %v340 = vunpack.c.l.b16 %v87
  %v341 = vunpack.c.h.b16 %v87
  %v342 = vunpack.c.l.b16 %v88
  %v343 = vunpack.c.h.b16 %v88
  %v344 = vunpack.c.l.b16 %v89
  %v345 = vunpack.c.h.b16 %v89
  %v346 = vunpack.c.l.b16 %v90
  %v347 = vunpack.c.h.b16 %v90
  %v348 = vunpack.c.l.b16 %v91
  %v349 = vunpack.c.h.b16 %v91
  %v350 = vunpack.c.l.b16 %v92
  %v351 = vunpack.c.h.b16 %v92
  %v352 = vunpack.c.l.b16 %v93
  %v353 = vunpack.c.h.b16 %v93
  %v354 = vunpack.c.l.b16 %v94
  %v355 = vunpack.c.h.b16 %v94
  %v356 = vunpack.c.l.b16 %v95
  %v357 = vunpack.c.h.b16 %v95
  %v358 = vunpack.c.l.b16 %v96
  %v359 = vunpack.c.h.b16 %v96
  %v360 = vunpack.c.l.b16 %v97
  %v361 = vunpack.c.h.b16 %v97
  %v362 = vunpack.c.l.b16 %v98
  %v363 = vunpack.c.h.b16 %v98
  %v364 = vunpack.c.l.b16 %v99
  %v365 = vunpack.c.h.b16 %v99
  %v366 = vunpack.c.l.b16 %v100
  %v367 = vunpack.c.h.b16 %v100
  %v368 = vunpack.c.l.b16 %v101
  %v369 = vunpack.c.h.b16 %v101
  %v370 = vunpack.c.l.b16 %v102
  %v371 = vunpack.c.h.b16 %v102
  %v372 = vunpack.c.l.b16 %v103
  %v373 = vunpack.c.h.b16 %v103
  %v374 = vunpack.c.l.b16 %v104
  %v375 = vunpack.c.h.b16 %v104
  %v376 = vunpack.c.l.b16 %v105
  %v377 = vunpack.c.h.b16 %v105
  %v378 = vunpack.c.l.b16 %v106
  %v379 = vunpack.c.h.b16 %v106
  %v380 = vunpack.c.l.b16 %v107
  %v381 = vunpack.c.h.b16 %v107
  %v382 = vunpack.c.l.b16 %v108
  %v383 = vunpack.c.h.b16 %v108
  %v384 = vunpack.c.l.b16 %v109
  %v385 = vunpack.c.h.b16 %v109
  %v386 = vunpack.c.l.b16 %v110
  %v387 = vunpack.c.h.b16 %v110
  %v388 = vunpack.c.l.b16 %v111
  %v389 = vunpack.c.h.b16 %v111
  %v390 = vunpack.c.l.b16 %v112
  %v391 = vunpack.c.h.b16 %v112
  %v392 = vpack.c.b16 %v272, %v264
  %v393 = vpack.c.b16 %v273, %v265
  %v394 = vpack.c.b16 %v274, %v266
  %v395 = vpack.c.b16 %v275, %v267
  %v396 = vpack.c.b16 %v276, %v268
  %v397 = vpack.c.b16 %v277, %v269
  %v398 = vpack.c.b16 %v278, %v270
  %v399 = vpack.c.b16 %v279, %v271
  %v400 = vpack.c.b16 %v288, %v280
  %v401 = vpack.c.b16 %v289, %v281
  %v402 = vpack.c.b16 %v290, %v282
  %v403 = vpack.c.b16 %v291, %v283
  %v404 = vpack.c.b16 %v292, %v284
  %v405 = vpack.c.b16 %v293, %v285
  %v406 = vpack.c.b16 %v294, %v286
  %v407 = vpack.c.b16 %v295, %v287
  %v408 = vpack.c.b16 %v304, %v296
  %v409 = vpack.c.b16 %v305, %v297
  %v410 = vpack.c.b16 %v306, %v298
  %v411 = vpack.c.b16 %v307, %v299
  %v412 = vpack.c.b16 %v308, %v300
  %v413 = vpack.c.b16 %v309, %v301
  %v414 = vpack.c.b16 %v310, %v302
  %v415 = vpack.c.b16 %v311, %v303
  %v416 = vpack.c.b16 %v320, %v312
  %v417 = vpack.c.b16 %v321, %v313
  %v418 = vpack.c.b16 %v322, %v314
  %v419 = vpack.c.b16 %v323, %v315
  %v420 = vpack.c.b16 %v324, %v316
  %v421 = vpack.c.b16 %v325, %v317
  %v422 = vpack.c.b16 %v326, %v318
  %v423 = vpack.c.b16 %v327, %v319
  %v424 = vpack.c.b16 %v336, %v328
  %v425 = vpack.c.b16 %v337, %v329
  %v426 = vpack.c.b16 %v338, %v330
  %v427 = vpack.c.b16 %v339, %v331
  %v428 = vpack.c.b16 %v340, %v332
  %v429 = vpack.c.b16 %v341, %v333
  %v430 = vpack.c.b16 %v342, %v334
  %v431 = vpack.c.b16 %v343, %v335
  %v432 = vpack.c.b16 %v352, %v344
  %v433 = vpack.c.b16 %v353, %v345
  %v434 = vpack.c.b16 %v354, %v346
  %v435 = vpack.c.b16 %v355, %v347
  %v436 = vpack.c.b16 %v356, %v348
  %v437 = vpack.c.b16 %v357, %v349
  %v438 = vpack.c.b16 %v358, %v350
  %v439 = vpack.c.b16 %v359, %v351
  %v440 = vpack.c.b16 %v368, %v360
  %v441 = vpack.c.b16 %v369, %v361
  %v442 = vpack.c.b16 %v370, %v362
  %v443 = vpack.c.b16 %v371, %v363
  %v444 = vpack.c.b16 %v372, %v364
  %v445 = vpack.c.b16 %v373, %v365
  %v446 = vpack.c.b16 %v374, %v366
  %v447 = vpack.c.b16 %v375, %v367
  %v448 = vpack.c.b16 %v384, %v376
  %v449 = vpack.c.b16 %v385, %v377
  %v450 = vpack.c.b16 %v386, %v378
  %v451 = vpack.c.b16 %v387, %v379
  %v452 = vpack.c.b16 %v388, %v380
  %v453 = vpack.c.b16 %v389, %v381
  %v454 = vpack.c.b16 %v390, %v382
  %v455 = vpack.c.b16 %v391, %v383
  %520 = vmatpush.bf16.msra.mxu0 %v448
  %521 = vmatpush.bf16.msra.mxu0 %v440
  %522 = vmatpush.bf16.msra.mxu0 %v432
  %523 = vmatpush.bf16.msra.mxu0 %v424
  %524 = vmatpush.bf16.msra.mxu0 %v416
  %525 = vmatpush.bf16.msra.mxu0 %v408
  %526 = vmatpush.bf16.msra.mxu0 %v400
  %527 = vmatpush.bf16.msra.mxu0 %v392
  %528 = vmatmul.bf16.gmra.mxu0 %v136
  %v529 = vpop.f32.mrf.mxu0
  %v530 = vadd.f32 0.0, %v529
  %v531 = vpop.f32.mrf.mxu0
  %v532 = vadd.f32 0.0, %v531
  %533 = vmatmul.bf16.gmra.mxu0 %v137
  %v534 = vpop.f32.mrf.mxu0
  %v535 = vadd.f32 0.0, %v534
  %v536 = vpop.f32.mrf.mxu0
  %v537 = vadd.f32 0.0, %v536
  %538 = vmatmul.bf16.gmra.mxu0 %v154
  %v539 = vpop.f32.mrf.mxu0
  %v540 = vadd.f32 0.0, %v539
  %v541 = vpop.f32.mrf.mxu0
  %v542 = vadd.f32 0.0, %v541
  %543 = vmatmul.bf16.gmra.mxu0 %v155
  %v544 = vpop.f32.mrf.mxu0
  %v545 = vadd.f32 0.0, %v544
  %v546 = vpop.f32.mrf.mxu0
  %v547 = vadd.f32 0.0, %v546
  %548 = vmatmul.bf16.gmra.mxu0 %v172
  %v549 = vpop.f32.mrf.mxu0
  %v550 = vadd.f32 0.0, %v549
  %v551 = vpop.f32.mrf.mxu0
  %v552 = vadd.f32 0.0, %v551
  %553 = vmatmul.bf16.gmra.mxu0 %v173
  %v554 = vpop.f32.mrf.mxu0
  %v555 = vadd.f32 0.0, %v554
  %v556 = vpop.f32.mrf.mxu0
  %v557 = vadd.f32 0.0, %v556
  %558 = vmatmul.bf16.gmra.mxu0 %v190
  %v559 = vpop.f32.mrf.mxu0
  %v560 = vadd.f32 0.0, %v559
  %v561 = vpop.f32.mrf.mxu0
  %v562 = vadd.f32 0.0, %v561
  %563 = vmatmul.bf16.gmra.mxu0 %v191
  %v564 = vpop.f32.mrf.mxu0
  %v565 = vadd.f32 0.0, %v564
  %v566 = vpop.f32.mrf.mxu0
  %v567 = vadd.f32 0.0, %v566
  %568 = vdwg.mxu0
  %569 = vmatpush.bf16.msra.mxu0 %v449
  %570 = vmatpush.bf16.msra.mxu0 %v441
  %571 = vmatpush.bf16.msra.mxu0 %v433
  %572 = vmatpush.bf16.msra.mxu0 %v425
  %573 = vmatpush.bf16.msra.mxu0 %v417
  %574 = vmatpush.bf16.msra.mxu0 %v409
  %575 = vmatpush.bf16.msra.mxu0 %v401
  %576 = vmatpush.bf16.msra.mxu0 %v393
  %577 = vmatmul.bf16.gmra.mxu0 %v136
  %v578 = vpop.f32.mrf.mxu0
  %v579 = vadd.f32 0.0, %v578
  %v580 = vpop.f32.mrf.mxu0
  %v581 = vadd.f32 0.0, %v580
  %582 = vmatmul.bf16.gmra.mxu0 %v137
  %v583 = vpop.f32.mrf.mxu0
  %v584 = vadd.f32 0.0, %v583
  %v585 = vpop.f32.mrf.mxu0
  %v586 = vadd.f32 0.0, %v585
  %587 = vmatmul.bf16.gmra.mxu0 %v154
  %v588 = vpop.f32.mrf.mxu0
  %v589 = vadd.f32 0.0, %v588
  %v590 = vpop.f32.mrf.mxu0
  %v591 = vadd.f32 0.0, %v590
  %592 = vmatmul.bf16.gmra.mxu0 %v155
  %v593 = vpop.f32.mrf.mxu0
  %v594 = vadd.f32 0.0, %v593
  %v595 = vpop.f32.mrf.mxu0
  %v596 = vadd.f32 0.0, %v595
  %597 = vmatmul.bf16.gmra.mxu0 %v172
  %v598 = vpop.f32.mrf.mxu0
  %v599 = vadd.f32 0.0, %v598
  %v600 = vpop.f32.mrf.mxu0
  %v601 = vadd.f32 0.0, %v600
  %602 = vmatmul.bf16.gmra.mxu0 %v173
  %v603 = vpop.f32.mrf.mxu0
  %v604 = vadd.f32 0.0, %v603
  %v605 = vpop.f32.mrf.mxu0
  %v606 = vadd.f32 0.0, %v605
  %607 = vmatmul.bf16.gmra.mxu0 %v190
  %v608 = vpop.f32.mrf.mxu0
  %v609 = vadd.f32 0.0, %v608
  %v610 = vpop.f32.mrf.mxu0
  %v611 = vadd.f32 0.0, %v610
  %612 = vmatmul.bf16.gmra.mxu0 %v191
  %v613 = vpop.f32.mrf.mxu0
  %v614 = vadd.f32 0.0, %v613
  %v615 = vpop.f32.mrf.mxu0
  %v616 = vadd.f32 0.0, %v615
  %617 = vdwg.mxu0
  %618 = vmatpush.bf16.msra.mxu0 %v450
  %619 = vmatpush.bf16.msra.mxu0 %v442
  %620 = vmatpush.bf16.msra.mxu0 %v434
  %621 = vmatpush.bf16.msra.mxu0 %v426
  %622 = vmatpush.bf16.msra.mxu0 %v418
  %623 = vmatpush.bf16.msra.mxu0 %v410
  %624 = vmatpush.bf16.msra.mxu0 %v402
  %625 = vmatpush.bf16.msra.mxu0 %v394
  %626 = vmatmul.bf16.gmra.mxu0 %v136
  %v627 = vpop.f32.mrf.mxu0
  %v628 = vadd.f32 0.0, %v627
  %v629 = vpop.f32.mrf.mxu0
  %v630 = vadd.f32 0.0, %v629
  %631 = vmatmul.bf16.gmra.mxu0 %v137
  %v632 = vpop.f32.mrf.mxu0
  %v633 = vadd.f32 0.0, %v632
  %v634 = vpop.f32.mrf.mxu0
  %v635 = vadd.f32 0.0, %v634
  %636 = vmatmul.bf16.gmra.mxu0 %v154
  %v637 = vpop.f32.mrf.mxu0
  %v638 = vadd.f32 0.0, %v637
  %v639 = vpop.f32.mrf.mxu0
  %v640 = vadd.f32 0.0, %v639
  %641 = vmatmul.bf16.gmra.mxu0 %v155
  %v642 = vpop.f32.mrf.mxu0
  %v643 = vadd.f32 0.0, %v642
  %v644 = vpop.f32.mrf.mxu0
  %v645 = vadd.f32 0.0, %v644
  %646 = vmatmul.bf16.gmra.mxu0 %v172
  %v647 = vpop.f32.mrf.mxu0
  %v648 = vadd.f32 0.0, %v647
  %v649 = vpop.f32.mrf.mxu0
  %v650 = vadd.f32 0.0, %v649
  %651 = vmatmul.bf16.gmra.mxu0 %v173
  %v652 = vpop.f32.mrf.mxu0
  %v653 = vadd.f32 0.0, %v652
  %v654 = vpop.f32.mrf.mxu0
  %v655 = vadd.f32 0.0, %v654
  %656 = vmatmul.bf16.gmra.mxu0 %v190
  %v657 = vpop.f32.mrf.mxu0
  %v658 = vadd.f32 0.0, %v657
  %v659 = vpop.f32.mrf.mxu0
  %v660 = vadd.f32 0.0, %v659
  %661 = vmatmul.bf16.gmra.mxu0 %v191
  %v662 = vpop.f32.mrf.mxu0
  %v663 = vadd.f32 0.0, %v662
  %v664 = vpop.f32.mrf.mxu0
  %v665 = vadd.f32 0.0, %v664
  %666 = vdwg.mxu0
  %667 = vmatpush.bf16.msra.mxu0 %v451
  %668 = vmatpush.bf16.msra.mxu0 %v443
  %669 = vmatpush.bf16.msra.mxu0 %v435
  %670 = vmatpush.bf16.msra.mxu0 %v427
  %671 = vmatpush.bf16.msra.mxu0 %v419
  %672 = vmatpush.bf16.msra.mxu0 %v411
  %673 = vmatpush.bf16.msra.mxu0 %v403
  %674 = vmatpush.bf16.msra.mxu0 %v395
  %675 = vmatmul.bf16.gmra.mxu0 %v136
  %v676 = vpop.f32.mrf.mxu0
  %v677 = vadd.f32 0.0, %v676
  %v678 = vpop.f32.mrf.mxu0
  %v679 = vadd.f32 0.0, %v678
  %680 = vmatmul.bf16.gmra.mxu0 %v137
  %v681 = vpop.f32.mrf.mxu0
  %v682 = vadd.f32 0.0, %v681
  %v683 = vpop.f32.mrf.mxu0
  %v684 = vadd.f32 0.0, %v683
  %685 = vmatmul.bf16.gmra.mxu0 %v154
  %v686 = vpop.f32.mrf.mxu0
  %v687 = vadd.f32 0.0, %v686
  %v688 = vpop.f32.mrf.mxu0
  %v689 = vadd.f32 0.0, %v688
  %690 = vmatmul.bf16.gmra.mxu0 %v155
  %v691 = vpop.f32.mrf.mxu0
  %v692 = vadd.f32 0.0, %v691
  %v693 = vpop.f32.mrf.mxu0
  %v694 = vadd.f32 0.0, %v693
  %695 = vmatmul.bf16.gmra.mxu0 %v172
  %v696 = vpop.f32.mrf.mxu0
  %v697 = vadd.f32 0.0, %v696
  %v698 = vpop.f32.mrf.mxu0
  %v699 = vadd.f32 0.0, %v698
  %700 = vmatmul.bf16.gmra.mxu0 %v173
  %v701 = vpop.f32.mrf.mxu0
  %v702 = vadd.f32 0.0, %v701
  %v703 = vpop.f32.mrf.mxu0
  %v704 = vadd.f32 0.0, %v703
  %705 = vmatmul.bf16.gmra.mxu0 %v190
  %v706 = vpop.f32.mrf.mxu0
  %v707 = vadd.f32 0.0, %v706
  %v708 = vpop.f32.mrf.mxu0
  %v709 = vadd.f32 0.0, %v708
  %710 = vmatmul.bf16.gmra.mxu0 %v191
  %v711 = vpop.f32.mrf.mxu0
  %v712 = vadd.f32 0.0, %v711
  %v713 = vpop.f32.mrf.mxu0
  %v714 = vadd.f32 0.0, %v713
  %715 = vdwg.mxu0
  %716 = vmatpush.bf16.msra.mxu0 %v452
  %717 = vmatpush.bf16.msra.mxu0 %v444
  %718 = vmatpush.bf16.msra.mxu0 %v436
  %719 = vmatpush.bf16.msra.mxu0 %v428
  %720 = vmatpush.bf16.msra.mxu0 %v420
  %721 = vmatpush.bf16.msra.mxu0 %v412
  %722 = vmatpush.bf16.msra.mxu0 %v404
  %723 = vmatpush.bf16.msra.mxu0 %v396
  %724 = vmatmul.bf16.gmra.mxu0 %v136
  %v725 = vpop.f32.mrf.mxu0
  %v726 = vadd.f32 0.0, %v725
  %v727 = vpop.f32.mrf.mxu0
  %v728 = vadd.f32 0.0, %v727
  %729 = vmatmul.bf16.gmra.mxu0 %v137
  %v730 = vpop.f32.mrf.mxu0
  %v731 = vadd.f32 0.0, %v730
  %v732 = vpop.f32.mrf.mxu0
  %v733 = vadd.f32 0.0, %v732
  %734 = vmatmul.bf16.gmra.mxu0 %v154
  %v735 = vpop.f32.mrf.mxu0
  %v736 = vadd.f32 0.0, %v735
  %v737 = vpop.f32.mrf.mxu0
  %v738 = vadd.f32 0.0, %v737
  %739 = vmatmul.bf16.gmra.mxu0 %v155
  %v740 = vpop.f32.mrf.mxu0
  %v741 = vadd.f32 0.0, %v740
  %v742 = vpop.f32.mrf.mxu0
  %v743 = vadd.f32 0.0, %v742
  %744 = vmatmul.bf16.gmra.mxu0 %v172
  %v745 = vpop.f32.mrf.mxu0
  %v746 = vadd.f32 0.0, %v745
  %v747 = vpop.f32.mrf.mxu0
  %v748 = vadd.f32 0.0, %v747
  %749 = vmatmul.bf16.gmra.mxu0 %v173
  %v750 = vpop.f32.mrf.mxu0
  %v751 = vadd.f32 0.0, %v750
  %v752 = vpop.f32.mrf.mxu0
  %v753 = vadd.f32 0.0, %v752
  %754 = vmatmul.bf16.gmra.mxu0 %v190
  %v755 = vpop.f32.mrf.mxu0
  %v756 = vadd.f32 0.0, %v755
  %v757 = vpop.f32.mrf.mxu0
  %v758 = vadd.f32 0.0, %v757
  %759 = vmatmul.bf16.gmra.mxu0 %v191
  %v760 = vpop.f32.mrf.mxu0
  %v761 = vadd.f32 0.0, %v760
  %v762 = vpop.f32.mrf.mxu0
  %v763 = vadd.f32 0.0, %v762
  %764 = vdwg.mxu0
  %765 = vmatpush.bf16.msra.mxu0 %v453
  %766 = vmatpush.bf16.msra.mxu0 %v445
  %767 = vmatpush.bf16.msra.mxu0 %v437
  %768 = vmatpush.bf16.msra.mxu0 %v429
  %769 = vmatpush.bf16.msra.mxu0 %v421
  %770 = vmatpush.bf16.msra.mxu0 %v413
  %771 = vmatpush.bf16.msra.mxu0 %v405
  %772 = vmatpush.bf16.msra.mxu0 %v397
  %773 = vmatmul.bf16.gmra.mxu0 %v136
  %v774 = vpop.f32.mrf.mxu0
  %v775 = vadd.f32 0.0, %v774
  %v776 = vpop.f32.mrf.mxu0
  %v777 = vadd.f32 0.0, %v776
  %778 = vmatmul.bf16.gmra.mxu0 %v137
  %v779 = vpop.f32.mrf.mxu0
  %v780 = vadd.f32 0.0, %v779
  %v781 = vpop.f32.mrf.mxu0
  %v782 = vadd.f32 0.0, %v781
  %783 = vmatmul.bf16.gmra.mxu0 %v154
  %v784 = vpop.f32.mrf.mxu0
  %v785 = vadd.f32 0.0, %v784
  %v786 = vpop.f32.mrf.mxu0
  %v787 = vadd.f32 0.0, %v786
  %788 = vmatmul.bf16.gmra.mxu0 %v155
  %v789 = vpop.f32.mrf.mxu0
  %v790 = vadd.f32 0.0, %v789
  %v791 = vpop.f32.mrf.mxu0
  %v792 = vadd.f32 0.0, %v791
  %793 = vmatmul.bf16.gmra.mxu0 %v172
  %v794 = vpop.f32.mrf.mxu0
  %v795 = vadd.f32 0.0, %v794
  %v796 = vpop.f32.mrf.mxu0
  %v797 = vadd.f32 0.0, %v796
  %798 = vmatmul.bf16.gmra.mxu0 %v173
  %v799 = vpop.f32.mrf.mxu0
  %v800 = vadd.f32 0.0, %v799
  %v801 = vpop.f32.mrf.mxu0
  %v802 = vadd.f32 0.0, %v801
  %803 = vmatmul.bf16.gmra.mxu0 %v190
  %v804 = vpop.f32.mrf.mxu0
  %v805 = vadd.f32 0.0, %v804
  %v806 = vpop.f32.mrf.mxu0
  %v807 = vadd.f32 0.0, %v806
  %808 = vmatmul.bf16.gmra.mxu0 %v191
  %v809 = vpop.f32.mrf.mxu0
  %v810 = vadd.f32 0.0, %v809
  %v811 = vpop.f32.mrf.mxu0
  %v812 = vadd.f32 0.0, %v811
  %813 = vdwg.mxu0
  %814 = vmatpush.bf16.msra.mxu0 %v454
  %815 = vmatpush.bf16.msra.mxu0 %v446
  %816 = vmatpush.bf16.msra.mxu0 %v438
  %817 = vmatpush.bf16.msra.mxu0 %v430
  %818 = vmatpush.bf16.msra.mxu0 %v422
  %819 = vmatpush.bf16.msra.mxu0 %v414
  %820 = vmatpush.bf16.msra.mxu0 %v406
  %821 = vmatpush.bf16.msra.mxu0 %v398
  %822 = vmatmul.bf16.gmra.mxu0 %v136
  %v823 = vpop.f32.mrf.mxu0
  %v824 = vadd.f32 0.0, %v823
  %v825 = vpop.f32.mrf.mxu0
  %v826 = vadd.f32 0.0, %v825
  %827 = vmatmul.bf16.gmra.mxu0 %v137
  %v828 = vpop.f32.mrf.mxu0
  %v829 = vadd.f32 0.0, %v828
  %v830 = vpop.f32.mrf.mxu0
  %v831 = vadd.f32 0.0, %v830
  %832 = vmatmul.bf16.gmra.mxu0 %v154
  %v833 = vpop.f32.mrf.mxu0
  %v834 = vadd.f32 0.0, %v833
  %v835 = vpop.f32.mrf.mxu0
  %v836 = vadd.f32 0.0, %v835
  %837 = vmatmul.bf16.gmra.mxu0 %v155
  %v838 = vpop.f32.mrf.mxu0
  %v839 = vadd.f32 0.0, %v838
  %v840 = vpop.f32.mrf.mxu0
  %v841 = vadd.f32 0.0, %v840
  %842 = vmatmul.bf16.gmra.mxu0 %v172
  %v843 = vpop.f32.mrf.mxu0
  %v844 = vadd.f32 0.0, %v843
  %v845 = vpop.f32.mrf.mxu0
  %v846 = vadd.f32 0.0, %v845
  %847 = vmatmul.bf16.gmra.mxu0 %v173
  %v848 = vpop.f32.mrf.mxu0
  %v849 = vadd.f32 0.0, %v848
  %v850 = vpop.f32.mrf.mxu0
  %v851 = vadd.f32 0.0, %v850
  %852 = vmatmul.bf16.gmra.mxu0 %v190
  %v853 = vpop.f32.mrf.mxu0
  %v854 = vadd.f32 0.0, %v853
  %v855 = vpop.f32.mrf.mxu0
  %v856 = vadd.f32 0.0, %v855
  %857 = vmatmul.bf16.gmra.mxu0 %v191
  %v858 = vpop.f32.mrf.mxu0
  %v859 = vadd.f32 0.0, %v858
  %v860 = vpop.f32.mrf.mxu0
  %v861 = vadd.f32 0.0, %v860
  %862 = vdwg.mxu0
  %863 = vmatpush.bf16.msra.mxu0 %v455
  %864 = vmatpush.bf16.msra.mxu0 %v447
  %865 = vmatpush.bf16.msra.mxu0 %v439
  %866 = vmatpush.bf16.msra.mxu0 %v431
  %867 = vmatpush.bf16.msra.mxu0 %v423
  %868 = vmatpush.bf16.msra.mxu0 %v415
  %869 = vmatpush.bf16.msra.mxu0 %v407
  %870 = vmatpush.bf16.msra.mxu0 %v399
  %871 = vmatmul.bf16.gmra.mxu0 %v136
  %v872 = vpop.f32.mrf.mxu0
  %v873 = vadd.f32 0.0, %v872
  %v874 = vpop.f32.mrf.mxu0
  %v875 = vadd.f32 0.0, %v874
  %876 = vmatmul.bf16.gmra.mxu0 %v137
  %v877 = vpop.f32.mrf.mxu0
  %v878 = vadd.f32 0.0, %v877
  %v879 = vpop.f32.mrf.mxu0
  %v880 = vadd.f32 0.0, %v879
  %881 = vmatmul.bf16.gmra.mxu0 %v154
  %v882 = vpop.f32.mrf.mxu0
  %v883 = vadd.f32 0.0, %v882
  %v884 = vpop.f32.mrf.mxu0
  %v885 = vadd.f32 0.0, %v884
  %886 = vmatmul.bf16.gmra.mxu0 %v155
  %v887 = vpop.f32.mrf.mxu0
  %v888 = vadd.f32 0.0, %v887
  %v889 = vpop.f32.mrf.mxu0
  %v890 = vadd.f32 0.0, %v889
  %891 = vmatmul.bf16.gmra.mxu0 %v172
  %v892 = vpop.f32.mrf.mxu0
  %v893 = vadd.f32 0.0, %v892
  %v894 = vpop.f32.mrf.mxu0
  %v895 = vadd.f32 0.0, %v894
  %896 = vmatmul.bf16.gmra.mxu0 %v173
  %v897 = vpop.f32.mrf.mxu0
  %v898 = vadd.f32 0.0, %v897
  %v899 = vpop.f32.mrf.mxu0
  %v900 = vadd.f32 0.0, %v899
  %901 = vmatmul.bf16.gmra.mxu0 %v190
  %v902 = vpop.f32.mrf.mxu0
  %v903 = vadd.f32 0.0, %v902
  %v904 = vpop.f32.mrf.mxu0
  %v905 = vadd.f32 0.0, %v904
  %906 = vmatmul.bf16.gmra.mxu0 %v191
  %v907 = vpop.f32.mrf.mxu0
  %v908 = vadd.f32 0.0, %v907
  %v909 = vpop.f32.mrf.mxu0
  %v910 = vadd.f32 0.0, %v909
  %911 = vdwg.mxu0
  %v912 = vld [vmem:[%s2] sm:$0xff]
  %v914 = vperm.slane %v912, 0
  %v915 = vperm.slane %v912, 1
  %v916 = vperm.slane %v912, 2
  %v917 = vperm.slane %v912, 3
  %v918 = vperm.slane %v912, 4
  %v919 = vperm.slane %v912, 5
  %v920 = vperm.slane %v912, 6
  %v921 = vperm.slane %v912, 7
  %v930 = vmul.f32 %v530, %v914
  %v931 = vmul.f32 %v579, %v915
  %v932 = vmul.f32 %v628, %v916
  %v933 = vmul.f32 %v677, %v917
  %v934 = vmul.f32 %v726, %v918
  %v935 = vmul.f32 %v775, %v919
  %v936 = vmul.f32 %v824, %v920
  %v937 = vmul.f32 %v873, %v921
  %v938 = vmul.f32 %v532, %v914
  %v939 = vmul.f32 %v581, %v915
  %v940 = vmul.f32 %v630, %v916
  %v941 = vmul.f32 %v679, %v917
  %v942 = vmul.f32 %v728, %v918
  %v943 = vmul.f32 %v777, %v919
  %v944 = vmul.f32 %v826, %v920
  %v945 = vmul.f32 %v875, %v921
  %v946 = vmul.f32 %v535, %v914
  %v947 = vmul.f32 %v584, %v915
  %v948 = vmul.f32 %v633, %v916
  %v949 = vmul.f32 %v682, %v917
  %v950 = vmul.f32 %v731, %v918
  %v951 = vmul.f32 %v780, %v919
  %v952 = vmul.f32 %v829, %v920
  %v953 = vmul.f32 %v878, %v921
  %v954 = vmul.f32 %v537, %v914
  %v955 = vmul.f32 %v586, %v915
  %v956 = vmul.f32 %v635, %v916
  %v957 = vmul.f32 %v684, %v917
  %v958 = vmul.f32 %v733, %v918
  %v959 = vmul.f32 %v782, %v919
  %v960 = vmul.f32 %v831, %v920
  %v961 = vmul.f32 %v880, %v921
  %v962 = vmul.f32 %v540, %v914
  %v963 = vmul.f32 %v589, %v915
  %v964 = vmul.f32 %v638, %v916
  %v965 = vmul.f32 %v687, %v917
  %v966 = vmul.f32 %v736, %v918
  %v967 = vmul.f32 %v785, %v919
  %v968 = vmul.f32 %v834, %v920
  %v969 = vmul.f32 %v883, %v921
  %v970 = vmul.f32 %v542, %v914
  %v971 = vmul.f32 %v591, %v915
  %v972 = vmul.f32 %v640, %v916
  %v973 = vmul.f32 %v689, %v917
  %v974 = vmul.f32 %v738, %v918
  %v975 = vmul.f32 %v787, %v919
  %v976 = vmul.f32 %v836, %v920
  %v977 = vmul.f32 %v885, %v921
  %v978 = vmul.f32 %v545, %v914
  %v979 = vmul.f32 %v594, %v915
  %v980 = vmul.f32 %v643, %v916
  %v981 = vmul.f32 %v692, %v917
  %v982 = vmul.f32 %v741, %v918
  %v983 = vmul.f32 %v790, %v919
  %v984 = vmul.f32 %v839, %v920
  %v985 = vmul.f32 %v888, %v921
  %v986 = vmul.f32 %v547, %v914
  %v987 = vmul.f32 %v596, %v915
  %v988 = vmul.f32 %v645, %v916
  %v989 = vmul.f32 %v694, %v917
  %v990 = vmul.f32 %v743, %v918
  %v991 = vmul.f32 %v792, %v919
  %v992 = vmul.f32 %v841, %v920
  %v993 = vmul.f32 %v890, %v921
  %v994 = vmul.f32 %v550, %v914
  %v995 = vmul.f32 %v599, %v915
  %v996 = vmul.f32 %v648, %v916
  %v997 = vmul.f32 %v697, %v917
  %v998 = vmul.f32 %v746, %v918
  %v999 = vmul.f32 %v795, %v919
  %v1000 = vmul.f32 %v844, %v920
  %v1001 = vmul.f32 %v893, %v921
  %v1002 = vmul.f32 %v552, %v914
  %v1003 = vmul.f32 %v601, %v915
  %v1004 = vmul.f32 %v650, %v916
  %v1005 = vmul.f32 %v699, %v917
  %v1006 = vmul.f32 %v748, %v918
  %v1007 = vmul.f32 %v797, %v919
  %v1008 = vmul.f32 %v846, %v920
  %v1009 = vmul.f32 %v895, %v921
  %v1010 = vmul.f32 %v555, %v914
  %v1011 = vmul.f32 %v604, %v915
  %v1012 = vmul.f32 %v653, %v916
  %v1013 = vmul.f32 %v702, %v917
  %v1014 = vmul.f32 %v751, %v918
  %v1015 = vmul.f32 %v800, %v919
  %v1016 = vmul.f32 %v849, %v920
  %v1017 = vmul.f32 %v898, %v921
  %v1018 = vmul.f32 %v557, %v914
  %v1019 = vmul.f32 %v606, %v915
  %v1020 = vmul.f32 %v655, %v916
  %v1021 = vmul.f32 %v704, %v917
  %v1022 = vmul.f32 %v753, %v918
  %v1023 = vmul.f32 %v802, %v919
  %v1024 = vmul.f32 %v851, %v920
  %v1025 = vmul.f32 %v900, %v921
  %v1026 = vmul.f32 %v560, %v914
  %v1027 = vmul.f32 %v609, %v915
  %v1028 = vmul.f32 %v658, %v916
  %v1029 = vmul.f32 %v707, %v917
  %v1030 = vmul.f32 %v756, %v918
  %v1031 = vmul.f32 %v805, %v919
  %v1032 = vmul.f32 %v854, %v920
  %v1033 = vmul.f32 %v903, %v921
  %v1034 = vmul.f32 %v562, %v914
  %v1035 = vmul.f32 %v611, %v915
  %v1036 = vmul.f32 %v660, %v916
  %v1037 = vmul.f32 %v709, %v917
  %v1038 = vmul.f32 %v758, %v918
  %v1039 = vmul.f32 %v807, %v919
  %v1040 = vmul.f32 %v856, %v920
  %v1041 = vmul.f32 %v905, %v921
  %v1042 = vmul.f32 %v565, %v914
  %v1043 = vmul.f32 %v614, %v915
  %v1044 = vmul.f32 %v663, %v916
  %v1045 = vmul.f32 %v712, %v917
  %v1046 = vmul.f32 %v761, %v918
  %v1047 = vmul.f32 %v810, %v919
  %v1048 = vmul.f32 %v859, %v920
  %v1049 = vmul.f32 %v908, %v921
  %v1050 = vmul.f32 %v567, %v914
  %v1051 = vmul.f32 %v616, %v915
  %v1052 = vmul.f32 %v665, %v916
  %v1053 = vmul.f32 %v714, %v917
  %v1054 = vmul.f32 %v763, %v918
  %v1055 = vmul.f32 %v812, %v919
  %v1056 = vmul.f32 %v861, %v920
  %v1057 = vmul.f32 %v910, %v921
  %v1058 = vld [vmem:[%s3] sm:$0xff]
  %v1060 = vperm.slane %v1058, 0
  %v1061 = vperm.slane %v1058, 1
  %v1062 = vperm.slane %v1058, 2
  %v1063 = vperm.slane %v1058, 3
  %v1064 = vperm.slane %v1058, 4
  %v1065 = vperm.slane %v1058, 5
  %v1066 = vperm.slane %v1058, 6
  %v1067 = vperm.slane %v1058, 7
  %v1076 = vadd.f32 %v930, %v1060
  %v1077 = vadd.f32 %v931, %v1061
  %v1078 = vadd.f32 %v932, %v1062
  %v1079 = vadd.f32 %v933, %v1063
  %v1080 = vadd.f32 %v934, %v1064
  %v1081 = vadd.f32 %v935, %v1065
  %v1082 = vadd.f32 %v936, %v1066
  %v1083 = vadd.f32 %v937, %v1067
  %v1084 = vadd.f32 %v938, %v1060
  %v1085 = vadd.f32 %v939, %v1061
  %v1086 = vadd.f32 %v940, %v1062
  %v1087 = vadd.f32 %v941, %v1063
  %v1088 = vadd.f32 %v942, %v1064
  %v1089 = vadd.f32 %v943, %v1065
  %v1090 = vadd.f32 %v944, %v1066
  %v1091 = vadd.f32 %v945, %v1067
  %v1092 = vadd.f32 %v946, %v1060
  %v1093 = vadd.f32 %v947, %v1061
  %v1094 = vadd.f32 %v948, %v1062
  %v1095 = vadd.f32 %v949, %v1063
  %v1096 = vadd.f32 %v950, %v1064
  %v1097 = vadd.f32 %v951, %v1065
  %v1098 = vadd.f32 %v952, %v1066
  %v1099 = vadd.f32 %v953, %v1067
  %v1100 = vadd.f32 %v954, %v1060
  %v1101 = vadd.f32 %v955, %v1061
  %v1102 = vadd.f32 %v956, %v1062
  %v1103 = vadd.f32 %v957, %v1063
  %v1104 = vadd.f32 %v958, %v1064
  %v1105 = vadd.f32 %v959, %v1065
  %v1106 = vadd.f32 %v960, %v1066
  %v1107 = vadd.f32 %v961, %v1067
  %v1108 = vadd.f32 %v962, %v1060
  %v1109 = vadd.f32 %v963, %v1061
  %v1110 = vadd.f32 %v964, %v1062
  %v1111 = vadd.f32 %v965, %v1063
  %v1112 = vadd.f32 %v966, %v1064
  %v1113 = vadd.f32 %v967, %v1065
  %v1114 = vadd.f32 %v968, %v1066
  %v1115 = vadd.f32 %v969, %v1067
  %v1116 = vadd.f32 %v970, %v1060
  %v1117 = vadd.f32 %v971, %v1061
  %v1118 = vadd.f32 %v972, %v1062
  %v1119 = vadd.f32 %v973, %v1063
  %v1120 = vadd.f32 %v974, %v1064
  %v1121 = vadd.f32 %v975, %v1065
  %v1122 = vadd.f32 %v976, %v1066
  %v1123 = vadd.f32 %v977, %v1067
  %v1124 = vadd.f32 %v978, %v1060
  %v1125 = vadd.f32 %v979, %v1061
  %v1126 = vadd.f32 %v980, %v1062
  %v1127 = vadd.f32 %v981, %v1063
  %v1128 = vadd.f32 %v982, %v1064
  %v1129 = vadd.f32 %v983, %v1065
  %v1130 = vadd.f32 %v984, %v1066
  %v1131 = vadd.f32 %v985, %v1067
  %v1132 = vadd.f32 %v986, %v1060
  %v1133 = vadd.f32 %v987, %v1061
  %v1134 = vadd.f32 %v988, %v1062
  %v1135 = vadd.f32 %v989, %v1063
  %v1136 = vadd.f32 %v990, %v1064
  %v1137 = vadd.f32 %v991, %v1065
  %v1138 = vadd.f32 %v992, %v1066
  %v1139 = vadd.f32 %v993, %v1067
  %v1140 = vadd.f32 %v994, %v1060
  %v1141 = vadd.f32 %v995, %v1061
  %v1142 = vadd.f32 %v996, %v1062
  %v1143 = vadd.f32 %v997, %v1063
  %v1144 = vadd.f32 %v998, %v1064
  %v1145 = vadd.f32 %v999, %v1065
  %v1146 = vadd.f32 %v1000, %v1066
  %v1147 = vadd.f32 %v1001, %v1067
  %v1148 = vadd.f32 %v1002, %v1060
  %v1149 = vadd.f32 %v1003, %v1061
  %v1150 = vadd.f32 %v1004, %v1062
  %v1151 = vadd.f32 %v1005, %v1063
  %v1152 = vadd.f32 %v1006, %v1064
  %v1153 = vadd.f32 %v1007, %v1065
  %v1154 = vadd.f32 %v1008, %v1066
  %v1155 = vadd.f32 %v1009, %v1067
  %v1156 = vadd.f32 %v1010, %v1060
  %v1157 = vadd.f32 %v1011, %v1061
  %v1158 = vadd.f32 %v1012, %v1062
  %v1159 = vadd.f32 %v1013, %v1063
  %v1160 = vadd.f32 %v1014, %v1064
  %v1161 = vadd.f32 %v1015, %v1065
  %v1162 = vadd.f32 %v1016, %v1066
  %v1163 = vadd.f32 %v1017, %v1067
  %v1164 = vadd.f32 %v1018, %v1060
  %v1165 = vadd.f32 %v1019, %v1061
  %v1166 = vadd.f32 %v1020, %v1062
  %v1167 = vadd.f32 %v1021, %v1063
  %v1168 = vadd.f32 %v1022, %v1064
  %v1169 = vadd.f32 %v1023, %v1065
  %v1170 = vadd.f32 %v1024, %v1066
  %v1171 = vadd.f32 %v1025, %v1067
  %v1172 = vadd.f32 %v1026, %v1060
  %v1173 = vadd.f32 %v1027, %v1061
  %v1174 = vadd.f32 %v1028, %v1062
  %v1175 = vadd.f32 %v1029, %v1063
  %v1176 = vadd.f32 %v1030, %v1064
  %v1177 = vadd.f32 %v1031, %v1065
  %v1178 = vadd.f32 %v1032, %v1066
  %v1179 = vadd.f32 %v1033, %v1067
  %v1180 = vadd.f32 %v1034, %v1060
  %v1181 = vadd.f32 %v1035, %v1061
  %v1182 = vadd.f32 %v1036, %v1062
  %v1183 = vadd.f32 %v1037, %v1063
  %v1184 = vadd.f32 %v1038, %v1064
  %v1185 = vadd.f32 %v1039, %v1065
  %v1186 = vadd.f32 %v1040, %v1066
  %v1187 = vadd.f32 %v1041, %v1067
  %v1188 = vadd.f32 %v1042, %v1060
  %v1189 = vadd.f32 %v1043, %v1061
  %v1190 = vadd.f32 %v1044, %v1062
  %v1191 = vadd.f32 %v1045, %v1063
  %v1192 = vadd.f32 %v1046, %v1064
  %v1193 = vadd.f32 %v1047, %v1065
  %v1194 = vadd.f32 %v1048, %v1066
  %v1195 = vadd.f32 %v1049, %v1067
  %v1196 = vadd.f32 %v1050, %v1060
  %v1197 = vadd.f32 %v1051, %v1061
  %v1198 = vadd.f32 %v1052, %v1062
  %v1199 = vadd.f32 %v1053, %v1063
  %v1200 = vadd.f32 %v1054, %v1064
  %v1201 = vadd.f32 %v1055, %v1065
  %v1202 = vadd.f32 %v1056, %v1066
  %v1203 = vadd.f32 %v1057, %v1067
  %v1204 = vmax.f32 %v1076, 0.0
  %v1205 = vmax.f32 %v1077, 0.0
  %v1206 = vmax.f32 %v1078, 0.0
  %v1207 = vmax.f32 %v1079, 0.0
  %v1208 = vmax.f32 %v1080, 0.0
  %v1209 = vmax.f32 %v1081, 0.0
  %v1210 = vmax.f32 %v1082, 0.0
  %v1211 = vmax.f32 %v1083, 0.0
  %v1212 = vmax.f32 %v1084, 0.0
  %v1213 = vmax.f32 %v1085, 0.0
  %v1214 = vmax.f32 %v1086, 0.0
  %v1215 = vmax.f32 %v1087, 0.0
  %v1216 = vmax.f32 %v1088, 0.0
  %v1217 = vmax.f32 %v1089, 0.0
  %v1218 = vmax.f32 %v1090, 0.0
  %v1219 = vmax.f32 %v1091, 0.0
  %v1220 = vmax.f32 %v1092, 0.0
  %v1221 = vmax.f32 %v1093, 0.0
  %v1222 = vmax.f32 %v1094, 0.0
  %v1223 = vmax.f32 %v1095, 0.0
  %v1224 = vmax.f32 %v1096, 0.0
  %v1225 = vmax.f32 %v1097, 0.0
  %v1226 = vmax.f32 %v1098, 0.0
  %v1227 = vmax.f32 %v1099, 0.0
  %v1228 = vmax.f32 %v1100, 0.0
  %v1229 = vmax.f32 %v1101, 0.0
  %v1230 = vmax.f32 %v1102, 0.0
  %v1231 = vmax.f32 %v1103, 0.0
  %v1232 = vmax.f32 %v1104, 0.0
  %v1233 = vmax.f32 %v1105, 0.0
  %v1234 = vmax.f32 %v1106, 0.0
  %v1235 = vmax.f32 %v1107, 0.0
  %v1236 = vmax.f32 %v1108, 0.0
  %v1237 = vmax.f32 %v1109, 0.0
  %v1238 = vmax.f32 %v1110, 0.0
  %v1239 = vmax.f32 %v1111, 0.0
  %v1240 = vmax.f32 %v1112, 0.0
  %v1241 = vmax.f32 %v1113, 0.0
  %v1242 = vmax.f32 %v1114, 0.0
  %v1243 = vmax.f32 %v1115, 0.0
  %v1244 = vmax.f32 %v1116, 0.0
  %v1245 = vmax.f32 %v1117, 0.0
  %v1246 = vmax.f32 %v1118, 0.0
  %v1247 = vmax.f32 %v1119, 0.0
  %v1248 = vmax.f32 %v1120, 0.0
  %v1249 = vmax.f32 %v1121, 0.0
  %v1250 = vmax.f32 %v1122, 0.0
  %v1251 = vmax.f32 %v1123, 0.0
  %v1252 = vmax.f32 %v1124, 0.0
  %v1253 = vmax.f32 %v1125, 0.0
  %v1254 = vmax.f32 %v1126, 0.0
  %v1255 = vmax.f32 %v1127, 0.0
  %v1256 = vmax.f32 %v1128, 0.0
  %v1257 = vmax.f32 %v1129, 0.0
  %v1258 = vmax.f32 %v1130, 0.0
  %v1259 = vmax.f32 %v1131, 0.0
  %v1260 = vmax.f32 %v1132, 0.0
  %v1261 = vmax.f32 %v1133, 0.0
  %v1262 = vmax.f32 %v1134, 0.0
  %v1263 = vmax.f32 %v1135, 0.0
  %v1264 = vmax.f32 %v1136, 0.0
  %v1265 = vmax.f32 %v1137, 0.0
  %v1266 = vmax.f32 %v1138, 0.0
  %v1267 = vmax.f32 %v1139, 0.0
  %v1268 = vmax.f32 %v1140, 0.0
  %v1269 = vmax.f32 %v1141, 0.0
  %v1270 = vmax.f32 %v1142, 0.0
  %v1271 = vmax.f32 %v1143, 0.0
  %v1272 = vmax.f32 %v1144, 0.0
  %v1273 = vmax.f32 %v1145, 0.0
  %v1274 = vmax.f32 %v1146, 0.0
  %v1275 = vmax.f32 %v1147, 0.0
  %v1276 = vmax.f32 %v1148, 0.0
  %v1277 = vmax.f32 %v1149, 0.0
  %v1278 = vmax.f32 %v1150, 0.0
  %v1279 = vmax.f32 %v1151, 0.0
  %v1280 = vmax.f32 %v1152, 0.0
  %v1281 = vmax.f32 %v1153, 0.0
  %v1282 = vmax.f32 %v1154, 0.0
  %v1283 = vmax.f32 %v1155, 0.0
  %v1284 = vmax.f32 %v1156, 0.0
  %v1285 = vmax.f32 %v1157, 0.0
  %v1286 = vmax.f32 %v1158, 0.0
  %v1287 = vmax.f32 %v1159, 0.0
  %v1288 = vmax.f32 %v1160, 0.0
  %v1289 = vmax.f32 %v1161, 0.0
  %v1290 = vmax.f32 %v1162, 0.0
  %v1291 = vmax.f32 %v1163, 0.0
  %v1292 = vmax.f32 %v1164, 0.0
  %v1293 = vmax.f32 %v1165, 0.0
  %v1294 = vmax.f32 %v1166, 0.0
  %v1295 = vmax.f32 %v1167, 0.0
  %v1296 = vmax.f32 %v1168, 0.0
  %v1297 = vmax.f32 %v1169, 0.0
  %v1298 = vmax.f32 %v1170, 0.0
  %v1299 = vmax.f32 %v1171, 0.0
  %v1300 = vmax.f32 %v1172, 0.0
  %v1301 = vmax.f32 %v1173, 0.0
  %v1302 = vmax.f32 %v1174, 0.0
  %v1303 = vmax.f32 %v1175, 0.0
  %v1304 = vmax.f32 %v1176, 0.0
  %v1305 = vmax.f32 %v1177, 0.0
  %v1306 = vmax.f32 %v1178, 0.0
  %v1307 = vmax.f32 %v1179, 0.0
  %v1308 = vmax.f32 %v1180, 0.0
  %v1309 = vmax.f32 %v1181, 0.0
  %v1310 = vmax.f32 %v1182, 0.0
  %v1311 = vmax.f32 %v1183, 0.0
  %v1312 = vmax.f32 %v1184, 0.0
  %v1313 = vmax.f32 %v1185, 0.0
  %v1314 = vmax.f32 %v1186, 0.0
  %v1315 = vmax.f32 %v1187, 0.0
  %v1316 = vmax.f32 %v1188, 0.0
  %v1317 = vmax.f32 %v1189, 0.0
  %v1318 = vmax.f32 %v1190, 0.0
  %v1319 = vmax.f32 %v1191, 0.0
  %v1320 = vmax.f32 %v1192, 0.0
  %v1321 = vmax.f32 %v1193, 0.0
  %v1322 = vmax.f32 %v1194, 0.0
  %v1323 = vmax.f32 %v1195, 0.0
  %v1324 = vmax.f32 %v1196, 0.0
  %v1325 = vmax.f32 %v1197, 0.0
  %v1326 = vmax.f32 %v1198, 0.0
  %v1327 = vmax.f32 %v1199, 0.0
  %v1328 = vmax.f32 %v1200, 0.0
  %v1329 = vmax.f32 %v1201, 0.0
  %v1330 = vmax.f32 %v1202, 0.0
  %v1331 = vmax.f32 %v1203, 0.0
  %v1332 = vadd.f32 %v1204, %v1212
  %v1333 = vrot.slane %v1332, 4
  %v1334 = vadd.f32 %v1332, %v1333
  %v1335 = vrot.slane %v1334, 2
  %v1336 = vadd.f32 %v1334, %v1335
  %v1337 = vrot.slane %v1336, 1
  %v1338 = vadd.f32 %v1336, %v1337
  %v1339 = vadd.f32 %v1205, %v1213
  %v1340 = vrot.slane %v1339, 4
  %v1341 = vadd.f32 %v1339, %v1340
  %v1342 = vrot.slane %v1341, 2
  %v1343 = vadd.f32 %v1341, %v1342
  %v1344 = vrot.slane %v1343, 1
  %v1345 = vadd.f32 %v1343, %v1344
  %v1346 = vadd.f32 %v1206, %v1214
  %v1347 = vrot.slane %v1346, 4
  %v1348 = vadd.f32 %v1346, %v1347
  %v1349 = vrot.slane %v1348, 2
  %v1350 = vadd.f32 %v1348, %v1349
  %v1351 = vrot.slane %v1350, 1
  %v1352 = vadd.f32 %v1350, %v1351
  %v1353 = vadd.f32 %v1207, %v1215
  %v1354 = vrot.slane %v1353, 4
  %v1355 = vadd.f32 %v1353, %v1354
  %v1356 = vrot.slane %v1355, 2
  %v1357 = vadd.f32 %v1355, %v1356
  %v1358 = vrot.slane %v1357, 1
  %v1359 = vadd.f32 %v1357, %v1358
  %v1360 = vadd.f32 %v1208, %v1216
  %v1361 = vrot.slane %v1360, 4
  %v1362 = vadd.f32 %v1360, %v1361
  %v1363 = vrot.slane %v1362, 2
  %v1364 = vadd.f32 %v1362, %v1363
  %v1365 = vrot.slane %v1364, 1
  %v1366 = vadd.f32 %v1364, %v1365
  %v1367 = vadd.f32 %v1209, %v1217
  %v1368 = vrot.slane %v1367, 4
  %v1369 = vadd.f32 %v1367, %v1368
  %v1370 = vrot.slane %v1369, 2
  %v1371 = vadd.f32 %v1369, %v1370
  %v1372 = vrot.slane %v1371, 1
  %v1373 = vadd.f32 %v1371, %v1372
  %v1374 = vadd.f32 %v1210, %v1218
  %v1375 = vrot.slane %v1374, 4
  %v1376 = vadd.f32 %v1374, %v1375
  %v1377 = vrot.slane %v1376, 2
  %v1378 = vadd.f32 %v1376, %v1377
  %v1379 = vrot.slane %v1378, 1
  %v1380 = vadd.f32 %v1378, %v1379
  %v1381 = vadd.f32 %v1211, %v1219
  %v1382 = vrot.slane %v1381, 4
  %v1383 = vadd.f32 %v1381, %v1382
  %v1384 = vrot.slane %v1383, 2
  %v1385 = vadd.f32 %v1383, %v1384
  %v1386 = vrot.slane %v1385, 1
  %v1387 = vadd.f32 %v1385, %v1386
  %v1388 = vadd.f32 %v1220, %v1228
  %v1389 = vrot.slane %v1388, 4
  %v1390 = vadd.f32 %v1388, %v1389
  %v1391 = vrot.slane %v1390, 2
  %v1392 = vadd.f32 %v1390, %v1391
  %v1393 = vrot.slane %v1392, 1
  %v1394 = vadd.f32 %v1392, %v1393
  %v1395 = vadd.f32 %v1221, %v1229
  %v1396 = vrot.slane %v1395, 4
  %v1397 = vadd.f32 %v1395, %v1396
  %v1398 = vrot.slane %v1397, 2
  %v1399 = vadd.f32 %v1397, %v1398
  %v1400 = vrot.slane %v1399, 1
  %v1401 = vadd.f32 %v1399, %v1400
  %v1402 = vadd.f32 %v1222, %v1230
  %v1403 = vrot.slane %v1402, 4
  %v1404 = vadd.f32 %v1402, %v1403
  %v1405 = vrot.slane %v1404, 2
  %v1406 = vadd.f32 %v1404, %v1405
  %v1407 = vrot.slane %v1406, 1
  %v1408 = vadd.f32 %v1406, %v1407
  %v1409 = vadd.f32 %v1223, %v1231
  %v1410 = vrot.slane %v1409, 4
  %v1411 = vadd.f32 %v1409, %v1410
  %v1412 = vrot.slane %v1411, 2
  %v1413 = vadd.f32 %v1411, %v1412
  %v1414 = vrot.slane %v1413, 1
  %v1415 = vadd.f32 %v1413, %v1414
  %v1416 = vadd.f32 %v1224, %v1232
  %v1417 = vrot.slane %v1416, 4
  %v1418 = vadd.f32 %v1416, %v1417
  %v1419 = vrot.slane %v1418, 2
  %v1420 = vadd.f32 %v1418, %v1419
  %v1421 = vrot.slane %v1420, 1
  %v1422 = vadd.f32 %v1420, %v1421
  %v1423 = vadd.f32 %v1225, %v1233
  %v1424 = vrot.slane %v1423, 4
  %v1425 = vadd.f32 %v1423, %v1424
  %v1426 = vrot.slane %v1425, 2
  %v1427 = vadd.f32 %v1425, %v1426
  %v1428 = vrot.slane %v1427, 1
  %v1429 = vadd.f32 %v1427, %v1428
  %v1430 = vadd.f32 %v1226, %v1234
  %v1431 = vrot.slane %v1430, 4
  %v1432 = vadd.f32 %v1430, %v1431
  %v1433 = vrot.slane %v1432, 2
  %v1434 = vadd.f32 %v1432, %v1433
  %v1435 = vrot.slane %v1434, 1
  %v1436 = vadd.f32 %v1434, %v1435
  %v1437 = vadd.f32 %v1227, %v1235
  %v1438 = vrot.slane %v1437, 4
  %v1439 = vadd.f32 %v1437, %v1438
  %v1440 = vrot.slane %v1439, 2
  %v1441 = vadd.f32 %v1439, %v1440
  %v1442 = vrot.slane %v1441, 1
  %v1443 = vadd.f32 %v1441, %v1442
  %v1444 = vadd.f32 %v1236, %v1244
  %v1445 = vrot.slane %v1444, 4
  %v1446 = vadd.f32 %v1444, %v1445
  %v1447 = vrot.slane %v1446, 2
  %v1448 = vadd.f32 %v1446, %v1447
  %v1449 = vrot.slane %v1448, 1
  %v1450 = vadd.f32 %v1448, %v1449
  %v1451 = vadd.f32 %v1237, %v1245
  %v1452 = vrot.slane %v1451, 4
  %v1453 = vadd.f32 %v1451, %v1452
  %v1454 = vrot.slane %v1453, 2
  %v1455 = vadd.f32 %v1453, %v1454
  %v1456 = vrot.slane %v1455, 1
  %v1457 = vadd.f32 %v1455, %v1456
  %v1458 = vadd.f32 %v1238, %v1246
  %v1459 = vrot.slane %v1458, 4
  %v1460 = vadd.f32 %v1458, %v1459
  %v1461 = vrot.slane %v1460, 2
  %v1462 = vadd.f32 %v1460, %v1461
  %v1463 = vrot.slane %v1462, 1
  %v1464 = vadd.f32 %v1462, %v1463
  %v1465 = vadd.f32 %v1239, %v1247
  %v1466 = vrot.slane %v1465, 4
  %v1467 = vadd.f32 %v1465, %v1466
  %v1468 = vrot.slane %v1467, 2
  %v1469 = vadd.f32 %v1467, %v1468
  %v1470 = vrot.slane %v1469, 1
  %v1471 = vadd.f32 %v1469, %v1470
  %v1472 = vadd.f32 %v1240, %v1248
  %v1473 = vrot.slane %v1472, 4
  %v1474 = vadd.f32 %v1472, %v1473
  %v1475 = vrot.slane %v1474, 2
  %v1476 = vadd.f32 %v1474, %v1475
  %v1477 = vrot.slane %v1476, 1
  %v1478 = vadd.f32 %v1476, %v1477
  %v1479 = vadd.f32 %v1241, %v1249
  %v1480 = vrot.slane %v1479, 4
  %v1481 = vadd.f32 %v1479, %v1480
  %v1482 = vrot.slane %v1481, 2
  %v1483 = vadd.f32 %v1481, %v1482
  %v1484 = vrot.slane %v1483, 1
  %v1485 = vadd.f32 %v1483, %v1484
  %v1486 = vadd.f32 %v1242, %v1250
  %v1487 = vrot.slane %v1486, 4
  %v1488 = vadd.f32 %v1486, %v1487
  %v1489 = vrot.slane %v1488, 2
  %v1490 = vadd.f32 %v1488, %v1489
  %v1491 = vrot.slane %v1490, 1
  %v1492 = vadd.f32 %v1490, %v1491
  %v1493 = vadd.f32 %v1243, %v1251
  %v1494 = vrot.slane %v1493, 4
  %v1495 = vadd.f32 %v1493, %v1494
  %v1496 = vrot.slane %v1495, 2
  %v1497 = vadd.f32 %v1495, %v1496
  %v1498 = vrot.slane %v1497, 1
  %v1499 = vadd.f32 %v1497, %v1498
  %v1500 = vadd.f32 %v1252, %v1260
  %v1501 = vrot.slane %v1500, 4
  %v1502 = vadd.f32 %v1500, %v1501
  %v1503 = vrot.slane %v1502, 2
  %v1504 = vadd.f32 %v1502, %v1503
  %v1505 = vrot.slane %v1504, 1
  %v1506 = vadd.f32 %v1504, %v1505
  %v1507 = vadd.f32 %v1253, %v1261
  %v1508 = vrot.slane %v1507, 4
  %v1509 = vadd.f32 %v1507, %v1508
  %v1510 = vrot.slane %v1509, 2
  %v1511 = vadd.f32 %v1509, %v1510
  %v1512 = vrot.slane %v1511, 1
  %v1513 = vadd.f32 %v1511, %v1512
  %v1514 = vadd.f32 %v1254, %v1262
  %v1515 = vrot.slane %v1514, 4
  %v1516 = vadd.f32 %v1514, %v1515
  %v1517 = vrot.slane %v1516, 2
  %v1518 = vadd.f32 %v1516, %v1517
  %v1519 = vrot.slane %v1518, 1
  %v1520 = vadd.f32 %v1518, %v1519
  %v1521 = vadd.f32 %v1255, %v1263
  %v1522 = vrot.slane %v1521, 4
  %v1523 = vadd.f32 %v1521, %v1522
  %v1524 = vrot.slane %v1523, 2
  %v1525 = vadd.f32 %v1523, %v1524
  %v1526 = vrot.slane %v1525, 1
  %v1527 = vadd.f32 %v1525, %v1526
  %v1528 = vadd.f32 %v1256, %v1264
  %v1529 = vrot.slane %v1528, 4
  %v1530 = vadd.f32 %v1528, %v1529
  %v1531 = vrot.slane %v1530, 2
  %v1532 = vadd.f32 %v1530, %v1531
  %v1533 = vrot.slane %v1532, 1
  %v1534 = vadd.f32 %v1532, %v1533
  %v1535 = vadd.f32 %v1257, %v1265
  %v1536 = vrot.slane %v1535, 4
  %v1537 = vadd.f32 %v1535, %v1536
  %v1538 = vrot.slane %v1537, 2
  %v1539 = vadd.f32 %v1537, %v1538
  %v1540 = vrot.slane %v1539, 1
  %v1541 = vadd.f32 %v1539, %v1540
  %v1542 = vadd.f32 %v1258, %v1266
  %v1543 = vrot.slane %v1542, 4
  %v1544 = vadd.f32 %v1542, %v1543
  %v1545 = vrot.slane %v1544, 2
  %v1546 = vadd.f32 %v1544, %v1545
  %v1547 = vrot.slane %v1546, 1
  %v1548 = vadd.f32 %v1546, %v1547
  %v1549 = vadd.f32 %v1259, %v1267
  %v1550 = vrot.slane %v1549, 4
  %v1551 = vadd.f32 %v1549, %v1550
  %v1552 = vrot.slane %v1551, 2
  %v1553 = vadd.f32 %v1551, %v1552
  %v1554 = vrot.slane %v1553, 1
  %v1555 = vadd.f32 %v1553, %v1554
  %v1556 = vadd.f32 %v1268, %v1276
  %v1557 = vrot.slane %v1556, 4
  %v1558 = vadd.f32 %v1556, %v1557
  %v1559 = vrot.slane %v1558, 2
  %v1560 = vadd.f32 %v1558, %v1559
  %v1561 = vrot.slane %v1560, 1
  %v1562 = vadd.f32 %v1560, %v1561
  %v1563 = vadd.f32 %v1269, %v1277
  %v1564 = vrot.slane %v1563, 4
  %v1565 = vadd.f32 %v1563, %v1564
  %v1566 = vrot.slane %v1565, 2
  %v1567 = vadd.f32 %v1565, %v1566
  %v1568 = vrot.slane %v1567, 1
  %v1569 = vadd.f32 %v1567, %v1568
  %v1570 = vadd.f32 %v1270, %v1278
  %v1571 = vrot.slane %v1570, 4
  %v1572 = vadd.f32 %v1570, %v1571
  %v1573 = vrot.slane %v1572, 2
  %v1574 = vadd.f32 %v1572, %v1573
  %v1575 = vrot.slane %v1574, 1
  %v1576 = vadd.f32 %v1574, %v1575
  %v1577 = vadd.f32 %v1271, %v1279
  %v1578 = vrot.slane %v1577, 4
  %v1579 = vadd.f32 %v1577, %v1578
  %v1580 = vrot.slane %v1579, 2
  %v1581 = vadd.f32 %v1579, %v1580
  %v1582 = vrot.slane %v1581, 1
  %v1583 = vadd.f32 %v1581, %v1582
  %v1584 = vadd.f32 %v1272, %v1280
  %v1585 = vrot.slane %v1584, 4
  %v1586 = vadd.f32 %v1584, %v1585
  %v1587 = vrot.slane %v1586, 2
  %v1588 = vadd.f32 %v1586, %v1587
  %v1589 = vrot.slane %v1588, 1
  %v1590 = vadd.f32 %v1588, %v1589
  %v1591 = vadd.f32 %v1273, %v1281
  %v1592 = vrot.slane %v1591, 4
  %v1593 = vadd.f32 %v1591, %v1592
  %v1594 = vrot.slane %v1593, 2
  %v1595 = vadd.f32 %v1593, %v1594
  %v1596 = vrot.slane %v1595, 1
  %v1597 = vadd.f32 %v1595, %v1596
  %v1598 = vadd.f32 %v1274, %v1282
  %v1599 = vrot.slane %v1598, 4
  %v1600 = vadd.f32 %v1598, %v1599
  %v1601 = vrot.slane %v1600, 2
  %v1602 = vadd.f32 %v1600, %v1601
  %v1603 = vrot.slane %v1602, 1
  %v1604 = vadd.f32 %v1602, %v1603
  %v1605 = vadd.f32 %v1275, %v1283
  %v1606 = vrot.slane %v1605, 4
  %v1607 = vadd.f32 %v1605, %v1606
  %v1608 = vrot.slane %v1607, 2
  %v1609 = vadd.f32 %v1607, %v1608
  %v1610 = vrot.slane %v1609, 1
  %v1611 = vadd.f32 %v1609, %v1610
  %v1612 = vadd.f32 %v1284, %v1292
  %v1613 = vrot.slane %v1612, 4
  %v1614 = vadd.f32 %v1612, %v1613
  %v1615 = vrot.slane %v1614, 2
  %v1616 = vadd.f32 %v1614, %v1615
  %v1617 = vrot.slane %v1616, 1
  %v1618 = vadd.f32 %v1616, %v1617
  %v1619 = vadd.f32 %v1285, %v1293
  %v1620 = vrot.slane %v1619, 4
  %v1621 = vadd.f32 %v1619, %v1620
  %v1622 = vrot.slane %v1621, 2
  %v1623 = vadd.f32 %v1621, %v1622
  %v1624 = vrot.slane %v1623, 1
  %v1625 = vadd.f32 %v1623, %v1624
  %v1626 = vadd.f32 %v1286, %v1294
  %v1627 = vrot.slane %v1626, 4
  %v1628 = vadd.f32 %v1626, %v1627
  %v1629 = vrot.slane %v1628, 2
  %v1630 = vadd.f32 %v1628, %v1629
  %v1631 = vrot.slane %v1630, 1
  %v1632 = vadd.f32 %v1630, %v1631
  %v1633 = vadd.f32 %v1287, %v1295
  %v1634 = vrot.slane %v1633, 4
  %v1635 = vadd.f32 %v1633, %v1634
  %v1636 = vrot.slane %v1635, 2
  %v1637 = vadd.f32 %v1635, %v1636
  %v1638 = vrot.slane %v1637, 1
  %v1639 = vadd.f32 %v1637, %v1638
  %v1640 = vadd.f32 %v1288, %v1296
  %v1641 = vrot.slane %v1640, 4
  %v1642 = vadd.f32 %v1640, %v1641
  %v1643 = vrot.slane %v1642, 2
  %v1644 = vadd.f32 %v1642, %v1643
  %v1645 = vrot.slane %v1644, 1
  %v1646 = vadd.f32 %v1644, %v1645
  %v1647 = vadd.f32 %v1289, %v1297
  %v1648 = vrot.slane %v1647, 4
  %v1649 = vadd.f32 %v1647, %v1648
  %v1650 = vrot.slane %v1649, 2
  %v1651 = vadd.f32 %v1649, %v1650
  %v1652 = vrot.slane %v1651, 1
  %v1653 = vadd.f32 %v1651, %v1652
  %v1654 = vadd.f32 %v1290, %v1298
  %v1655 = vrot.slane %v1654, 4
  %v1656 = vadd.f32 %v1654, %v1655
  %v1657 = vrot.slane %v1656, 2
  %v1658 = vadd.f32 %v1656, %v1657
  %v1659 = vrot.slane %v1658, 1
  %v1660 = vadd.f32 %v1658, %v1659
  %v1661 = vadd.f32 %v1291, %v1299
  %v1662 = vrot.slane %v1661, 4
  %v1663 = vadd.f32 %v1661, %v1662
  %v1664 = vrot.slane %v1663, 2
  %v1665 = vadd.f32 %v1663, %v1664
  %v1666 = vrot.slane %v1665, 1
  %v1667 = vadd.f32 %v1665, %v1666
  %v1668 = vadd.f32 %v1300, %v1308
  %v1669 = vrot.slane %v1668, 4
  %v1670 = vadd.f32 %v1668, %v1669
  %v1671 = vrot.slane %v1670, 2
  %v1672 = vadd.f32 %v1670, %v1671
  %v1673 = vrot.slane %v1672, 1
  %v1674 = vadd.f32 %v1672, %v1673
  %v1675 = vadd.f32 %v1301, %v1309
  %v1676 = vrot.slane %v1675, 4
  %v1677 = vadd.f32 %v1675, %v1676
  %v1678 = vrot.slane %v1677, 2
  %v1679 = vadd.f32 %v1677, %v1678
  %v1680 = vrot.slane %v1679, 1
  %v1681 = vadd.f32 %v1679, %v1680
  %v1682 = vadd.f32 %v1302, %v1310
  %v1683 = vrot.slane %v1682, 4
  %v1684 = vadd.f32 %v1682, %v1683
  %v1685 = vrot.slane %v1684, 2
  %v1686 = vadd.f32 %v1684, %v1685
  %v1687 = vrot.slane %v1686, 1
  %v1688 = vadd.f32 %v1686, %v1687
  %v1689 = vadd.f32 %v1303, %v1311
  %v1690 = vrot.slane %v1689, 4
  %v1691 = vadd.f32 %v1689, %v1690
  %v1692 = vrot.slane %v1691, 2
  %v1693 = vadd.f32 %v1691, %v1692
  %v1694 = vrot.slane %v1693, 1
  %v1695 = vadd.f32 %v1693, %v1694
  %v1696 = vadd.f32 %v1304, %v1312
  %v1697 = vrot.slane %v1696, 4
  %v1698 = vadd.f32 %v1696, %v1697
  %v1699 = vrot.slane %v1698, 2
  %v1700 = vadd.f32 %v1698, %v1699
  %v1701 = vrot.slane %v1700, 1
  %v1702 = vadd.f32 %v1700, %v1701
  %v1703 = vadd.f32 %v1305, %v1313
  %v1704 = vrot.slane %v1703, 4
  %v1705 = vadd.f32 %v1703, %v1704
  %v1706 = vrot.slane %v1705, 2
  %v1707 = vadd.f32 %v1705, %v1706
  %v1708 = vrot.slane %v1707, 1
  %v1709 = vadd.f32 %v1707, %v1708
  %v1710 = vadd.f32 %v1306, %v1314
  %v1711 = vrot.slane %v1710, 4
  %v1712 = vadd.f32 %v1710, %v1711
  %v1713 = vrot.slane %v1712, 2
  %v1714 = vadd.f32 %v1712, %v1713
  %v1715 = vrot.slane %v1714, 1
  %v1716 = vadd.f32 %v1714, %v1715
  %v1717 = vadd.f32 %v1307, %v1315
  %v1718 = vrot.slane %v1717, 4
  %v1719 = vadd.f32 %v1717, %v1718
  %v1720 = vrot.slane %v1719, 2
  %v1721 = vadd.f32 %v1719, %v1720
  %v1722 = vrot.slane %v1721, 1
  %v1723 = vadd.f32 %v1721, %v1722
  %v1724 = vadd.f32 %v1316, %v1324
  %v1725 = vrot.slane %v1724, 4
  %v1726 = vadd.f32 %v1724, %v1725
  %v1727 = vrot.slane %v1726, 2
  %v1728 = vadd.f32 %v1726, %v1727
  %v1729 = vrot.slane %v1728, 1
  %v1730 = vadd.f32 %v1728, %v1729
  %v1731 = vadd.f32 %v1317, %v1325
  %v1732 = vrot.slane %v1731, 4
  %v1733 = vadd.f32 %v1731, %v1732
  %v1734 = vrot.slane %v1733, 2
  %v1735 = vadd.f32 %v1733, %v1734
  %v1736 = vrot.slane %v1735, 1
  %v1737 = vadd.f32 %v1735, %v1736
  %v1738 = vadd.f32 %v1318, %v1326
  %v1739 = vrot.slane %v1738, 4
  %v1740 = vadd.f32 %v1738, %v1739
  %v1741 = vrot.slane %v1740, 2
  %v1742 = vadd.f32 %v1740, %v1741
  %v1743 = vrot.slane %v1742, 1
  %v1744 = vadd.f32 %v1742, %v1743
  %v1745 = vadd.f32 %v1319, %v1327
  %v1746 = vrot.slane %v1745, 4
  %v1747 = vadd.f32 %v1745, %v1746
  %v1748 = vrot.slane %v1747, 2
  %v1749 = vadd.f32 %v1747, %v1748
  %v1750 = vrot.slane %v1749, 1
  %v1751 = vadd.f32 %v1749, %v1750
  %v1752 = vadd.f32 %v1320, %v1328
  %v1753 = vrot.slane %v1752, 4
  %v1754 = vadd.f32 %v1752, %v1753
  %v1755 = vrot.slane %v1754, 2
  %v1756 = vadd.f32 %v1754, %v1755
  %v1757 = vrot.slane %v1756, 1
  %v1758 = vadd.f32 %v1756, %v1757
  %v1759 = vadd.f32 %v1321, %v1329
  %v1760 = vrot.slane %v1759, 4
  %v1761 = vadd.f32 %v1759, %v1760
  %v1762 = vrot.slane %v1761, 2
  %v1763 = vadd.f32 %v1761, %v1762
  %v1764 = vrot.slane %v1763, 1
  %v1765 = vadd.f32 %v1763, %v1764
  %v1766 = vadd.f32 %v1322, %v1330
  %v1767 = vrot.slane %v1766, 4
  %v1768 = vadd.f32 %v1766, %v1767
  %v1769 = vrot.slane %v1768, 2
  %v1770 = vadd.f32 %v1768, %v1769
  %v1771 = vrot.slane %v1770, 1
  %v1772 = vadd.f32 %v1770, %v1771
  %v1773 = vadd.f32 %v1323, %v1331
  %v1774 = vrot.slane %v1773, 4
  %v1775 = vadd.f32 %v1773, %v1774
  %v1776 = vrot.slane %v1775, 2
  %v1777 = vadd.f32 %v1775, %v1776
  %v1778 = vrot.slane %v1777, 1
  %v1779 = vadd.f32 %v1777, %v1778
  %v1780 = vrcp.pop 16.0
  %v1781 = vmul.f32 16.0, %v1780
  %v1782 = vsub.f32 1.0, %v1781
  %v1783 = vmul.f32 %v1780, %v1782
  %v1784 = vadd.f32 %v1780, %v1783
  %vm1785 = vweird.f32 %v1780
  %v1786 = vsel %vm1785, %v1780, %v1784
  %v1787 = vmul.f32 %v1338, %v1786
  %v1788 = vmul.f32 %v1345, %v1786
  %v1789 = vmul.f32 %v1352, %v1786
  %v1790 = vmul.f32 %v1359, %v1786
  %v1791 = vmul.f32 %v1366, %v1786
  %v1792 = vmul.f32 %v1373, %v1786
  %v1793 = vmul.f32 %v1380, %v1786
  %v1794 = vmul.f32 %v1387, %v1786
  %v1795 = vmul.f32 %v1394, %v1786
  %v1796 = vmul.f32 %v1401, %v1786
  %v1797 = vmul.f32 %v1408, %v1786
  %v1798 = vmul.f32 %v1415, %v1786
  %v1799 = vmul.f32 %v1422, %v1786
  %v1800 = vmul.f32 %v1429, %v1786
  %v1801 = vmul.f32 %v1436, %v1786
  %v1802 = vmul.f32 %v1443, %v1786
  %v1803 = vmul.f32 %v1450, %v1786
  %v1804 = vmul.f32 %v1457, %v1786
  %v1805 = vmul.f32 %v1464, %v1786
  %v1806 = vmul.f32 %v1471, %v1786
  %v1807 = vmul.f32 %v1478, %v1786
  %v1808 = vmul.f32 %v1485, %v1786
  %v1809 = vmul.f32 %v1492, %v1786
  %v1810 = vmul.f32 %v1499, %v1786
  %v1811 = vmul.f32 %v1506, %v1786
  %v1812 = vmul.f32 %v1513, %v1786
  %v1813 = vmul.f32 %v1520, %v1786
  %v1814 = vmul.f32 %v1527, %v1786
  %v1815 = vmul.f32 %v1534, %v1786
  %v1816 = vmul.f32 %v1541, %v1786
  %v1817 = vmul.f32 %v1548, %v1786
  %v1818 = vmul.f32 %v1555, %v1786
  %v1819 = vmul.f32 %v1562, %v1786
  %v1820 = vmul.f32 %v1569, %v1786
  %v1821 = vmul.f32 %v1576, %v1786
  %v1822 = vmul.f32 %v1583, %v1786
  %v1823 = vmul.f32 %v1590, %v1786
  %v1824 = vmul.f32 %v1597, %v1786
  %v1825 = vmul.f32 %v1604, %v1786
  %v1826 = vmul.f32 %v1611, %v1786
  %v1827 = vmul.f32 %v1618, %v1786
  %v1828 = vmul.f32 %v1625, %v1786
  %v1829 = vmul.f32 %v1632, %v1786
  %v1830 = vmul.f32 %v1639, %v1786
  %v1831 = vmul.f32 %v1646, %v1786
  %v1832 = vmul.f32 %v1653, %v1786
  %v1833 = vmul.f32 %v1660, %v1786
  %v1834 = vmul.f32 %v1667, %v1786
  %v1835 = vmul.f32 %v1674, %v1786
  %v1836 = vmul.f32 %v1681, %v1786
  %v1837 = vmul.f32 %v1688, %v1786
  %v1838 = vmul.f32 %v1695, %v1786
  %v1839 = vmul.f32 %v1702, %v1786
  %v1840 = vmul.f32 %v1709, %v1786
  %v1841 = vmul.f32 %v1716, %v1786
  %v1842 = vmul.f32 %v1723, %v1786
  %v1843 = vmul.f32 %v1730, %v1786
  %v1844 = vmul.f32 %v1737, %v1786
  %v1845 = vmul.f32 %v1744, %v1786
  %v1846 = vmul.f32 %v1751, %v1786
  %v1847 = vmul.f32 %v1758, %v1786
  %v1848 = vmul.f32 %v1765, %v1786
  %v1849 = vmul.f32 %v1772, %v1786
  %v1850 = vmul.f32 %v1779, %v1786
  %v1851 = vmul.f32 %v1787, %v1787
  %v1852 = vmul.f32 %v1788, %v1788
  %v1853 = vmul.f32 %v1789, %v1789
  %v1854 = vmul.f32 %v1790, %v1790
  %v1855 = vmul.f32 %v1791, %v1791
  %v1856 = vmul.f32 %v1792, %v1792
  %v1857 = vmul.f32 %v1793, %v1793
  %v1858 = vmul.f32 %v1794, %v1794
  %v1859 = vmul.f32 %v1795, %v1795
  %v1860 = vmul.f32 %v1796, %v1796
  %v1861 = vmul.f32 %v1797, %v1797
  %v1862 = vmul.f32 %v1798, %v1798
  %v1863 = vmul.f32 %v1799, %v1799
  %v1864 = vmul.f32 %v1800, %v1800
  %v1865 = vmul.f32 %v1801, %v1801
  %v1866 = vmul.f32 %v1802, %v1802
  %v1867 = vmul.f32 %v1803, %v1803
  %v1868 = vmul.f32 %v1804, %v1804
  %v1869 = vmul.f32 %v1805, %v1805
  %v1870 = vmul.f32 %v1806, %v1806
  %v1871 = vmul.f32 %v1807, %v1807
  %v1872 = vmul.f32 %v1808, %v1808
  %v1873 = vmul.f32 %v1809, %v1809
  %v1874 = vmul.f32 %v1810, %v1810
  %v1875 = vmul.f32 %v1811, %v1811
  %v1876 = vmul.f32 %v1812, %v1812
  %v1877 = vmul.f32 %v1813, %v1813
  %v1878 = vmul.f32 %v1814, %v1814
  %v1879 = vmul.f32 %v1815, %v1815
  %v1880 = vmul.f32 %v1816, %v1816
  %v1881 = vmul.f32 %v1817, %v1817
  %v1882 = vmul.f32 %v1818, %v1818
  %v1883 = vmul.f32 %v1819, %v1819
  %v1884 = vmul.f32 %v1820, %v1820
  %v1885 = vmul.f32 %v1821, %v1821
  %v1886 = vmul.f32 %v1822, %v1822
  %v1887 = vmul.f32 %v1823, %v1823
  %v1888 = vmul.f32 %v1824, %v1824
  %v1889 = vmul.f32 %v1825, %v1825
  %v1890 = vmul.f32 %v1826, %v1826
  %v1891 = vmul.f32 %v1827, %v1827
  %v1892 = vmul.f32 %v1828, %v1828
  %v1893 = vmul.f32 %v1829, %v1829
  %v1894 = vmul.f32 %v1830, %v1830
  %v1895 = vmul.f32 %v1831, %v1831
  %v1896 = vmul.f32 %v1832, %v1832
  %v1897 = vmul.f32 %v1833, %v1833
  %v1898 = vmul.f32 %v1834, %v1834
  %v1899 = vmul.f32 %v1835, %v1835
  %v1900 = vmul.f32 %v1836, %v1836
  %v1901 = vmul.f32 %v1837, %v1837
  %v1902 = vmul.f32 %v1838, %v1838
  %v1903 = vmul.f32 %v1839, %v1839
  %v1904 = vmul.f32 %v1840, %v1840
  %v1905 = vmul.f32 %v1841, %v1841
  %v1906 = vmul.f32 %v1842, %v1842
  %v1907 = vmul.f32 %v1843, %v1843
  %v1908 = vmul.f32 %v1844, %v1844
  %v1909 = vmul.f32 %v1845, %v1845
  %v1910 = vmul.f32 %v1846, %v1846
  %v1911 = vmul.f32 %v1847, %v1847
  %v1912 = vmul.f32 %v1848, %v1848
  %v1913 = vmul.f32 %v1849, %v1849
  %v1914 = vmul.f32 %v1850, %v1850
  %vm1979 = vcmask 1041409
  %v1980 = vsel %vm1979, %v1859, %v1851
  %vm1981 = vcmask 1042434
  %v1982 = vsel %vm1981, %v1867, %v1980
  %vm1983 = vcmask 1043459
  %v1984 = vsel %vm1983, %v1875, %v1982
  %vm1985 = vcmask 1044484
  %v1986 = vsel %vm1985, %v1883, %v1984
  %vm1987 = vcmask 1045509
  %v1988 = vsel %vm1987, %v1891, %v1986
  %vm1989 = vcmask 1046534
  %v1990 = vsel %vm1989, %v1899, %v1988
  %vm1991 = vcmask 1047559
  %v1992 = vsel %vm1991, %v1907, %v1990
  %v1993 = vsel %vm1979, %v1860, %v1852
  %v1994 = vsel %vm1981, %v1868, %v1993
  %v1995 = vsel %vm1983, %v1876, %v1994
  %v1996 = vsel %vm1985, %v1884, %v1995
  %v1997 = vsel %vm1987, %v1892, %v1996
  %v1998 = vsel %vm1989, %v1900, %v1997
  %v1999 = vsel %vm1991, %v1908, %v1998
  %v2000 = vsel %vm1979, %v1861, %v1853
  %v2001 = vsel %vm1981, %v1869, %v2000
  %v2002 = vsel %vm1983, %v1877, %v2001
  %v2003 = vsel %vm1985, %v1885, %v2002
  %v2004 = vsel %vm1987, %v1893, %v2003
  %v2005 = vsel %vm1989, %v1901, %v2004
  %v2006 = vsel %vm1991, %v1909, %v2005
  %v2007 = vsel %vm1979, %v1862, %v1854
  %v2008 = vsel %vm1981, %v1870, %v2007
  %v2009 = vsel %vm1983, %v1878, %v2008
  %v2010 = vsel %vm1985, %v1886, %v2009
  %v2011 = vsel %vm1987, %v1894, %v2010
  %v2012 = vsel %vm1989, %v1902, %v2011
  %v2013 = vsel %vm1991, %v1910, %v2012
  %v2014 = vsel %vm1979, %v1863, %v1855
  %v2015 = vsel %vm1981, %v1871, %v2014
  %v2016 = vsel %vm1983, %v1879, %v2015
  %v2017 = vsel %vm1985, %v1887, %v2016
  %v2018 = vsel %vm1987, %v1895, %v2017
  %v2019 = vsel %vm1989, %v1903, %v2018
  %v2020 = vsel %vm1991, %v1911, %v2019
  %v2021 = vsel %vm1979, %v1864, %v1856
  %v2022 = vsel %vm1981, %v1872, %v2021
  %v2023 = vsel %vm1983, %v1880, %v2022
  %v2024 = vsel %vm1985, %v1888, %v2023
  %v2025 = vsel %vm1987, %v1896, %v2024
  %v2026 = vsel %vm1989, %v1904, %v2025
  %v2027 = vsel %vm1991, %v1912, %v2026
  %v2028 = vsel %vm1979, %v1865, %v1857
  %v2029 = vsel %vm1981, %v1873, %v2028
  %v2030 = vsel %vm1983, %v1881, %v2029
  %v2031 = vsel %vm1985, %v1889, %v2030
  %v2032 = vsel %vm1987, %v1897, %v2031
  %v2033 = vsel %vm1989, %v1905, %v2032
  %v2034 = vsel %vm1991, %v1913, %v2033
  %v2035 = vsel %vm1979, %v1866, %v1858
  %v2036 = vsel %vm1981, %v1874, %v2035
  %v2037 = vsel %vm1983, %v1882, %v2036
  %v2038 = vsel %vm1985, %v1890, %v2037
  %v2039 = vsel %vm1987, %v1898, %v2038
  %v2040 = vsel %vm1989, %v1906, %v2039
  %v2041 = vsel %vm1991, %v1914, %v2040
  %v2050 = vadd.f32 %v1992, %v1999
  %v2051 = vadd.f32 %v2050, %v2006
  %v2052 = vadd.f32 %v2051, %v2013
  %v2053 = vadd.f32 %v2052, %v2020
  %v2054 = vadd.f32 %v2053, %v2027
  %v2055 = vadd.f32 %v2054, %v2034
  %v2056 = vadd.f32 %v2055, %v2041
  %2057 = vadd.xlane.f32.xlu0 %v2056
  %v2058 = vpop.xlane.xlu0 %2057
  %v2059 = vmax.f32 %v2058, 1e-24
  %v2060 = vrsqrt.pop %v2059
  %v2061 = vmul.f32 %v2060, %v2059
  %v2062 = vmul.f32 %v2061, %v2060
  %v2063 = vmul.f32 0.5, %v2062
  %v2064 = vsub.f32 1.5, %v2063
  %v2065 = vmul.f32 %v2060, %v2064
  %vm2066 = vweird.f32 %v2059
  %vm2067 = vweird.f32 %v2060
  %vm2068 = vmor %vm2066, %vm2067
  %v2069 = vsel %vm2068, %v2060, %v2065
  %v2071 = vrot.slane %v2069, 1
  %v2072 = vrot.slane %v2069, 2
  %v2073 = vrot.slane %v2069, 3
  %v2074 = vrot.slane %v2069, 4
  %v2075 = vrot.slane %v2069, 5
  %v2076 = vrot.slane %v2069, 6
  %v2077 = vrot.slane %v2069, 7
  %v2086 = vmul.f32 %v1787, %v2069
  %v2087 = vmul.f32 %v1788, %v2069
  %v2088 = vmul.f32 %v1789, %v2069
  %v2089 = vmul.f32 %v1790, %v2069
  %v2090 = vmul.f32 %v1791, %v2069
  %v2091 = vmul.f32 %v1792, %v2069
  %v2092 = vmul.f32 %v1793, %v2069
  %v2093 = vmul.f32 %v1794, %v2069
  %v2094 = vmul.f32 %v1795, %v2071
  %v2095 = vmul.f32 %v1796, %v2071
  %v2096 = vmul.f32 %v1797, %v2071
  %v2097 = vmul.f32 %v1798, %v2071
  %v2098 = vmul.f32 %v1799, %v2071
  %v2099 = vmul.f32 %v1800, %v2071
  %v2100 = vmul.f32 %v1801, %v2071
  %v2101 = vmul.f32 %v1802, %v2071
  %v2102 = vmul.f32 %v1803, %v2072
  %v2103 = vmul.f32 %v1804, %v2072
  %v2104 = vmul.f32 %v1805, %v2072
  %v2105 = vmul.f32 %v1806, %v2072
  %v2106 = vmul.f32 %v1807, %v2072
  %v2107 = vmul.f32 %v1808, %v2072
  %v2108 = vmul.f32 %v1809, %v2072
  %v2109 = vmul.f32 %v1810, %v2072
  %v2110 = vmul.f32 %v1811, %v2073
  %v2111 = vmul.f32 %v1812, %v2073
  %v2112 = vmul.f32 %v1813, %v2073
  %v2113 = vmul.f32 %v1814, %v2073
  %v2114 = vmul.f32 %v1815, %v2073
  %v2115 = vmul.f32 %v1816, %v2073
  %v2116 = vmul.f32 %v1817, %v2073
  %v2117 = vmul.f32 %v1818, %v2073
  %v2118 = vmul.f32 %v1819, %v2074
  %v2119 = vmul.f32 %v1820, %v2074
  %v2120 = vmul.f32 %v1821, %v2074
  %v2121 = vmul.f32 %v1822, %v2074
  %v2122 = vmul.f32 %v1823, %v2074
  %v2123 = vmul.f32 %v1824, %v2074
  %v2124 = vmul.f32 %v1825, %v2074
  %v2125 = vmul.f32 %v1826, %v2074
  %v2126 = vmul.f32 %v1827, %v2075
  %v2127 = vmul.f32 %v1828, %v2075
  %v2128 = vmul.f32 %v1829, %v2075
  %v2129 = vmul.f32 %v1830, %v2075
  %v2130 = vmul.f32 %v1831, %v2075
  %v2131 = vmul.f32 %v1832, %v2075
  %v2132 = vmul.f32 %v1833, %v2075
  %v2133 = vmul.f32 %v1834, %v2075
  %v2134 = vmul.f32 %v1835, %v2076
  %v2135 = vmul.f32 %v1836, %v2076
  %v2136 = vmul.f32 %v1837, %v2076
  %v2137 = vmul.f32 %v1838, %v2076
  %v2138 = vmul.f32 %v1839, %v2076
  %v2139 = vmul.f32 %v1840, %v2076
  %v2140 = vmul.f32 %v1841, %v2076
  %v2141 = vmul.f32 %v1842, %v2076
  %v2142 = vmul.f32 %v1843, %v2077
  %v2143 = vmul.f32 %v1844, %v2077
  %v2144 = vmul.f32 %v1845, %v2077
  %v2145 = vmul.f32 %v1846, %v2077
  %v2146 = vmul.f32 %v1847, %v2077
  %v2147 = vmul.f32 %v1848, %v2077
  %v2148 = vmul.f32 %v1849, %v2077
  %v2149 = vmul.f32 %v1850, %v2077
  %v2214 = vrot.slane %v2094, 7
  %v2215 = vsel %vm1979, %v2214, %v2086
  %v2216 = vrot.slane %v2102, 6
  %v2217 = vsel %vm1981, %v2216, %v2215
  %v2218 = vrot.slane %v2110, 5
  %v2219 = vsel %vm1983, %v2218, %v2217
  %v2220 = vrot.slane %v2118, 4
  %v2221 = vsel %vm1985, %v2220, %v2219
  %v2222 = vrot.slane %v2126, 3
  %v2223 = vsel %vm1987, %v2222, %v2221
  %v2224 = vrot.slane %v2134, 2
  %v2225 = vsel %vm1989, %v2224, %v2223
  %v2226 = vrot.slane %v2142, 1
  %v2227 = vsel %vm1991, %v2226, %v2225
  %v2228 = vrot.slane %v2095, 7
  %v2229 = vsel %vm1979, %v2228, %v2087
  %v2230 = vrot.slane %v2103, 6
  %v2231 = vsel %vm1981, %v2230, %v2229
  %v2232 = vrot.slane %v2111, 5
  %v2233 = vsel %vm1983, %v2232, %v2231
  %v2234 = vrot.slane %v2119, 4
  %v2235 = vsel %vm1985, %v2234, %v2233
  %v2236 = vrot.slane %v2127, 3
  %v2237 = vsel %vm1987, %v2236, %v2235
  %v2238 = vrot.slane %v2135, 2
  %v2239 = vsel %vm1989, %v2238, %v2237
  %v2240 = vrot.slane %v2143, 1
  %v2241 = vsel %vm1991, %v2240, %v2239
  %v2242 = vrot.slane %v2096, 7
  %v2243 = vsel %vm1979, %v2242, %v2088
  %v2244 = vrot.slane %v2104, 6
  %v2245 = vsel %vm1981, %v2244, %v2243
  %v2246 = vrot.slane %v2112, 5
  %v2247 = vsel %vm1983, %v2246, %v2245
  %v2248 = vrot.slane %v2120, 4
  %v2249 = vsel %vm1985, %v2248, %v2247
  %v2250 = vrot.slane %v2128, 3
  %v2251 = vsel %vm1987, %v2250, %v2249
  %v2252 = vrot.slane %v2136, 2
  %v2253 = vsel %vm1989, %v2252, %v2251
  %v2254 = vrot.slane %v2144, 1
  %v2255 = vsel %vm1991, %v2254, %v2253
  %v2256 = vrot.slane %v2097, 7
  %v2257 = vsel %vm1979, %v2256, %v2089
  %v2258 = vrot.slane %v2105, 6
  %v2259 = vsel %vm1981, %v2258, %v2257
  %v2260 = vrot.slane %v2113, 5
  %v2261 = vsel %vm1983, %v2260, %v2259
  %v2262 = vrot.slane %v2121, 4
  %v2263 = vsel %vm1985, %v2262, %v2261
  %v2264 = vrot.slane %v2129, 3
  %v2265 = vsel %vm1987, %v2264, %v2263
  %v2266 = vrot.slane %v2137, 2
  %v2267 = vsel %vm1989, %v2266, %v2265
  %v2268 = vrot.slane %v2145, 1
  %v2269 = vsel %vm1991, %v2268, %v2267
  %v2270 = vrot.slane %v2098, 7
  %v2271 = vsel %vm1979, %v2270, %v2090
  %v2272 = vrot.slane %v2106, 6
  %v2273 = vsel %vm1981, %v2272, %v2271
  %v2274 = vrot.slane %v2114, 5
  %v2275 = vsel %vm1983, %v2274, %v2273
  %v2276 = vrot.slane %v2122, 4
  %v2277 = vsel %vm1985, %v2276, %v2275
  %v2278 = vrot.slane %v2130, 3
  %v2279 = vsel %vm1987, %v2278, %v2277
  %v2280 = vrot.slane %v2138, 2
  %v2281 = vsel %vm1989, %v2280, %v2279
  %v2282 = vrot.slane %v2146, 1
  %v2283 = vsel %vm1991, %v2282, %v2281
  %v2284 = vrot.slane %v2099, 7
  %v2285 = vsel %vm1979, %v2284, %v2091
  %v2286 = vrot.slane %v2107, 6
  %v2287 = vsel %vm1981, %v2286, %v2285
  %v2288 = vrot.slane %v2115, 5
  %v2289 = vsel %vm1983, %v2288, %v2287
  %v2290 = vrot.slane %v2123, 4
  %v2291 = vsel %vm1985, %v2290, %v2289
  %v2292 = vrot.slane %v2131, 3
  %v2293 = vsel %vm1987, %v2292, %v2291
  %v2294 = vrot.slane %v2139, 2
  %v2295 = vsel %vm1989, %v2294, %v2293
  %v2296 = vrot.slane %v2147, 1
  %v2297 = vsel %vm1991, %v2296, %v2295
  %v2298 = vrot.slane %v2100, 7
  %v2299 = vsel %vm1979, %v2298, %v2092
  %v2300 = vrot.slane %v2108, 6
  %v2301 = vsel %vm1981, %v2300, %v2299
  %v2302 = vrot.slane %v2116, 5
  %v2303 = vsel %vm1983, %v2302, %v2301
  %v2304 = vrot.slane %v2124, 4
  %v2305 = vsel %vm1985, %v2304, %v2303
  %v2306 = vrot.slane %v2132, 3
  %v2307 = vsel %vm1987, %v2306, %v2305
  %v2308 = vrot.slane %v2140, 2
  %v2309 = vsel %vm1989, %v2308, %v2307
  %v2310 = vrot.slane %v2148, 1
  %v2311 = vsel %vm1991, %v2310, %v2309
  %v2312 = vrot.slane %v2101, 7
  %v2313 = vsel %vm1979, %v2312, %v2093
  %v2314 = vrot.slane %v2109, 6
  %v2315 = vsel %vm1981, %v2314, %v2313
  %v2316 = vrot.slane %v2117, 5
  %v2317 = vsel %vm1983, %v2316, %v2315
  %v2318 = vrot.slane %v2125, 4
  %v2319 = vsel %vm1985, %v2318, %v2317
  %v2320 = vrot.slane %v2133, 3
  %v2321 = vsel %vm1987, %v2320, %v2319
  %v2322 = vrot.slane %v2141, 2
  %v2323 = vsel %vm1989, %v2322, %v2321
  %v2324 = vrot.slane %v2149, 1
  %v2325 = vsel %vm1991, %v2324, %v2323
  %2334 = vst [vmem:[%s4] sm:$0xff] %v2227
  %2335 = vst [vmem:[%s4 + $0x8] sm:$0xff] %v2241
  %2336 = vst [vmem:[%s4 + $0x10] sm:$0xff] %v2255
  %2337 = vst [vmem:[%s4 + $0x18] sm:$0xff] %v2269
  %2338 = vst [vmem:[%s4 + $0x20] sm:$0xff] %v2283
  %2339 = vst [vmem:[%s4 + $0x28] sm:$0xff] %v2297
  %2340 = vst [vmem:[%s4 + $0x30] sm:$0xff] %v2311
  %2341 = vst [vmem:[%s4 + $0x38] sm:$0xff] %v2325
  // Predicated region
  $region18: #{video_extractor_forward.3} parent=0 // pred_check
    _
  $region19: #{video_extractor_forward.3} parent=0 // pred_check_branch
    %2343 = sbr.rel (0) target = $region21
  $region20: #{video_extractor_forward.3} parent=0 // pred_region
    _
  $region21: #{video_extractor_forward.3} parent=0 // pred_fallthru
    _
  // Predicated region
  $region22: #{video_extractor_forward.3} parent=0 // pred_check
    _
  $region23: #{video_extractor_forward.3} parent=0 // pred_check_branch
    %2345 = sbr.rel (0) target = $region25
  $region24: #{video_extractor_forward.3} parent=0 // pred_region
    _
  $region25: #{video_extractor_forward.3} parent=0 // pred_fallthru
    _

// kernel: video_extractor_forward.2
$region0: #{video_extractor_forward.2}
  #allocation0 [shape = 'u32[]', space=smem, size = 0x4, offset = 0x4, fixed_abs, tag = 'smem constant byte address 0x4 - core index']
  #allocation1 [shape = 'u32[72,128]{1,0:T(1,128)}', space=vmem, size = 0x9000, scoped, tag = 'internal scratch']
  #allocation2 [shape = 'f32[4,10,10,128]{3,2,1,0:T(8,128)}', space=vmem, size = 0x50000, scoped, tag = 'scratch operand']
  %s0 = inlined_call_operand.vmem [shape: bf16[2,8,8,8,256], index: 0, kind: input, shape index: {}]
  %s1 = inlined_call_operand.vmem [shape: bf16[5,256,128], index: 1, kind: input, shape index: {}]
  %s2 = inlined_call_operand.vmem [shape: f32[1,128], index: 2, kind: input, shape index: {}]
  %s3 = inlined_call_operand.vmem [shape: f32[1,128], index: 3, kind: input, shape index: {}]
  %s4 = inlined_call_operand.vmem [shape: f32[1,128], index: 4, kind: input, shape index: {}]
  %s5 = inlined_call_operand.vmem [shape: bf16[2,4,4,4,128], index: 5, kind: output, shape index: {}]
  %s6 = sld [smem:[#allocation0]]
  $region53: #{video_extractor_forward.2} parent=0
    _
  %s8 = ssub.s32 1, %s6
  %s9 = scalar_select 0, %s8, %s6
  loop: start=0, step=1, limit=4
  $region2: #{video_extractor_forward.2} parent=0 // loop_pre_header
    _
  $region3: #{video_extractor_forward.2} parent=0 // loop_header
    %s11 = sphi 0, %s15
    %p12 = scmp.ge.s32.totalorder %s11, 4
    %s18 = sphi 0, %s30
    %s19 = sphi 0, %s26
    %s20 = sphi 0, %s18
    %s21 = sphi 0, %s19
    %s22 = sphi 0, %s20
    %s23 = sphi 0, %s21
    %s33 = sphi 0, %s35
    %s36 = sphi 0, %s33
    %s37 = sphi 0, %s36
    %s53 = sphi 0, %s37
    %s57 = sphi 0, %s57
    %s59 = sphi 0, %s57
    %s60 = sphi 0, %s59
    %s74 = sphi 0, %s60
    %s78 = sphi 0, %s78
    %s80 = sphi 0, %s78
    %s81 = sphi 0, %s80
    %s95 = sphi 0, %s81
    %s99 = sphi 0, %s99
    %s101 = sphi 0, %s99
    %s102 = sphi 0, %s101
    %s116 = sphi 0, %s102
    %s120 = sphi 0, %s120
    %s122 = sphi 0, %s120
    %s123 = sphi 0, %s122
    %s137 = sphi 0, %s123
    %s145 = sphi 0, %s147
    %s148 = sphi 0, %s145
    %s149 = sphi 0, %s148
    %s165 = sphi 0, %s149
  $region4: #{video_extractor_forward.2} parent=0 // loop_header_branch
    %14 = sbr.rel (%p12) target = $region8
  $region5: #{video_extractor_forward.2} parent=0 // loop_body
    %s16 = ssub.s32 %s11, 1
    %s17 = ssub.s32 %s11, 2
    %s24 = sadd.s32 1, %s19
    %p25 = scmp.ge.s32.totalorder %s24, 1
    %s26 = scalar_select %p25, 0, %s24
    %s27 = sadd.s32 1, %s18
    %s28 = scalar_select %p25, %s27, %s18
    %p29 = scmp.ge.s32.totalorder %s28, 2
    %s30 = scalar_select %p29, 0, %s28
    %s31 = ssub.s32 %s18, %s30
    %p32 = scmp.eq.s32.totalorder %s31, 0
    %s34 = sadd.s32 %s33, 1
    %s35 = scalar_select %p32, %s33, %s34
    %p38 = pneg %p32
    %p39 = scmp.eq.s32.totalorder %s11, 1
    %p40 = por %p38, %p39
    %p41 = scmp.ne.s32.totalorder %s33, %s36
    %p42 = scmp.eq.s32.totalorder %s11, 0
    %p43 = por %p41, %p42
    %p44 = scmp.ne.s32.totalorder %s33, %s36
    %p45 = scmp.eq.s32.totalorder %s16, 1
    %p46 = por %p44, %p45
    %p47 = scmp.ne.s32.totalorder %s36, %s37
    %p48 = scmp.eq.s32.totalorder %s16, 0
    %p49 = por %p47, %p48
    %p50 = scmp.ne.s32.totalorder %s36, %s37
    %p51 = scmp.eq.s32.totalorder %s17, 1
    %p52 = por %p50, %p51
    %p54 = scmp.ne.s32.totalorder %s37, %s53
    %p55 = scmp.eq.s32.totalorder %s17, 0
    %p56 = por %p54, %p55
    %s58 = sadd.s32 %s57, 1
    %p61 = scmp.eq.s32.totalorder %s11, 1
    %p62 = scmp.ne.s32.totalorder %s57, %s59
    %p63 = scmp.eq.s32.totalorder %s11, 0
    %p64 = por %p62, %p63
    %p65 = scmp.ne.s32.totalorder %s57, %s59
    %p66 = scmp.eq.s32.totalorder %s16, 1
    %p67 = por %p65, %p66
    %p68 = scmp.ne.s32.totalorder %s59, %s60
    %p69 = scmp.eq.s32.totalorder %s16, 0
    %p70 = por %p68, %p69
    %p71 = scmp.ne.s32.totalorder %s59, %s60
    %p72 = scmp.eq.s32.totalorder %s17, 1
    %p73 = por %p71, %p72
    %p75 = scmp.ne.s32.totalorder %s60, %s74
    %p76 = scmp.eq.s32.totalorder %s17, 0
    %p77 = por %p75, %p76
    %s79 = sadd.s32 %s78, 1
    %p82 = scmp.eq.s32.totalorder %s11, 1
    %p83 = scmp.ne.s32.totalorder %s78, %s80
    %p84 = scmp.eq.s32.totalorder %s11, 0
    %p85 = por %p83, %p84
    %p86 = scmp.ne.s32.totalorder %s78, %s80
    %p87 = scmp.eq.s32.totalorder %s16, 1
    %p88 = por %p86, %p87
    %p89 = scmp.ne.s32.totalorder %s80, %s81
    %p90 = scmp.eq.s32.totalorder %s16, 0
    %p91 = por %p89, %p90
    %p92 = scmp.ne.s32.totalorder %s80, %s81
    %p93 = scmp.eq.s32.totalorder %s17, 1
    %p94 = por %p92, %p93
    %p96 = scmp.ne.s32.totalorder %s81, %s95
    %p97 = scmp.eq.s32.totalorder %s17, 0
    %p98 = por %p96, %p97
    %s100 = sadd.s32 %s99, 1
    %p103 = scmp.eq.s32.totalorder %s11, 1
    %p104 = scmp.ne.s32.totalorder %s99, %s101
    %p105 = scmp.eq.s32.totalorder %s11, 0
    %p106 = por %p104, %p105
    %p107 = scmp.ne.s32.totalorder %s99, %s101
    %p108 = scmp.eq.s32.totalorder %s16, 1
    %p109 = por %p107, %p108
    %p110 = scmp.ne.s32.totalorder %s101, %s102
    %p111 = scmp.eq.s32.totalorder %s16, 0
    %p112 = por %p110, %p111
    %p113 = scmp.ne.s32.totalorder %s101, %s102
    %p114 = scmp.eq.s32.totalorder %s17, 1
    %p115 = por %p113, %p114
    %p117 = scmp.ne.s32.totalorder %s102, %s116
    %p118 = scmp.eq.s32.totalorder %s17, 0
    %p119 = por %p117, %p118
    %s121 = sadd.s32 %s120, 1
    %p124 = scmp.eq.s32.totalorder %s11, 1
    %p125 = scmp.ne.s32.totalorder %s120, %s122
    %p126 = scmp.eq.s32.totalorder %s11, 0
    %p127 = por %p125, %p126
    %p128 = scmp.ne.s32.totalorder %s120, %s122
    %p129 = scmp.eq.s32.totalorder %s16, 1
    %p130 = por %p128, %p129
    %p131 = scmp.ne.s32.totalorder %s122, %s123
    %p132 = scmp.eq.s32.totalorder %s16, 0
    %p133 = por %p131, %p132
    %p134 = scmp.ne.s32.totalorder %s122, %s123
    %p135 = scmp.eq.s32.totalorder %s17, 1
    %p136 = por %p134, %p135
    %p138 = scmp.ne.s32.totalorder %s123, %s137
    %p139 = scmp.eq.s32.totalorder %s17, 0
    %p140 = por %p138, %p139
    %s141 = ssub.s32 %s18, %s30
    %s142 = ssub.s32 %s19, %s26
    %s143 = sor.u32 %s141, %s142
    %p144 = scmp.eq.s32.totalorder %s143, 0
    %s146 = sadd.s32 %s145, 1
    %s147 = scalar_select %p144, %s145, %s146
    %p150 = pneg %p144
    %p151 = scmp.eq.s32.totalorder %s11, 1
    %p152 = por %p150, %p151
    %p153 = scmp.ne.s32.totalorder %s145, %s148
    %p154 = scmp.eq.s32.totalorder %s11, 0
    %p155 = por %p153, %p154
    %p156 = scmp.ne.s32.totalorder %s145, %s148
    %p157 = scmp.eq.s32.totalorder %s16, 1
    %p158 = por %p156, %p157
    %p159 = scmp.ne.s32.totalorder %s148, %s149
    %p160 = scmp.eq.s32.totalorder %s16, 0
    %p161 = por %p159, %p160
    %p162 = scmp.ne.s32.totalorder %s148, %s149
    %p163 = scmp.eq.s32.totalorder %s17, 1
    %p164 = por %p162, %p163
    %p166 = scmp.ne.s32.totalorder %s149, %s165
    %p167 = scmp.eq.s32.totalorder %s17, 0
    %p168 = por %p166, %p167
    %p169 = scmp.le.s32.totalorder 1, %s11
    %p170 = scmp.lt.s32.totalorder %s11, 3
    %p171 = pnand %p169, %p170
    %p172 = pneg %p171
    // Predicated region
    $region9: #{video_extractor_forward.2} parent=5 // pred_check
      _
    $region10: #{video_extractor_forward.2} parent=5 // pred_check_branch
      %174 = sbr.rel (%p171) target = $region12
    $region11: #{video_extractor_forward.2} parent=5 // pred_region
      %s175 = ssub.s32 %s11, 1
      // Predicated region
      $region13: #{video_extractor_forward.2} parent=11 // pred_check
        %p176 = pneg %p70
      $region14: #{video_extractor_forward.2} parent=11 // pred_check_branch
        %178 = sbr.rel (%p176) target = $region16
      $region15: #{video_extractor_forward.2} parent=11 // pred_region
        _
      $region16: #{video_extractor_forward.2} parent=11 // pred_fallthru
        _
      // Predicated region
      $region17: #{video_extractor_forward.2} parent=11 // pred_check
        %p179 = pneg %p91
      $region18: #{video_extractor_forward.2} parent=11 // pred_check_branch
        %181 = sbr.rel (%p179) target = $region20
      $region19: #{video_extractor_forward.2} parent=11 // pred_region
        _
      $region20: #{video_extractor_forward.2} parent=11 // pred_fallthru
        _
      // Predicated region
      $region21: #{video_extractor_forward.2} parent=11 // pred_check
        %p182 = pneg %p112
      $region22: #{video_extractor_forward.2} parent=11 // pred_check_branch
        %184 = sbr.rel (%p182) target = $region24
      $region23: #{video_extractor_forward.2} parent=11 // pred_region
        _
      $region24: #{video_extractor_forward.2} parent=11 // pred_fallthru
        _
      // Predicated region
      $region25: #{video_extractor_forward.2} parent=11 // pred_check
        %p185 = pneg %p133
      $region26: #{video_extractor_forward.2} parent=11 // pred_check_branch
        %187 = sbr.rel (%p185) target = $region28
      $region27: #{video_extractor_forward.2} parent=11 // pred_region
        _
      $region28: #{video_extractor_forward.2} parent=11 // pred_fallthru
        _
    $region12: #{video_extractor_forward.2} parent=5 // pred_fallthru
      _
    %p188 = scmp.lt.s32.totalorder %s11, 2
    // Predicated region
    $region29: #{video_extractor_forward.2} parent=5 // pred_check
      %p189 = pneg %p188
    $region30: #{video_extractor_forward.2} parent=5 // pred_check_branch
      %191 = sbr.rel (%p189) target = $region32
    $region31: #{video_extractor_forward.2} parent=5 // pred_region
      // Predicated region
      $region33: #{video_extractor_forward.2} parent=31 // pred_check
        %p192 = pneg %p43
      $region34: #{video_extractor_forward.2} parent=31 // pred_check_branch
        %194 = sbr.rel (%p192) target = $region36
      $region35: #{video_extractor_forward.2} parent=31 // pred_region
        %p195 = scmp.lt.s32.totalorder %s18, 1
        %s196 = scalar_select %p195, %s18, 1
        %s197 = smul.addr %s196, 128
        %s198 = smul.addr %s197, 4
        %s199 = scalar_lea.vmem %s0, %s198
      $region36: #{video_extractor_forward.2} parent=31 // pred_fallthru
        _
    $region32: #{video_extractor_forward.2} parent=5 // pred_fallthru
      _
    %p200 = scmp.le.s32.totalorder 1, %s11
    %p201 = scmp.lt.s32.totalorder %s11, 3
    %p202 = pnand %p200, %p201
    %p203 = pneg %p202
    // Predicated region
    $region37: #{video_extractor_forward.2} parent=5 // pred_check
      _
    $region38: #{video_extractor_forward.2} parent=5 // pred_check_branch
      %205 = sbr.rel (%p202) target = $region40
    $region39: #{video_extractor_forward.2} parent=5 // pred_region
      %s206 = ssub.s32 %s11, 1
      %p207 = scmp.lt.s32.totalorder %s20, 1
      %s208 = scalar_select %p207, %s20, 1
      %s209 = smul.addr %s208, 128
      %s210 = smul.addr %s209, 4
      %s211 = scalar_lea.vmem %s0, %s210
      %p212 = pneg %p49
      %p213 = pneg %p46
      %p214 = pneg %p70
      %p215 = pneg %p67
      %p216 = pneg %p91
      %p217 = pneg %p88
      %p218 = pneg %p112
      %p219 = pneg %p109
      %p220 = pneg %p133
      %p221 = pneg %p130
      %p222 = pneg %p161
      %p223 = pneg %p158
      %s224 = smul.u32 4, %s21
      %p225 = scmp.lt.s32.totalorder %s20, 1
      %s226 = scalar_select %p225, %s20, 1
      %p227 = scmp.lt.s32.totalorder %s224, 3
      %s228 = scalar_select %p227, %s224, 3
      %s229 = smul.addr %s228, 4
      %s230 = smul.addr %s226, 16
      %s231 = sadd.s32 %s229, %s230
      %s232 = smul.addr %s231, 2
      %s233 = scalar_lea.vmem %s5, %s232
      %p234 = scmp.lt.s32.totalorder %s20, 1
      %s235 = scalar_select %p234, %s20, 1
      %s236 = smul.addr %s235, 128
      %s237 = smul.addr %s236, 4
      %s238 = scalar_lea.vmem %s0, %s237
      %s239 = smul.u32 4, %s21
      %p240 = scmp.lt.s32.totalorder %s20, 1
      %s241 = scalar_select %p240, %s20, 1
      %p242 = scmp.lt.s32.totalorder %s239, 3
      %s243 = scalar_select %p242, %s239, 3
      %s244 = smul.addr %s243, 4
      %s245 = smul.addr %s241, 16
      %s246 = sadd.s32 %s244, %s245
      %s247 = smul.addr %s246, 2
      %s248 = scalar_lea.vmem %s5, %s247
      %s249 = smul.u32 4, %s21
      %s250 = smul.u32 %s21, 4
      %s251 = smul.u32 %s250, 16
      %s252 = smul.addr %s251, 4
      %s253 = scalar_lea.vmem %s238, %s252
      %v254 = vld [vmem:[%s253] sm:$0xff]
      %v255 = vld [vmem:[%s253 + $0x8] sm:$0xff]
      %v256 = vld [vmem:[%s253 + $0x10] sm:$0xff]
      %v257 = vld [vmem:[%s253 + $0x18] sm:$0xff]
      %v258 = vld [vmem:[%s253 + $0x20] sm:$0xff]
      %v259 = vld [vmem:[%s253 + $0x28] sm:$0xff]
      %v260 = vld [vmem:[%s253 + $0x30] sm:$0xff]
      %v261 = vld [vmem:[%s253 + $0x38] sm:$0xff]
      %v262 = vld [vmem:[%s253 + $0x40] sm:$0xff]
      %v263 = vld [vmem:[%s253 + $0x48] sm:$0xff]
      %v264 = vld [vmem:[%s253 + $0x50] sm:$0xff]
      %v265 = vld [vmem:[%s253 + $0x58] sm:$0xff]
      %v266 = vld [vmem:[%s253 + $0x60] sm:$0xff]
      %v267 = vld [vmem:[%s253 + $0x68] sm:$0xff]
      %v268 = vld [vmem:[%s253 + $0x70] sm:$0xff]
      %v269 = vld [vmem:[%s253 + $0x78] sm:$0xff]
      %v270 = vld [vmem:[%s253 + $0x80] sm:$0xff]
      %v271 = vld [vmem:[%s253 + $0x88] sm:$0xff]
      %v272 = vld [vmem:[%s253 + $0x90] sm:$0xff]
      %v273 = vld [vmem:[%s253 + $0x98] sm:$0xff]
      %v274 = vld [vmem:[%s253 + $0xa0] sm:$0xff]
      %v275 = vld [vmem:[%s253 + $0xa8] sm:$0xff]
      %v276 = vld [vmem:[%s253 + $0xb0] sm:$0xff]
      %v277 = vld [vmem:[%s253 + $0xb8] sm:$0xff]
      %v278 = vld [vmem:[%s253 + $0xc0] sm:$0xff]
      %v279 = vld [vmem:[%s253 + $0xc8] sm:$0xff]
      %v280 = vld [vmem:[%s253 + $0xd0] sm:$0xff]
      %v281 = vld [vmem:[%s253 + $0xd8] sm:$0xff]
      %v282 = vld [vmem:[%s253 + $0xe0] sm:$0xff]
      %v283 = vld [vmem:[%s253 + $0xe8] sm:$0xff]
      %v284 = vld [vmem:[%s253 + $0xf0] sm:$0xff]
      %v285 = vld [vmem:[%s253 + $0xf8] sm:$0xff]
      %v286 = vld [vmem:[%s1] sm:$0xf]
      %v287 = vld [vmem:[%s1 + $0x4] sm:$0xf]
      %v288 = vld [vmem:[%s1 + $0x8] sm:$0xf]
      %v289 = vld [vmem:[%s1 + $0xc] sm:$0xf]
      %v290 = vld [vmem:[%s1 + $0x10] sm:$0xf]
      %v291 = vld [vmem:[%s1 + $0x14] sm:$0xf]
      %v292 = vld [vmem:[%s1 + $0x18] sm:$0xf]
      %v293 = vld [vmem:[%s1 + $0x1c] sm:$0xf]
      %v294 = vld [vmem:[%s1 + $0x20] sm:$0xf]
      %v295 = vld [vmem:[%s1 + $0x24] sm:$0xf]
      %v296 = vld [vmem:[%s1 + $0x28] sm:$0xf]
      %v297 = vld [vmem:[%s1 + $0x2c] sm:$0xf]
      %v298 = vld [vmem:[%s1 + $0x30] sm:$0xf]
      %v299 = vld [vmem:[%s1 + $0x34] sm:$0xf]
      %v300 = vld [vmem:[%s1 + $0x38] sm:$0xf]
      %v301 = vld [vmem:[%s1 + $0x3c] sm:$0xf]
      %v302 = vld [vmem:[%s1 + $0x40] sm:$0xf]
      %v303 = vld [vmem:[%s1 + $0x44] sm:$0xf]
      %v304 = vld [vmem:[%s1 + $0x48] sm:$0xf]
      %v305 = vld [vmem:[%s1 + $0x4c] sm:$0xf]
      %v306 = vld [vmem:[%s1 + $0x50] sm:$0xf]
      %v307 = vld [vmem:[%s1 + $0x54] sm:$0xf]
      %v308 = vld [vmem:[%s1 + $0x58] sm:$0xf]
      %v309 = vld [vmem:[%s1 + $0x5c] sm:$0xf]
      %v310 = vld [vmem:[%s1 + $0x60] sm:$0xf]
      %v311 = vld [vmem:[%s1 + $0x64] sm:$0xf]
      %v312 = vld [vmem:[%s1 + $0x68] sm:$0xf]
      %v313 = vld [vmem:[%s1 + $0x6c] sm:$0xf]
      %v314 = vld [vmem:[%s1 + $0x70] sm:$0xf]
      %v315 = vld [vmem:[%s1 + $0x74] sm:$0xf]
      %v316 = vld [vmem:[%s1 + $0x78] sm:$0xf]
      %v317 = vld [vmem:[%s1 + $0x7c] sm:$0xf]
      %s318 = sadd.s32 %s250, 1
      %s319 = smul.u32 %s318, 16
      %s320 = smul.addr %s319, 4
      %s321 = scalar_lea.vmem %s238, %s320
      %v322 = vld [vmem:[%s321] sm:$0xff]
      %v323 = vld [vmem:[%s321 + $0x8] sm:$0xff]
      %v324 = vld [vmem:[%s321 + $0x10] sm:$0xff]
      %v325 = vld [vmem:[%s321 + $0x18] sm:$0xff]
      %v326 = vld [vmem:[%s321 + $0x20] sm:$0xff]
      %v327 = vld [vmem:[%s321 + $0x28] sm:$0xff]
      %v328 = vld [vmem:[%s321 + $0x30] sm:$0xff]
      %v329 = vld [vmem:[%s321 + $0x38] sm:$0xff]
      %v330 = vld [vmem:[%s321 + $0x40] sm:$0xff]
      %v331 = vld [vmem:[%s321 + $0x48] sm:$0xff]
      %v332 = vld [vmem:[%s321 + $0x50] sm:$0xff]
      %v333 = vld [vmem:[%s321 + $0x58] sm:$0xff]
      %v334 = vld [vmem:[%s321 + $0x60] sm:$0xff]
      %v335 = vld [vmem:[%s321 + $0x68] sm:$0xff]
      %v336 = vld [vmem:[%s321 + $0x70] sm:$0xff]
      %v337 = vld [vmem:[%s321 + $0x78] sm:$0xff]
      %v338 = vld [vmem:[%s321 + $0x80] sm:$0xff]
      %v339 = vld [vmem:[%s321 + $0x88] sm:$0xff]
      %v340 = vld [vmem:[%s321 + $0x90] sm:$0xff]
      %v341 = vld [vmem:[%s321 + $0x98] sm:$0xff]
      %v342 = vld [vmem:[%s321 + $0xa0] sm:$0xff]
      %v343 = vld [vmem:[%s321 + $0xa8] sm:$0xff]
      %v344 = vld [vmem:[%s321 + $0xb0] sm:$0xff]
      %v345 = vld [vmem:[%s321 + $0xb8] sm:$0xff]
      %v346 = vld [vmem:[%s321 + $0xc0] sm:$0xff]
      %v347 = vld [vmem:[%s321 + $0xc8] sm:$0xff]
      %v348 = vld [vmem:[%s321 + $0xd0] sm:$0xff]
      %v349 = vld [vmem:[%s321 + $0xd8] sm:$0xff]
      %v350 = vld [vmem:[%s321 + $0xe0] sm:$0xff]
      %v351 = vld [vmem:[%s321 + $0xe8] sm:$0xff]
      %v352 = vld [vmem:[%s321 + $0xf0] sm:$0xff]
      %v353 = vld [vmem:[%s321 + $0xf8] sm:$0xff]
      %s354 = scalar_lea.vmem %s1, 128
      %v355 = vld [vmem:[%s354] sm:$0xf]
      %v356 = vld [vmem:[%s354 + $0x4] sm:$0xf]
      %v357 = vld [vmem:[%s354 + $0x8] sm:$0xf]
      %v358 = vld [vmem:[%s354 + $0xc] sm:$0xf]
      %v359 = vld [vmem:[%s354 + $0x10] sm:$0xf]
      %v360 = vld [vmem:[%s354 + $0x14] sm:$0xf]
      %v361 = vld [vmem:[%s354 + $0x18] sm:$0xf]
      %v362 = vld [vmem:[%s354 + $0x1c] sm:$0xf]
      %v363 = vld [vmem:[%s354 + $0x20] sm:$0xf]
      %v364 = vld [vmem:[%s354 + $0x24] sm:$0xf]
      %v365 = vld [vmem:[%s354 + $0x28] sm:$0xf]
      %v366 = vld [vmem:[%s354 + $0x2c] sm:$0xf]
      %v367 = vld [vmem:[%s354 + $0x30] sm:$0xf]
      %v368 = vld [vmem:[%s354 + $0x34] sm:$0xf]
      %v369 = vld [vmem:[%s354 + $0x38] sm:$0xf]
      %v370 = vld [vmem:[%s354 + $0x3c] sm:$0xf]
      %v371 = vld [vmem:[%s354 + $0x40] sm:$0xf]
      %v372 = vld [vmem:[%s354 + $0x44] sm:$0xf]
      %v373 = vld [vmem:[%s354 + $0x48] sm:$0xf]
      %v374 = vld [vmem:[%s354 + $0x4c] sm:$0xf]
      %v375 = vld [vmem:[%s354 + $0x50] sm:$0xf]
      %v376 = vld [vmem:[%s354 + $0x54] sm:$0xf]
      %v377 = vld [vmem:[%s354 + $0x58] sm:$0xf]
      %v378 = vld [vmem:[%s354 + $0x5c] sm:$0xf]
      %v379 = vld [vmem:[%s354 + $0x60] sm:$0xf]
      %v380 = vld [vmem:[%s354 + $0x64] sm:$0xf]
      %v381 = vld [vmem:[%s354 + $0x68] sm:$0xf]
      %v382 = vld [vmem:[%s354 + $0x6c] sm:$0xf]
      %v383 = vld [vmem:[%s354 + $0x70] sm:$0xf]
      %v384 = vld [vmem:[%s354 + $0x74] sm:$0xf]
      %v385 = vld [vmem:[%s354 + $0x78] sm:$0xf]
      %v386 = vld [vmem:[%s354 + $0x7c] sm:$0xf]
      %v419 = vunpack.c.l.b16 %v322
      %v420 = vunpack.c.h.b16 %v322
      %v421 = vunpack.c.l.b16 %v323
      %v422 = vunpack.c.h.b16 %v323
      %v423 = vunpack.c.l.b16 %v324
      %v424 = vunpack.c.h.b16 %v324
      %v425 = vunpack.c.l.b16 %v325
      %v426 = vunpack.c.h.b16 %v325
      %v427 = vunpack.c.l.b16 %v326
      %v428 = vunpack.c.h.b16 %v326
      %v429 = vunpack.c.l.b16 %v327
      %v430 = vunpack.c.h.b16 %v327
      %v431 = vunpack.c.l.b16 %v328
      %v432 = vunpack.c.h.b16 %v328
      %v433 = vunpack.c.l.b16 %v329
      %v434 = vunpack.c.h.b16 %v329
      %v435 = vunpack.c.l.b16 %v330
      %v436 = vunpack.c.h.b16 %v330
      %v437 = vunpack.c.l.b16 %v331
      %v438 = vunpack.c.h.b16 %v331
      %v439 = vunpack.c.l.b16 %v332
      %v440 = vunpack.c.h.b16 %v332
      %v441 = vunpack.c.l.b16 %v333
      %v442 = vunpack.c.h.b16 %v333
      %v443 = vunpack.c.l.b16 %v334
      %v444 = vunpack.c.h.b16 %v334
      %v445 = vunpack.c.l.b16 %v335
      %v446 = vunpack.c.h.b16 %v335
      %v447 = vunpack.c.l.b16 %v336
      %v448 = vunpack.c.h.b16 %v336
      %v449 = vunpack.c.l.b16 %v337
      %v450 = vunpack.c.h.b16 %v337
      %v451 = vunpack.c.l.b16 %v338
      %v452 = vunpack.c.h.b16 %v338
      %v453 = vunpack.c.l.b16 %v339
      %v454 = vunpack.c.h.b16 %v339
      %v455 = vunpack.c.l.b16 %v340
      %v456 = vunpack.c.h.b16 %v340
      %v457 = vunpack.c.l.b16 %v341
      %v458 = vunpack.c.h.b16 %v341
      %v459 = vunpack.c.l.b16 %v342
      %v460 = vunpack.c.h.b16 %v342
      %v461 = vunpack.c.l.b16 %v343
      %v462 = vunpack.c.h.b16 %v343
      %v463 = vunpack.c.l.b16 %v344
      %v464 = vunpack.c.h.b16 %v344
      %v465 = vunpack.c.l.b16 %v345
      %v466 = vunpack.c.h.b16 %v345
      %v467 = vunpack.c.l.b16 %v346
      %v468 = vunpack.c.h.b16 %v346
      %v469 = vunpack.c.l.b16 %v347
      %v470 = vunpack.c.h.b16 %v347
      %v471 = vunpack.c.l.b16 %v348
      %v472 = vunpack.c.h.b16 %v348
      %v473 = vunpack.c.l.b16 %v349
      %v474 = vunpack.c.h.b16 %v349
      %v475 = vunpack.c.l.b16 %v350
      %v476 = vunpack.c.h.b16 %v350
      %v477 = vunpack.c.l.b16 %v351
      %v478 = vunpack.c.h.b16 %v351
      %v479 = vunpack.c.l.b16 %v352
      %v480 = vunpack.c.h.b16 %v352
      %v481 = vunpack.c.l.b16 %v353
      %v482 = vunpack.c.h.b16 %v353
      %v483 = vpack.c.b16 %v421, %v419
      %v484 = vpack.c.b16 %v422, %v420
      %v485 = vpack.c.b16 %v425, %v423
      %v486 = vpack.c.b16 %v426, %v424
      %v487 = vpack.c.b16 %v429, %v427
      %v488 = vpack.c.b16 %v430, %v428
      %v489 = vpack.c.b16 %v433, %v431
      %v490 = vpack.c.b16 %v434, %v432
      %v491 = vpack.c.b16 %v437, %v435
      %v492 = vpack.c.b16 %v438, %v436
      %v493 = vpack.c.b16 %v441, %v439
      %v494 = vpack.c.b16 %v442, %v440
      %v495 = vpack.c.b16 %v445, %v443
      %v496 = vpack.c.b16 %v446, %v444
      %v497 = vpack.c.b16 %v449, %v447
      %v498 = vpack.c.b16 %v450, %v448
      %v499 = vpack.c.b16 %v453, %v451
      %v500 = vpack.c.b16 %v454, %v452
      %v501 = vpack.c.b16 %v457, %v455
      %v502 = vpack.c.b16 %v458, %v456
      %v503 = vpack.c.b16 %v461, %v459
      %v504 = vpack.c.b16 %v462, %v460
      %v505 = vpack.c.b16 %v465, %v463
      %v506 = vpack.c.b16 %v466, %v464
      %v507 = vpack.c.b16 %v469, %v467
      %v508 = vpack.c.b16 %v470, %v468
      %v509 = vpack.c.b16 %v473, %v471
      %v510 = vpack.c.b16 %v474, %v472
      %v511 = vpack.c.b16 %v477, %v475
      %v512 = vpack.c.b16 %v478, %v476
      %v513 = vpack.c.b16 %v481, %v479
      %v514 = vpack.c.b16 %v482, %v480
      %v579 = vunpack.c.l.b16 %v355
      %v580 = vunpack.c.l.b16 %v356
      %v581 = vunpack.c.l.b16 %v357
      %v582 = vunpack.c.l.b16 %v358
      %v583 = vunpack.c.l.b16 %v359
      %v584 = vunpack.c.l.b16 %v360
      %v585 = vunpack.c.l.b16 %v361
      %v586 = vunpack.c.l.b16 %v362
      %v587 = vunpack.c.l.b16 %v363
      %v588 = vunpack.c.l.b16 %v364
      %v589 = vunpack.c.l.b16 %v365
      %v590 = vunpack.c.l.b16 %v366
      %v591 = vunpack.c.l.b16 %v367
      %v592 = vunpack.c.l.b16 %v368
      %v593 = vunpack.c.l.b16 %v369
      %v594 = vunpack.c.l.b16 %v370
      %v595 = vunpack.c.l.b16 %v371
      %v596 = vunpack.c.l.b16 %v372
      %v597 = vunpack.c.l.b16 %v373
      %v598 = vunpack.c.l.b16 %v374
      %v599 = vunpack.c.l.b16 %v375
      %v600 = vunpack.c.l.b16 %v376
      %v601 = vunpack.c.l.b16 %v377
      %v602 = vunpack.c.l.b16 %v378
      %v603 = vunpack.c.l.b16 %v379
      %v604 = vunpack.c.l.b16 %v380
      %v605 = vunpack.c.l.b16 %v381
      %v606 = vunpack.c.l.b16 %v382
      %v607 = vunpack.c.l.b16 %v383
      %v608 = vunpack.c.l.b16 %v384
      %v609 = vunpack.c.l.b16 %v385
      %v610 = vunpack.c.l.b16 %v386
      %v611 = vpack.c.b16 %v580, %v579
      %v612 = vpack.c.b16 %v582, %v581
      %v613 = vpack.c.b16 %v584, %v583
      %v614 = vpack.c.b16 %v586, %v585
      %v615 = vpack.c.b16 %v588, %v587
      %v616 = vpack.c.b16 %v590, %v589
      %v617 = vpack.c.b16 %v592, %v591
      %v618 = vpack.c.b16 %v594, %v593
      %v619 = vpack.c.b16 %v596, %v595
      %v620 = vpack.c.b16 %v598, %v597
      %v621 = vpack.c.b16 %v600, %v599
      %v622 = vpack.c.b16 %v602, %v601
      %v623 = vpack.c.b16 %v604, %v603
      %v624 = vpack.c.b16 %v606, %v605
      %v625 = vpack.c.b16 %v608, %v607
      %v626 = vpack.c.b16 %v610, %v609
      %643 = vmatpush.bf16.msra.mxu0 %v618
      %644 = vmatpush.bf16.msra.mxu0 %v617
      %645 = vmatpush.bf16.msra.mxu0 %v616
      %646 = vmatpush.bf16.msra.mxu0 %v615
      %647 = vmatpush.bf16.msra.mxu0 %v614
      %648 = vmatpush.bf16.msra.mxu0 %v613
      %649 = vmatpush.bf16.msra.mxu0 %v612
      %650 = vmatpush.bf16.msra.mxu0 %v611
      %651 = vmatmul.bf16.gmra.mxu0 %v483
      %v652 = vpop.f32.mrf.mxu0
      %v653 = vadd.f32 0.0, %v652
      %v654 = vpop.f32.mrf.mxu0
      %v655 = vadd.f32 0.0, %v654
      %656 = vmatmul.bf16.gmra.mxu0 %v485
      %v657 = vpop.f32.mrf.mxu0
      %v658 = vadd.f32 0.0, %v657
      %v659 = vpop.f32.mrf.mxu0
      %v660 = vadd.f32 0.0, %v659
      %661 = vmatmul.bf16.gmra.mxu0 %v487
      %v662 = vpop.f32.mrf.mxu0
      %v663 = vadd.f32 0.0, %v662
      %v664 = vpop.f32.mrf.mxu0
      %v665 = vadd.f32 0.0, %v664
      %666 = vmatmul.bf16.gmra.mxu0 %v489
      %v667 = vpop.f32.mrf.mxu0
      %v668 = vadd.f32 0.0, %v667
      %v669 = vpop.f32.mrf.mxu0
      %v670 = vadd.f32 0.0, %v669
      %671 = vmatmul.bf16.gmra.mxu0 %v491
      %v672 = vpop.f32.mrf.mxu0
      %v673 = vadd.f32 0.0, %v672
      %v674 = vpop.f32.mrf.mxu0
      %v675 = vadd.f32 0.0, %v674
      %676 = vmatmul.bf16.gmra.mxu0 %v493
      %v677 = vpop.f32.mrf.mxu0
      %v678 = vadd.f32 0.0, %v677
      %v679 = vpop.f32.mrf.mxu0
      %v680 = vadd.f32 0.0, %v679
      %681 = vmatmul.bf16.gmra.mxu0 %v495
      %v682 = vpop.f32.mrf.mxu0
      %v683 = vadd.f32 0.0, %v682
      %v684 = vpop.f32.mrf.mxu0
      %v685 = vadd.f32 0.0, %v684
      %686 = vmatmul.bf16.gmra.mxu0 %v497
      %v687 = vpop.f32.mrf.mxu0
      %v688 = vadd.f32 0.0, %v687
      %v689 = vpop.f32.mrf.mxu0
      %v690 = vadd.f32 0.0, %v689
      %691 = vmatmul.bf16.gmra.mxu0 %v499
      %v692 = vpop.f32.mrf.mxu0
      %v693 = vadd.f32 0.0, %v692
      %v694 = vpop.f32.mrf.mxu0
      %v695 = vadd.f32 0.0, %v694
      %696 = vmatmul.bf16.gmra.mxu0 %v501
      %v697 = vpop.f32.mrf.mxu0
      %v698 = vadd.f32 0.0, %v697
      %v699 = vpop.f32.mrf.mxu0
      %v700 = vadd.f32 0.0, %v699
      %701 = vmatmul.bf16.gmra.mxu0 %v503
      %v702 = vpop.f32.mrf.mxu0
      %v703 = vadd.f32 0.0, %v702
      %v704 = vpop.f32.mrf.mxu0
      %v705 = vadd.f32 0.0, %v704
      %706 = vmatmul.bf16.gmra.mxu0 %v505
      %v707 = vpop.f32.mrf.mxu0
      %v708 = vadd.f32 0.0, %v707
      %v709 = vpop.f32.mrf.mxu0
      %v710 = vadd.f32 0.0, %v709
      %711 = vmatmul.bf16.gmra.mxu0 %v507
      %v712 = vpop.f32.mrf.mxu0
      %v713 = vadd.f32 0.0, %v712
      %v714 = vpop.f32.mrf.mxu0
      %v715 = vadd.f32 0.0, %v714
      %716 = vmatmul.bf16.gmra.mxu0 %v509
      %v717 = vpop.f32.mrf.mxu0
      %v718 = vadd.f32 0.0, %v717
      %v719 = vpop.f32.mrf.mxu0
      %v720 = vadd.f32 0.0, %v719
      %721 = vmatmul.bf16.gmra.mxu0 %v511
      %v722 = vpop.f32.mrf.mxu0
      %v723 = vadd.f32 0.0, %v722
      %v724 = vpop.f32.mrf.mxu0
      %v725 = vadd.f32 0.0, %v724
      %726 = vmatmul.bf16.gmra.mxu0 %v513
      %v727 = vpop.f32.mrf.mxu0
      %v728 = vadd.f32 0.0, %v727
      %v729 = vpop.f32.mrf.mxu0
      %v730 = vadd.f32 0.0, %v729
      %731 = vdwg.mxu0
      %732 = vmatpush.bf16.msra.mxu0 %v626
      %733 = vmatpush.bf16.msra.mxu0 %v625
      %734 = vmatpush.bf16.msra.mxu0 %v624
      %735 = vmatpush.bf16.msra.mxu0 %v623
      %736 = vmatpush.bf16.msra.mxu0 %v622
      %737 = vmatpush.bf16.msra.mxu0 %v621
      %738 = vmatpush.bf16.msra.mxu0 %v620
      %739 = vmatpush.bf16.msra.mxu0 %v619
      %740 = vmatmul.bf16.gmra.mxu0 %v484
      %v741 = vpop.f32.mrf.mxu0
      %v742 = vadd.f32 %v653, %v741
      %v743 = vpop.f32.mrf.mxu0
      %v744 = vadd.f32 %v655, %v743
      %745 = vmatmul.bf16.gmra.mxu0 %v486
      %v746 = vpop.f32.mrf.mxu0
      %v747 = vadd.f32 %v658, %v746
      %v748 = vpop.f32.mrf.mxu0
      %v749 = vadd.f32 %v660, %v748
      %750 = vmatmul.bf16.gmra.mxu0 %v488
      %v751 = vpop.f32.mrf.mxu0
      %v752 = vadd.f32 %v663, %v751
      %v753 = vpop.f32.mrf.mxu0
      %v754 = vadd.f32 %v665, %v753
      %755 = vmatmul.bf16.gmra.mxu0 %v490
      %v756 = vpop.f32.mrf.mxu0
      %v757 = vadd.f32 %v668, %v756
      %v758 = vpop.f32.mrf.mxu0
      %v759 = vadd.f32 %v670, %v758
      %760 = vmatmul.bf16.gmra.mxu0 %v492
      %v761 = vpop.f32.mrf.mxu0
      %v762 = vadd.f32 %v673, %v761
      %v763 = vpop.f32.mrf.mxu0
      %v764 = vadd.f32 %v675, %v763
      %765 = vmatmul.bf16.gmra.mxu0 %v494
      %v766 = vpop.f32.mrf.mxu0
      %v767 = vadd.f32 %v678, %v766
      %v768 = vpop.f32.mrf.mxu0
      %v769 = vadd.f32 %v680, %v768
      %770 = vmatmul.bf16.gmra.mxu0 %v496
      %v771 = vpop.f32.mrf.mxu0
      %v772 = vadd.f32 %v683, %v771
      %v773 = vpop.f32.mrf.mxu0
      %v774 = vadd.f32 %v685, %v773
      %775 = vmatmul.bf16.gmra.mxu0 %v498
      %v776 = vpop.f32.mrf.mxu0
      %v777 = vadd.f32 %v688, %v776
      %v778 = vpop.f32.mrf.mxu0
      %v779 = vadd.f32 %v690, %v778
      %780 = vmatmul.bf16.gmra.mxu0 %v500
      %v781 = vpop.f32.mrf.mxu0
      %v782 = vadd.f32 %v693, %v781
      %v783 = vpop.f32.mrf.mxu0
      %v784 = vadd.f32 %v695, %v783
      %785 = vmatmul.bf16.gmra.mxu0 %v502
      %v786 = vpop.f32.mrf.mxu0
      %v787 = vadd.f32 %v698, %v786
      %v788 = vpop.f32.mrf.mxu0
      %v789 = vadd.f32 %v700, %v788
      %790 = vmatmul.bf16.gmra.mxu0 %v504
      %v791 = vpop.f32.mrf.mxu0
      %v792 = vadd.f32 %v703, %v791
      %v793 = vpop.f32.mrf.mxu0
      %v794 = vadd.f32 %v705, %v793
      %795 = vmatmul.bf16.gmra.mxu0 %v506
      %v796 = vpop.f32.mrf.mxu0
      %v797 = vadd.f32 %v708, %v796
      %v798 = vpop.f32.mrf.mxu0
      %v799 = vadd.f32 %v710, %v798
      %800 = vmatmul.bf16.gmra.mxu0 %v508
      %v801 = vpop.f32.mrf.mxu0
      %v802 = vadd.f32 %v713, %v801
      %v803 = vpop.f32.mrf.mxu0
      %v804 = vadd.f32 %v715, %v803
      %805 = vmatmul.bf16.gmra.mxu0 %v510
      %v806 = vpop.f32.mrf.mxu0
      %v807 = vadd.f32 %v718, %v806
      %v808 = vpop.f32.mrf.mxu0
      %v809 = vadd.f32 %v720, %v808
      %810 = vmatmul.bf16.gmra.mxu0 %v512
      %v811 = vpop.f32.mrf.mxu0
      %v812 = vadd.f32 %v723, %v811
      %v813 = vpop.f32.mrf.mxu0
      %v814 = vadd.f32 %v725, %v813
      %815 = vmatmul.bf16.gmra.mxu0 %v514
      %v816 = vpop.f32.mrf.mxu0
      %v817 = vadd.f32 %v728, %v816
      %v818 = vpop.f32.mrf.mxu0
      %v819 = vadd.f32 %v730, %v818
      %820 = vdwg.mxu0
      %v853 = vunpack.c.l.b16 %v254
      %v854 = vunpack.c.h.b16 %v254
      %v855 = vunpack.c.l.b16 %v255
      %v856 = vunpack.c.h.b16 %v255
      %v857 = vunpack.c.l.b16 %v256
      %v858 = vunpack.c.h.b16 %v256
      %v859 = vunpack.c.l.b16 %v257
      %v860 = vunpack.c.h.b16 %v257
      %v861 = vunpack.c.l.b16 %v258
      %v862 = vunpack.c.h.b16 %v258
      %v863 = vunpack.c.l.b16 %v259
      %v864 = vunpack.c.h.b16 %v259
      %v865 = vunpack.c.l.b16 %v260
      %v866 = vunpack.c.h.b16 %v260
      %v867 = vunpack.c.l.b16 %v261
      %v868 = vunpack.c.h.b16 %v261
      %v869 = vunpack.c.l.b16 %v262
      %v870 = vunpack.c.h.b16 %v262
      %v871 = vunpack.c.l.b16 %v263
      %v872 = vunpack.c.h.b16 %v263
      %v873 = vunpack.c.l.b16 %v264
      %v874 = vunpack.c.h.b16 %v264
      %v875 = vunpack.c.l.b16 %v265
      %v876 = vunpack.c.h.b16 %v265
      %v877 = vunpack.c.l.b16 %v266
      %v878 = vunpack.c.h.b16 %v266
      %v879 = vunpack.c.l.b16 %v267
      %v880 = vunpack.c.h.b16 %v267
      %v881 = vunpack.c.l.b16 %v268
      %v882 = vunpack.c.h.b16 %v268
      %v883 = vunpack.c.l.b16 %v269
      %v884 = vunpack.c.h.b16 %v269
      %v885 = vunpack.c.l.b16 %v270
      %v886 = vunpack.c.h.b16 %v270
      %v887 = vunpack.c.l.b16 %v271
      %v888 = vunpack.c.h.b16 %v271
      %v889 = vunpack.c.l.b16 %v272
      %v890 = vunpack.c.h.b16 %v272
      %v891 = vunpack.c.l.b16 %v273
      %v892 = vunpack.c.h.b16 %v273
      %v893 = vunpack.c.l.b16 %v274
      %v894 = vunpack.c.h.b16 %v274
      %v895 = vunpack.c.l.b16 %v275
      %v896 = vunpack.c.h.b16 %v275
      %v897 = vunpack.c.l.b16 %v276
      %v898 = vunpack.c.h.b16 %v276
      %v899 = vunpack.c.l.b16 %v277
      %v900 = vunpack.c.h.b16 %v277
      %v901 = vunpack.c.l.b16 %v278
      %v902 = vunpack.c.h.b16 %v278
      %v903 = vunpack.c.l.b16 %v279
      %v904 = vunpack.c.h.b16 %v279
      %v905 = vunpack.c.l.b16 %v280
      %v906 = vunpack.c.h.b16 %v280
      %v907 = vunpack.c.l.b16 %v281
      %v908 = vunpack.c.h.b16 %v281
      %v909 = vunpack.c.l.b16 %v282
      %v910 = vunpack.c.h.b16 %v282
      %v911 = vunpack.c.l.b16 %v283
      %v912 = vunpack.c.h.b16 %v283
      %v913 = vunpack.c.l.b16 %v284
      %v914 = vunpack.c.h.b16 %v284
      %v915 = vunpack.c.l.b16 %v285
      %v916 = vunpack.c.h.b16 %v285
      %v917 = vpack.c.b16 %v855, %v853
      %v918 = vpack.c.b16 %v856, %v854
      %v919 = vpack.c.b16 %v859, %v857
      %v920 = vpack.c.b16 %v860, %v858
      %v921 = vpack.c.b16 %v863, %v861
      %v922 = vpack.c.b16 %v864, %v862
      %v923 = vpack.c.b16 %v867, %v865
      %v924 = vpack.c.b16 %v868, %v866
      %v925 = vpack.c.b16 %v871, %v869
      %v926 = vpack.c.b16 %v872, %v870
      %v927 = vpack.c.b16 %v875, %v873
      %v928 = vpack.c.b16 %v876, %v874
      %v929 = vpack.c.b16 %v879, %v877
      %v930 = vpack.c.b16 %v880, %v878
      %v931 = vpack.c.b16 %v883, %v881
      %v932 = vpack.c.b16 %v884, %v882
      %v933 = vpack.c.b16 %v887, %v885
      %v934 = vpack.c.b16 %v888, %v886
      %v935 = vpack.c.b16 %v891, %v889
      %v936 = vpack.c.b16 %v892, %v890
      %v937 = vpack.c.b16 %v895, %v893
      %v938 = vpack.c.b16 %v896, %v894
      %v939 = vpack.c.b16 %v899, %v897
      %v940 = vpack.c.b16 %v900, %v898
      %v941 = vpack.c.b16 %v903, %v901
      %v942 = vpack.c.b16 %v904, %v902
      %v943 = vpack.c.b16 %v907, %v905
      %v944 = vpack.c.b16 %v908, %v906
      %v945 = vpack.c.b16 %v911, %v909
      %v946 = vpack.c.b16 %v912, %v910
      %v947 = vpack.c.b16 %v915, %v913
      %v948 = vpack.c.b16 %v916, %v914
      %v1013 = vunpack.c.l.b16 %v286
      %v1014 = vunpack.c.l.b16 %v287
      %v1015 = vunpack.c.l.b16 %v288
      %v1016 = vunpack.c.l.b16 %v289
      %v1017 = vunpack.c.l.b16 %v290
      %v1018 = vunpack.c.l.b16 %v291
      %v1019 = vunpack.c.l.b16 %v292
      %v1020 = vunpack.c.l.b16 %v293
      %v1021 = vunpack.c.l.b16 %v294
      %v1022 = vunpack.c.l.b16 %v295
      %v1023 = vunpack.c.l.b16 %v296
      %v1024 = vunpack.c.l.b16 %v297
      %v1025 = vunpack.c.l.b16 %v298
      %v1026 = vunpack.c.l.b16 %v299
      %v1027 = vunpack.c.l.b16 %v300
      %v1028 = vunpack.c.l.b16 %v301
      %v1029 = vunpack.c.l.b16 %v302
      %v1030 = vunpack.c.l.b16 %v303
      %v1031 = vunpack.c.l.b16 %v304
      %v1032 = vunpack.c.l.b16 %v305
      %v1033 = vunpack.c.l.b16 %v306
      %v1034 = vunpack.c.l.b16 %v307
      %v1035 = vunpack.c.l.b16 %v308
      %v1036 = vunpack.c.l.b16 %v309
      %v1037 = vunpack.c.l.b16 %v310
      %v1038 = vunpack.c.l.b16 %v311
      %v1039 = vunpack.c.l.b16 %v312
      %v1040 = vunpack.c.l.b16 %v313
      %v1041 = vunpack.c.l.b16 %v314
      %v1042 = vunpack.c.l.b16 %v315
      %v1043 = vunpack.c.l.b16 %v316
      %v1044 = vunpack.c.l.b16 %v317
      %v1045 = vpack.c.b16 %v1014, %v1013
      %v1046 = vpack.c.b16 %v1016, %v1015
      %v1047 = vpack.c.b16 %v1018, %v1017
      %v1048 = vpack.c.b16 %v1020, %v1019
      %v1049 = vpack.c.b16 %v1022, %v1021
      %v1050 = vpack.c.b16 %v1024, %v1023
      %v1051 = vpack.c.b16 %v1026, %v1025
      %v1052 = vpack.c.b16 %v1028, %v1027
      %v1053 = vpack.c.b16 %v1030, %v1029
      %v1054 = vpack.c.b16 %v1032, %v1031
      %v1055 = vpack.c.b16 %v1034, %v1033
      %v1056 = vpack.c.b16 %v1036, %v1035
      %v1057 = vpack.c.b16 %v1038, %v1037
      %v1058 = vpack.c.b16 %v1040, %v1039
      %v1059 = vpack.c.b16 %v1042, %v1041
      %v1060 = vpack.c.b16 %v1044, %v1043
      %1077 = vmatpush.bf16.msra.mxu0 %v1052
      %1078 = vmatpush.bf16.msra.mxu0 %v1051
      %1079 = vmatpush.bf16.msra.mxu0 %v1050
      %1080 = vmatpush.bf16.msra.mxu0 %v1049
      %1081 = vmatpush.bf16.msra.mxu0 %v1048
      %1082 = vmatpush.bf16.msra.mxu0 %v1047
      %1083 = vmatpush.bf16.msra.mxu0 %v1046
      %1084 = vmatpush.bf16.msra.mxu0 %v1045
      %1085 = vmatmul.bf16.gmra.mxu0 %v917
      %v1086 = vpop.f32.mrf.mxu0
      %v1087 = vadd.f32 %v742, %v1086
      %v1088 = vpop.f32.mrf.mxu0
      %v1089 = vadd.f32 %v744, %v1088
      %1090 = vmatmul.bf16.gmra.mxu0 %v919
      %v1091 = vpop.f32.mrf.mxu0
      %v1092 = vadd.f32 %v747, %v1091
      %v1093 = vpop.f32.mrf.mxu0
      %v1094 = vadd.f32 %v749, %v1093
      %1095 = vmatmul.bf16.gmra.mxu0 %v921
      %v1096 = vpop.f32.mrf.mxu0
      %v1097 = vadd.f32 %v752, %v1096
      %v1098 = vpop.f32.mrf.mxu0
      %v1099 = vadd.f32 %v754, %v1098
      %1100 = vmatmul.bf16.gmra.mxu0 %v923
      %v1101 = vpop.f32.mrf.mxu0
      %v1102 = vadd.f32 %v757, %v1101
      %v1103 = vpop.f32.mrf.mxu0
      %v1104 = vadd.f32 %v759, %v1103
      %1105 = vmatmul.bf16.gmra.mxu0 %v925
      %v1106 = vpop.f32.mrf.mxu0
      %v1107 = vadd.f32 %v762, %v1106
      %v1108 = vpop.f32.mrf.mxu0
      %v1109 = vadd.f32 %v764, %v1108
      %1110 = vmatmul.bf16.gmra.mxu0 %v927
      %v1111 = vpop.f32.mrf.mxu0
      %v1112 = vadd.f32 %v767, %v1111
      %v1113 = vpop.f32.mrf.mxu0
      %v1114 = vadd.f32 %v769, %v1113
      %1115 = vmatmul.bf16.gmra.mxu0 %v929
      %v1116 = vpop.f32.mrf.mxu0
      %v1117 = vadd.f32 %v772, %v1116
      %v1118 = vpop.f32.mrf.mxu0
      %v1119 = vadd.f32 %v774, %v1118
      %1120 = vmatmul.bf16.gmra.mxu0 %v931
      %v1121 = vpop.f32.mrf.mxu0
      %v1122 = vadd.f32 %v777, %v1121
      %v1123 = vpop.f32.mrf.mxu0
      %v1124 = vadd.f32 %v779, %v1123
      %1125 = vmatmul.bf16.gmra.mxu0 %v933
      %v1126 = vpop.f32.mrf.mxu0
      %v1127 = vadd.f32 %v782, %v1126
      %v1128 = vpop.f32.mrf.mxu0
      %v1129 = vadd.f32 %v784, %v1128
      %1130 = vmatmul.bf16.gmra.mxu0 %v935
      %v1131 = vpop.f32.mrf.mxu0
      %v1132 = vadd.f32 %v787, %v1131
      %v1133 = vpop.f32.mrf.mxu0
      %v1134 = vadd.f32 %v789, %v1133
      %1135 = vmatmul.bf16.gmra.mxu0 %v937
      %v1136 = vpop.f32.mrf.mxu0
      %v1137 = vadd.f32 %v792, %v1136
      %v1138 = vpop.f32.mrf.mxu0
      %v1139 = vadd.f32 %v794, %v1138
      %1140 = vmatmul.bf16.gmra.mxu0 %v939
      %v1141 = vpop.f32.mrf.mxu0
      %v1142 = vadd.f32 %v797, %v1141
      %v1143 = vpop.f32.mrf.mxu0
      %v1144 = vadd.f32 %v799, %v1143
      %1145 = vmatmul.bf16.gmra.mxu0 %v941
      %v1146 = vpop.f32.mrf.mxu0
      %v1147 = vadd.f32 %v802, %v1146
      %v1148 = vpop.f32.mrf.mxu0
      %v1149 = vadd.f32 %v804, %v1148
      %1150 = vmatmul.bf16.gmra.mxu0 %v943
      %v1151 = vpop.f32.mrf.mxu0
      %v1152 = vadd.f32 %v807, %v1151
      %v1153 = vpop.f32.mrf.mxu0
      %v1154 = vadd.f32 %v809, %v1153
      %1155 = vmatmul.bf16.gmra.mxu0 %v945
      %v1156 = vpop.f32.mrf.mxu0
      %v1157 = vadd.f32 %v812, %v1156
      %v1158 = vpop.f32.mrf.mxu0
      %v1159 = vadd.f32 %v814, %v1158
      %1160 = vmatmul.bf16.gmra.mxu0 %v947
      %v1161 = vpop.f32.mrf.mxu0
      %v1162 = vadd.f32 %v817, %v1161
      %v1163 = vpop.f32.mrf.mxu0
      %v1164 = vadd.f32 %v819, %v1163
      %1165 = vdwg.mxu0
      %1166 = vmatpush.bf16.msra.mxu0 %v1060
      %1167 = vmatpush.bf16.msra.mxu0 %v1059
      %1168 = vmatpush.bf16.msra.mxu0 %v1058
      %1169 = vmatpush.bf16.msra.mxu0 %v1057
      %1170 = vmatpush.bf16.msra.mxu0 %v1056
      %1171 = vmatpush.bf16.msra.mxu0 %v1055
      %1172 = vmatpush.bf16.msra.mxu0 %v1054
      %1173 = vmatpush.bf16.msra.mxu0 %v1053
      %1174 = vmatmul.bf16.gmra.mxu0 %v918
      %v1175 = vpop.f32.mrf.mxu0
      %v1176 = vadd.f32 %v1087, %v1175
      %v1177 = vpop.f32.mrf.mxu0
      %v1178 = vadd.f32 %v1089, %v1177
      %1179 = vmatmul.bf16.gmra.mxu0 %v920
      %v1180 = vpop.f32.mrf.mxu0
      %v1181 = vadd.f32 %v1092, %v1180
      %v1182 = vpop.f32.mrf.mxu0
      %v1183 = vadd.f32 %v1094, %v1182
      %1184 = vmatmul.bf16.gmra.mxu0 %v922
      %v1185 = vpop.f32.mrf.mxu0
      %v1186 = vadd.f32 %v1097, %v1185
      %v1187 = vpop.f32.mrf.mxu0
      %v1188 = vadd.f32 %v1099, %v1187
      %1189 = vmatmul.bf16.gmra.mxu0 %v924
      %v1190 = vpop.f32.mrf.mxu0
      %v1191 = vadd.f32 %v1102, %v1190
      %v1192 = vpop.f32.mrf.mxu0
      %v1193 = vadd.f32 %v1104, %v1192
      %1194 = vmatmul.bf16.gmra.mxu0 %v926
      %v1195 = vpop.f32.mrf.mxu0
      %v1196 = vadd.f32 %v1107, %v1195
      %v1197 = vpop.f32.mrf.mxu0
      %v1198 = vadd.f32 %v1109, %v1197
      %1199 = vmatmul.bf16.gmra.mxu0 %v928
      %v1200 = vpop.f32.mrf.mxu0
      %v1201 = vadd.f32 %v1112, %v1200
      %v1202 = vpop.f32.mrf.mxu0
      %v1203 = vadd.f32 %v1114, %v1202
      %1204 = vmatmul.bf16.gmra.mxu0 %v930
      %v1205 = vpop.f32.mrf.mxu0
      %v1206 = vadd.f32 %v1117, %v1205
      %v1207 = vpop.f32.mrf.mxu0
      %v1208 = vadd.f32 %v1119, %v1207
      %1209 = vmatmul.bf16.gmra.mxu0 %v932
      %v1210 = vpop.f32.mrf.mxu0
      %v1211 = vadd.f32 %v1122, %v1210
      %v1212 = vpop.f32.mrf.mxu0
      %v1213 = vadd.f32 %v1124, %v1212
      %1214 = vmatmul.bf16.gmra.mxu0 %v934
      %v1215 = vpop.f32.mrf.mxu0
      %v1216 = vadd.f32 %v1127, %v1215
      %v1217 = vpop.f32.mrf.mxu0
      %v1218 = vadd.f32 %v1129, %v1217
      %1219 = vmatmul.bf16.gmra.mxu0 %v936
      %v1220 = vpop.f32.mrf.mxu0
      %v1221 = vadd.f32 %v1132, %v1220
      %v1222 = vpop.f32.mrf.mxu0
      %v1223 = vadd.f32 %v1134, %v1222
      %1224 = vmatmul.bf16.gmra.mxu0 %v938
      %v1225 = vpop.f32.mrf.mxu0
      %v1226 = vadd.f32 %v1137, %v1225
      %v1227 = vpop.f32.mrf.mxu0
      %v1228 = vadd.f32 %v1139, %v1227
      %1229 = vmatmul.bf16.gmra.mxu0 %v940
      %v1230 = vpop.f32.mrf.mxu0
      %v1231 = vadd.f32 %v1142, %v1230
      %v1232 = vpop.f32.mrf.mxu0
      %v1233 = vadd.f32 %v1144, %v1232
      %1234 = vmatmul.bf16.gmra.mxu0 %v942
      %v1235 = vpop.f32.mrf.mxu0
      %v1236 = vadd.f32 %v1147, %v1235
      %v1237 = vpop.f32.mrf.mxu0
      %v1238 = vadd.f32 %v1149, %v1237
      %1239 = vmatmul.bf16.gmra.mxu0 %v944
      %v1240 = vpop.f32.mrf.mxu0
      %v1241 = vadd.f32 %v1152, %v1240
      %v1242 = vpop.f32.mrf.mxu0
      %v1243 = vadd.f32 %v1154, %v1242
      %1244 = vmatmul.bf16.gmra.mxu0 %v946
      %v1245 = vpop.f32.mrf.mxu0
      %v1246 = vadd.f32 %v1157, %v1245
      %v1247 = vpop.f32.mrf.mxu0
      %v1248 = vadd.f32 %v1159, %v1247
      %1249 = vmatmul.bf16.gmra.mxu0 %v948
      %v1250 = vpop.f32.mrf.mxu0
      %v1251 = vadd.f32 %v1162, %v1250
      %v1252 = vpop.f32.mrf.mxu0
      %v1253 = vadd.f32 %v1164, %v1252
      %1254 = vdwg.mxu0
      %s1255 = sadd.s32 %s250, 2
      %s1256 = smul.u32 %s1255, 16
      %s1257 = smul.addr %s1256, 4
      %s1258 = scalar_lea.vmem %s238, %s1257
      %v1259 = vld [vmem:[%s1258] sm:$0xff]
      %v1260 = vld [vmem:[%s1258 + $0x8] sm:$0xff]
      %v1261 = vld [vmem:[%s1258 + $0x10] sm:$0xff]
      %v1262 = vld [vmem:[%s1258 + $0x18] sm:$0xff]
      %v1263 = vld [vmem:[%s1258 + $0x20] sm:$0xff]
      %v1264 = vld [vmem:[%s1258 + $0x28] sm:$0xff]
      %v1265 = vld [vmem:[%s1258 + $0x30] sm:$0xff]
      %v1266 = vld [vmem:[%s1258 + $0x38] sm:$0xff]
      %v1267 = vld [vmem:[%s1258 + $0x40] sm:$0xff]
      %v1268 = vld [vmem:[%s1258 + $0x48] sm:$0xff]
      %v1269 = vld [vmem:[%s1258 + $0x50] sm:$0xff]
      %v1270 = vld [vmem:[%s1258 + $0x58] sm:$0xff]
      %v1271 = vld [vmem:[%s1258 + $0x60] sm:$0xff]
      %v1272 = vld [vmem:[%s1258 + $0x68] sm:$0xff]
      %v1273 = vld [vmem:[%s1258 + $0x70] sm:$0xff]
      %v1274 = vld [vmem:[%s1258 + $0x78] sm:$0xff]
      %v1275 = vld [vmem:[%s1258 + $0x80] sm:$0xff]
      %v1276 = vld [vmem:[%s1258 + $0x88] sm:$0xff]
      %v1277 = vld [vmem:[%s1258 + $0x90] sm:$0xff]
      %v1278 = vld [vmem:[%s1258 + $0x98] sm:$0xff]
      %v1279 = vld [vmem:[%s1258 + $0xa0] sm:$0xff]
      %v1280 = vld [vmem:[%s1258 + $0xa8] sm:$0xff]
      %v1281 = vld [vmem:[%s1258 + $0xb0] sm:$0xff]
      %v1282 = vld [vmem:[%s1258 + $0xb8] sm:$0xff]
      %v1283 = vld [vmem:[%s1258 + $0xc0] sm:$0xff]
      %v1284 = vld [vmem:[%s1258 + $0xc8] sm:$0xff]
      %v1285 = vld [vmem:[%s1258 + $0xd0] sm:$0xff]
      %v1286 = vld [vmem:[%s1258 + $0xd8] sm:$0xff]
      %v1287 = vld [vmem:[%s1258 + $0xe0] sm:$0xff]
      %v1288 = vld [vmem:[%s1258 + $0xe8] sm:$0xff]
      %v1289 = vld [vmem:[%s1258 + $0xf0] sm:$0xff]
      %v1290 = vld [vmem:[%s1258 + $0xf8] sm:$0xff]
      %s1291 = scalar_lea.vmem %s1, 256
      %v1292 = vld [vmem:[%s1291] sm:$0xf]
      %v1293 = vld [vmem:[%s1291 + $0x4] sm:$0xf]
      %v1294 = vld [vmem:[%s1291 + $0x8] sm:$0xf]
      %v1295 = vld [vmem:[%s1291 + $0xc] sm:$0xf]
      %v1296 = vld [vmem:[%s1291 + $0x10] sm:$0xf]
      %v1297 = vld [vmem:[%s1291 + $0x14] sm:$0xf]
      %v1298 = vld [vmem:[%s1291 + $0x18] sm:$0xf]
      %v1299 = vld [vmem:[%s1291 + $0x1c] sm:$0xf]
      %v1300 = vld [vmem:[%s1291 + $0x20] sm:$0xf]
      %v1301 = vld [vmem:[%s1291 + $0x24] sm:$0xf]
      %v1302 = vld [vmem:[%s1291 + $0x28] sm:$0xf]
      %v1303 = vld [vmem:[%s1291 + $0x2c] sm:$0xf]
      %v1304 = vld [vmem:[%s1291 + $0x30] sm:$0xf]
      %v1305 = vld [vmem:[%s1291 + $0x34] sm:$0xf]
      %v1306 = vld [vmem:[%s1291 + $0x38] sm:$0xf]
      %v1307 = vld [vmem:[%s1291 + $0x3c] sm:$0xf]
      %v1308 = vld [vmem:[%s1291 + $0x40] sm:$0xf]
      %v1309 = vld [vmem:[%s1291 + $0x44] sm:$0xf]
      %v1310 = vld [vmem:[%s1291 + $0x48] sm:$0xf]
      %v1311 = vld [vmem:[%s1291 + $0x4c] sm:$0xf]
      %v1312 = vld [vmem:[%s1291 + $0x50] sm:$0xf]
      %v1313 = vld [vmem:[%s1291 + $0x54] sm:$0xf]
      %v1314 = vld [vmem:[%s1291 + $0x58] sm:$0xf]
      %v1315 = vld [vmem:[%s1291 + $0x5c] sm:$0xf]
      %v1316 = vld [vmem:[%s1291 + $0x60] sm:$0xf]
      %v1317 = vld [vmem:[%s1291 + $0x64] sm:$0xf]
      %v1318 = vld [vmem:[%s1291 + $0x68] sm:$0xf]
      %v1319 = vld [vmem:[%s1291 + $0x6c] sm:$0xf]
      %v1320 = vld [vmem:[%s1291 + $0x70] sm:$0xf]
      %v1321 = vld [vmem:[%s1291 + $0x74] sm:$0xf]
      %v1322 = vld [vmem:[%s1291 + $0x78] sm:$0xf]
      %v1323 = vld [vmem:[%s1291 + $0x7c] sm:$0xf]
      %v1356 = vunpack.c.l.b16 %v1259
      %v1357 = vunpack.c.h.b16 %v1259
      %v1358 = vunpack.c.l.b16 %v1260
      %v1359 = vunpack.c.h.b16 %v1260
      %v1360 = vunpack.c.l.b16 %v1261
      %v1361 = vunpack.c.h.b16 %v1261
      %v1362 = vunpack.c.l.b16 %v1262
      %v1363 = vunpack.c.h.b16 %v1262
      %v1364 = vunpack.c.l.b16 %v1263
      %v1365 = vunpack.c.h.b16 %v1263
      %v1366 = vunpack.c.l.b16 %v1264
      %v1367 = vunpack.c.h.b16 %v1264
      %v1368 = vunpack.c.l.b16 %v1265
      %v1369 = vunpack.c.h.b16 %v1265
      %v1370 = vunpack.c.l.b16 %v1266
      %v1371 = vunpack.c.h.b16 %v1266
      %v1372 = vunpack.c.l.b16 %v1267
      %v1373 = vunpack.c.h.b16 %v1267
      %v1374 = vunpack.c.l.b16 %v1268
      %v1375 = vunpack.c.h.b16 %v1268
      %v1376 = vunpack.c.l.b16 %v1269
      %v1377 = vunpack.c.h.b16 %v1269
      %v1378 = vunpack.c.l.b16 %v1270
      %v1379 = vunpack.c.h.b16 %v1270
      %v1380 = vunpack.c.l.b16 %v1271
      %v1381 = vunpack.c.h.b16 %v1271
      %v1382 = vunpack.c.l.b16 %v1272
      %v1383 = vunpack.c.h.b16 %v1272
      %v1384 = vunpack.c.l.b16 %v1273
      %v1385 = vunpack.c.h.b16 %v1273
      %v1386 = vunpack.c.l.b16 %v1274
      %v1387 = vunpack.c.h.b16 %v1274
      %v1388 = vunpack.c.l.b16 %v1275
      %v1389 = vunpack.c.h.b16 %v1275
      %v1390 = vunpack.c.l.b16 %v1276
      %v1391 = vunpack.c.h.b16 %v1276
      %v1392 = vunpack.c.l.b16 %v1277
      %v1393 = vunpack.c.h.b16 %v1277
      %v1394 = vunpack.c.l.b16 %v1278
      %v1395 = vunpack.c.h.b16 %v1278
      %v1396 = vunpack.c.l.b16 %v1279
      %v1397 = vunpack.c.h.b16 %v1279
      %v1398 = vunpack.c.l.b16 %v1280
      %v1399 = vunpack.c.h.b16 %v1280
      %v1400 = vunpack.c.l.b16 %v1281
      %v1401 = vunpack.c.h.b16 %v1281
      %v1402 = vunpack.c.l.b16 %v1282
      %v1403 = vunpack.c.h.b16 %v1282
      %v1404 = vunpack.c.l.b16 %v1283
      %v1405 = vunpack.c.h.b16 %v1283
      %v1406 = vunpack.c.l.b16 %v1284
      %v1407 = vunpack.c.h.b16 %v1284
      %v1408 = vunpack.c.l.b16 %v1285
      %v1409 = vunpack.c.h.b16 %v1285
      %v1410 = vunpack.c.l.b16 %v1286
      %v1411 = vunpack.c.h.b16 %v1286
      %v1412 = vunpack.c.l.b16 %v1287
      %v1413 = vunpack.c.h.b16 %v1287
      %v1414 = vunpack.c.l.b16 %v1288
      %v1415 = vunpack.c.h.b16 %v1288
      %v1416 = vunpack.c.l.b16 %v1289
      %v1417 = vunpack.c.h.b16 %v1289
      %v1418 = vunpack.c.l.b16 %v1290
      %v1419 = vunpack.c.h.b16 %v1290
      %v1420 = vpack.c.b16 %v1358, %v1356
      %v1421 = vpack.c.b16 %v1359, %v1357
      %v1422 = vpack.c.b16 %v1362, %v1360
      %v1423 = vpack.c.b16 %v1363, %v1361
      %v1424 = vpack.c.b16 %v1366, %v1364
      %v1425 = vpack.c.b16 %v1367, %v1365
      %v1426 = vpack.c.b16 %v1370, %v1368
      %v1427 = vpack.c.b16 %v1371, %v1369
      %v1428 = vpack.c.b16 %v1374, %v1372
      %v1429 = vpack.c.b16 %v1375, %v1373
      %v1430 = vpack.c.b16 %v1378, %v1376
      %v1431 = vpack.c.b16 %v1379, %v1377
      %v1432 = vpack.c.b16 %v1382, %v1380
      %v1433 = vpack.c.b16 %v1383, %v1381
      %v1434 = vpack.c.b16 %v1386, %v1384
      %v1435 = vpack.c.b16 %v1387, %v1385
      %v1436 = vpack.c.b16 %v1390, %v1388
      %v1437 = vpack.c.b16 %v1391, %v1389
      %v1438 = vpack.c.b16 %v1394, %v1392
      %v1439 = vpack.c.b16 %v1395, %v1393
      %v1440 = vpack.c.b16 %v1398, %v1396
      %v1441 = vpack.c.b16 %v1399, %v1397
      %v1442 = vpack.c.b16 %v1402, %v1400
      %v1443 = vpack.c.b16 %v1403, %v1401
      %v1444 = vpack.c.b16 %v1406, %v1404
      %v1445 = vpack.c.b16 %v1407, %v1405
      %v1446 = vpack.c.b16 %v1410, %v1408
      %v1447 = vpack.c.b16 %v1411, %v1409
      %v1448 = vpack.c.b16 %v1414, %v1412
      %v1449 = vpack.c.b16 %v1415, %v1413
      %v1450 = vpack.c.b16 %v1418, %v1416
      %v1451 = vpack.c.b16 %v1419, %v1417
      %v1516 = vunpack.c.l.b16 %v1292
      %v1517 = vunpack.c.l.b16 %v1293
      %v1518 = vunpack.c.l.b16 %v1294
      %v1519 = vunpack.c.l.b16 %v1295
      %v1520 = vunpack.c.l.b16 %v1296
      %v1521 = vunpack.c.l.b16 %v1297
      %v1522 = vunpack.c.l.b16 %v1298
      %v1523 = vunpack.c.l.b16 %v1299
      %v1524 = vunpack.c.l.b16 %v1300
      %v1525 = vunpack.c.l.b16 %v1301
      %v1526 = vunpack.c.l.b16 %v1302
      %v1527 = vunpack.c.l.b16 %v1303
      %v1528 = vunpack.c.l.b16 %v1304
      %v1529 = vunpack.c.l.b16 %v1305
      %v1530 = vunpack.c.l.b16 %v1306
      %v1531 = vunpack.c.l.b16 %v1307
      %v1532 = vunpack.c.l.b16 %v1308
      %v1533 = vunpack.c.l.b16 %v1309
      %v1534 = vunpack.c.l.b16 %v1310
      %v1535 = vunpack.c.l.b16 %v1311
      %v1536 = vunpack.c.l.b16 %v1312
      %v1537 = vunpack.c.l.b16 %v1313
      %v1538 = vunpack.c.l.b16 %v1314
      %v1539 = vunpack.c.l.b16 %v1315
      %v1540 = vunpack.c.l.b16 %v1316
      %v1541 = vunpack.c.l.b16 %v1317
      %v1542 = vunpack.c.l.b16 %v1318
      %v1543 = vunpack.c.l.b16 %v1319
      %v1544 = vunpack.c.l.b16 %v1320
      %v1545 = vunpack.c.l.b16 %v1321
      %v1546 = vunpack.c.l.b16 %v1322
      %v1547 = vunpack.c.l.b16 %v1323
      %v1548 = vpack.c.b16 %v1517, %v1516
      %v1549 = vpack.c.b16 %v1519, %v1518
      %v1550 = vpack.c.b16 %v1521, %v1520
      %v1551 = vpack.c.b16 %v1523, %v1522
      %v1552 = vpack.c.b16 %v1525, %v1524
      %v1553 = vpack.c.b16 %v1527, %v1526
      %v1554 = vpack.c.b16 %v1529, %v1528
      %v1555 = vpack.c.b16 %v1531, %v1530
      %v1556 = vpack.c.b16 %v1533, %v1532
      %v1557 = vpack.c.b16 %v1535, %v1534
      %v1558 = vpack.c.b16 %v1537, %v1536
      %v1559 = vpack.c.b16 %v1539, %v1538
      %v1560 = vpack.c.b16 %v1541, %v1540
      %v1561 = vpack.c.b16 %v1543, %v1542
      %v1562 = vpack.c.b16 %v1545, %v1544
      %v1563 = vpack.c.b16 %v1547, %v1546
      %1580 = vmatpush.bf16.msra.mxu0 %v1555
      %1581 = vmatpush.bf16.msra.mxu0 %v1554
      %1582 = vmatpush.bf16.msra.mxu0 %v1553
      %1583 = vmatpush.bf16.msra.mxu0 %v1552
      %1584 = vmatpush.bf16.msra.mxu0 %v1551
      %1585 = vmatpush.bf16.msra.mxu0 %v1550
      %1586 = vmatpush.bf16.msra.mxu0 %v1549
      %1587 = vmatpush.bf16.msra.mxu0 %v1548
      %1588 = vmatmul.bf16.gmra.mxu0 %v1420
      %v1589 = vpop.f32.mrf.mxu0
      %v1590 = vadd.f32 0.0, %v1589
      %v1591 = vpop.f32.mrf.mxu0
      %v1592 = vadd.f32 0.0, %v1591
      %1593 = vmatmul.bf16.gmra.mxu0 %v1422
      %v1594 = vpop.f32.mrf.mxu0
      %v1595 = vadd.f32 0.0, %v1594
      %v1596 = vpop.f32.mrf.mxu0
      %v1597 = vadd.f32 0.0, %v1596
      %1598 = vmatmul.bf16.gmra.mxu0 %v1424
      %v1599 = vpop.f32.mrf.mxu0
      %v1600 = vadd.f32 0.0, %v1599
      %v1601 = vpop.f32.mrf.mxu0
      %v1602 = vadd.f32 0.0, %v1601
      %1603 = vmatmul.bf16.gmra.mxu0 %v1426
      %v1604 = vpop.f32.mrf.mxu0
      %v1605 = vadd.f32 0.0, %v1604
      %v1606 = vpop.f32.mrf.mxu0
      %v1607 = vadd.f32 0.0, %v1606
      %1608 = vmatmul.bf16.gmra.mxu0 %v1428
      %v1609 = vpop.f32.mrf.mxu0
      %v1610 = vadd.f32 0.0, %v1609
      %v1611 = vpop.f32.mrf.mxu0
      %v1612 = vadd.f32 0.0, %v1611
      %1613 = vmatmul.bf16.gmra.mxu0 %v1430
      %v1614 = vpop.f32.mrf.mxu0
      %v1615 = vadd.f32 0.0, %v1614
      %v1616 = vpop.f32.mrf.mxu0
      %v1617 = vadd.f32 0.0, %v1616
      %1618 = vmatmul.bf16.gmra.mxu0 %v1432
      %v1619 = vpop.f32.mrf.mxu0
      %v1620 = vadd.f32 0.0, %v1619
      %v1621 = vpop.f32.mrf.mxu0
      %v1622 = vadd.f32 0.0, %v1621
      %1623 = vmatmul.bf16.gmra.mxu0 %v1434
      %v1624 = vpop.f32.mrf.mxu0
      %v1625 = vadd.f32 0.0, %v1624
      %v1626 = vpop.f32.mrf.mxu0
      %v1627 = vadd.f32 0.0, %v1626
      %1628 = vmatmul.bf16.gmra.mxu0 %v1436
      %v1629 = vpop.f32.mrf.mxu0
      %v1630 = vadd.f32 0.0, %v1629
      %v1631 = vpop.f32.mrf.mxu0
      %v1632 = vadd.f32 0.0, %v1631
      %1633 = vmatmul.bf16.gmra.mxu0 %v1438
      %v1634 = vpop.f32.mrf.mxu0
      %v1635 = vadd.f32 0.0, %v1634
      %v1636 = vpop.f32.mrf.mxu0
      %v1637 = vadd.f32 0.0, %v1636
      %1638 = vmatmul.bf16.gmra.mxu0 %v1440
      %v1639 = vpop.f32.mrf.mxu0
      %v1640 = vadd.f32 0.0, %v1639
      %v1641 = vpop.f32.mrf.mxu0
      %v1642 = vadd.f32 0.0, %v1641
      %1643 = vmatmul.bf16.gmra.mxu0 %v1442
      %v1644 = vpop.f32.mrf.mxu0
      %v1645 = vadd.f32 0.0, %v1644
      %v1646 = vpop.f32.mrf.mxu0
      %v1647 = vadd.f32 0.0, %v1646
      %1648 = vmatmul.bf16.gmra.mxu0 %v1444
      %v1649 = vpop.f32.mrf.mxu0
      %v1650 = vadd.f32 0.0, %v1649
      %v1651 = vpop.f32.mrf.mxu0
      %v1652 = vadd.f32 0.0, %v1651
      %1653 = vmatmul.bf16.gmra.mxu0 %v1446
      %v1654 = vpop.f32.mrf.mxu0
      %v1655 = vadd.f32 0.0, %v1654
      %v1656 = vpop.f32.mrf.mxu0
      %v1657 = vadd.f32 0.0, %v1656
      %1658 = vmatmul.bf16.gmra.mxu0 %v1448
      %v1659 = vpop.f32.mrf.mxu0
      %v1660 = vadd.f32 0.0, %v1659
      %v1661 = vpop.f32.mrf.mxu0
      %v1662 = vadd.f32 0.0, %v1661
      %1663 = vmatmul.bf16.gmra.mxu0 %v1450
      %v1664 = vpop.f32.mrf.mxu0
      %v1665 = vadd.f32 0.0, %v1664
      %v1666 = vpop.f32.mrf.mxu0
      %v1667 = vadd.f32 0.0, %v1666
      %1668 = vdwg.mxu0
      %1669 = vmatpush.bf16.msra.mxu0 %v1563
      %1670 = vmatpush.bf16.msra.mxu0 %v1562
      %1671 = vmatpush.bf16.msra.mxu0 %v1561
      %1672 = vmatpush.bf16.msra.mxu0 %v1560
      %1673 = vmatpush.bf16.msra.mxu0 %v1559
      %1674 = vmatpush.bf16.msra.mxu0 %v1558
      %1675 = vmatpush.bf16.msra.mxu0 %v1557
      %1676 = vmatpush.bf16.msra.mxu0 %v1556
      %1677 = vmatmul.bf16.gmra.mxu0 %v1421
      %v1678 = vpop.f32.mrf.mxu0
      %v1679 = vadd.f32 %v1590, %v1678
      %v1680 = vpop.f32.mrf.mxu0
      %v1681 = vadd.f32 %v1592, %v1680
      %1682 = vmatmul.bf16.gmra.mxu0 %v1423
      %v1683 = vpop.f32.mrf.mxu0
      %v1684 = vadd.f32 %v1595, %v1683
      %v1685 = vpop.f32.mrf.mxu0
      %v1686 = vadd.f32 %v1597, %v1685
      %1687 = vmatmul.bf16.gmra.mxu0 %v1425
      %v1688 = vpop.f32.mrf.mxu0
      %v1689 = vadd.f32 %v1600, %v1688
      %v1690 = vpop.f32.mrf.mxu0
      %v1691 = vadd.f32 %v1602, %v1690
      %1692 = vmatmul.bf16.gmra.mxu0 %v1427
      %v1693 = vpop.f32.mrf.mxu0
      %v1694 = vadd.f32 %v1605, %v1693
      %v1695 = vpop.f32.mrf.mxu0
      %v1696 = vadd.f32 %v1607, %v1695
      %1697 = vmatmul.bf16.gmra.mxu0 %v1429
      %v1698 = vpop.f32.mrf.mxu0
      %v1699 = vadd.f32 %v1610, %v1698
      %v1700 = vpop.f32.mrf.mxu0
      %v1701 = vadd.f32 %v1612, %v1700
      %1702 = vmatmul.bf16.gmra.mxu0 %v1431
      %v1703 = vpop.f32.mrf.mxu0
      %v1704 = vadd.f32 %v1615, %v1703
      %v1705 = vpop.f32.mrf.mxu0
      %v1706 = vadd.f32 %v1617, %v1705
      %1707 = vmatmul.bf16.gmra.mxu0 %v1433
      %v1708 = vpop.f32.mrf.mxu0
      %v1709 = vadd.f32 %v1620, %v1708
      %v1710 = vpop.f32.mrf.mxu0
      %v1711 = vadd.f32 %v1622, %v1710
      %1712 = vmatmul.bf16.gmra.mxu0 %v1435
      %v1713 = vpop.f32.mrf.mxu0
      %v1714 = vadd.f32 %v1625, %v1713
      %v1715 = vpop.f32.mrf.mxu0
      %v1716 = vadd.f32 %v1627, %v1715
      %1717 = vmatmul.bf16.gmra.mxu0 %v1437
      %v1718 = vpop.f32.mrf.mxu0
      %v1719 = vadd.f32 %v1630, %v1718
      %v1720 = vpop.f32.mrf.mxu0
      %v1721 = vadd.f32 %v1632, %v1720
      %1722 = vmatmul.bf16.gmra.mxu0 %v1439
      %v1723 = vpop.f32.mrf.mxu0
      %v1724 = vadd.f32 %v1635, %v1723
      %v1725 = vpop.f32.mrf.mxu0
      %v1726 = vadd.f32 %v1637, %v1725
      %1727 = vmatmul.bf16.gmra.mxu0 %v1441
      %v1728 = vpop.f32.mrf.mxu0
      %v1729 = vadd.f32 %v1640, %v1728
      %v1730 = vpop.f32.mrf.mxu0
      %v1731 = vadd.f32 %v1642, %v1730
      %1732 = vmatmul.bf16.gmra.mxu0 %v1443
      %v1733 = vpop.f32.mrf.mxu0
      %v1734 = vadd.f32 %v1645, %v1733
      %v1735 = vpop.f32.mrf.mxu0
      %v1736 = vadd.f32 %v1647, %v1735
      %1737 = vmatmul.bf16.gmra.mxu0 %v1445
      %v1738 = vpop.f32.mrf.mxu0
      %v1739 = vadd.f32 %v1650, %v1738
      %v1740 = vpop.f32.mrf.mxu0
      %v1741 = vadd.f32 %v1652, %v1740
      %1742 = vmatmul.bf16.gmra.mxu0 %v1447
      %v1743 = vpop.f32.mrf.mxu0
      %v1744 = vadd.f32 %v1655, %v1743
      %v1745 = vpop.f32.mrf.mxu0
      %v1746 = vadd.f32 %v1657, %v1745
      %1747 = vmatmul.bf16.gmra.mxu0 %v1449
      %v1748 = vpop.f32.mrf.mxu0
      %v1749 = vadd.f32 %v1660, %v1748
      %v1750 = vpop.f32.mrf.mxu0
      %v1751 = vadd.f32 %v1662, %v1750
      %1752 = vmatmul.bf16.gmra.mxu0 %v1451
      %v1753 = vpop.f32.mrf.mxu0
      %v1754 = vadd.f32 %v1665, %v1753
      %v1755 = vpop.f32.mrf.mxu0
      %v1756 = vadd.f32 %v1667, %v1755
      %1757 = vdwg.mxu0
      %v1758 = vadd.f32 %v1176, %v1679
      %v1759 = vadd.f32 %v1178, %v1681
      %v1760 = vadd.f32 %v1181, %v1684
      %v1761 = vadd.f32 %v1183, %v1686
      %v1762 = vadd.f32 %v1186, %v1689
      %v1763 = vadd.f32 %v1188, %v1691
      %v1764 = vadd.f32 %v1191, %v1694
      %v1765 = vadd.f32 %v1193, %v1696
      %v1766 = vadd.f32 %v1196, %v1699
      %v1767 = vadd.f32 %v1198, %v1701
      %v1768 = vadd.f32 %v1201, %v1704
      %v1769 = vadd.f32 %v1203, %v1706
      %v1770 = vadd.f32 %v1206, %v1709
      %v1771 = vadd.f32 %v1208, %v1711
      %v1772 = vadd.f32 %v1211, %v1714
      %v1773 = vadd.f32 %v1213, %v1716
      %v1774 = vadd.f32 %v1216, %v1719
      %v1775 = vadd.f32 %v1218, %v1721
      %v1776 = vadd.f32 %v1221, %v1724
      %v1777 = vadd.f32 %v1223, %v1726
      %v1778 = vadd.f32 %v1226, %v1729
      %v1779 = vadd.f32 %v1228, %v1731
      %v1780 = vadd.f32 %v1231, %v1734
      %v1781 = vadd.f32 %v1233, %v1736
      %v1782 = vadd.f32 %v1236, %v1739
      %v1783 = vadd.f32 %v1238, %v1741
      %v1784 = vadd.f32 %v1241, %v1744
      %v1785 = vadd.f32 %v1243, %v1746
      %v1786 = vadd.f32 %v1246, %v1749
      %v1787 = vadd.f32 %v1248, %v1751
      %v1788 = vadd.f32 %v1251, %v1754
      %v1789 = vadd.f32 %v1253, %v1756
      %s1790 = sadd.s32 %s250, 3
      %s1791 = smul.u32 %s1790, 16
      %s1792 = smul.addr %s1791, 4
      %s1793 = scalar_lea.vmem %s238, %s1792
      %v1794 = vld [vmem:[%s1793] sm:$0xff]
      %v1795 = vld [vmem:[%s1793 + $0x8] sm:$0xff]
      %v1796 = vld [vmem:[%s1793 + $0x10] sm:$0xff]
      %v1797 = vld [vmem:[%s1793 + $0x18] sm:$0xff]
      %v1798 = vld [vmem:[%s1793 + $0x20] sm:$0xff]
      %v1799 = vld [vmem:[%s1793 + $0x28] sm:$0xff]
      %v1800 = vld [vmem:[%s1793 + $0x30] sm:$0xff]
      %v1801 = vld [vmem:[%s1793 + $0x38] sm:$0xff]
      %v1802 = vld [vmem:[%s1793 + $0x40] sm:$0xff]
      %v1803 = vld [vmem:[%s1793 + $0x48] sm:$0xff]
      %v1804 = vld [vmem:[%s1793 + $0x50] sm:$0xff]
      %v1805 = vld [vmem:[%s1793 + $0x58] sm:$0xff]
      %v1806 = vld [vmem:[%s1793 + $0x60] sm:$0xff]
      %v1807 = vld [vmem:[%s1793 + $0x68] sm:$0xff]
      %v1808 = vld [vmem:[%s1793 + $0x70] sm:$0xff]
      %v1809 = vld [vmem:[%s1793 + $0x78] sm:$0xff]
      %v1810 = vld [vmem:[%s1793 + $0x80] sm:$0xff]
      %v1811 = vld [vmem:[%s1793 + $0x88] sm:$0xff]
      %v1812 = vld [vmem:[%s1793 + $0x90] sm:$0xff]
      %v1813 = vld [vmem:[%s1793 + $0x98] sm:$0xff]
      %v1814 = vld [vmem:[%s1793 + $0xa0] sm:$0xff]
      %v1815 = vld [vmem:[%s1793 + $0xa8] sm:$0xff]
      %v1816 = vld [vmem:[%s1793 + $0xb0] sm:$0xff]
      %v1817 = vld [vmem:[%s1793 + $0xb8] sm:$0xff]
      %v1818 = vld [vmem:[%s1793 + $0xc0] sm:$0xff]
      %v1819 = vld [vmem:[%s1793 + $0xc8] sm:$0xff]
      %v1820 = vld [vmem:[%s1793 + $0xd0] sm:$0xff]
      %v1821 = vld [vmem:[%s1793 + $0xd8] sm:$0xff]
      %v1822 = vld [vmem:[%s1793 + $0xe0] sm:$0xff]
      %v1823 = vld [vmem:[%s1793 + $0xe8] sm:$0xff]
      %v1824 = vld [vmem:[%s1793 + $0xf0] sm:$0xff]
      %v1825 = vld [vmem:[%s1793 + $0xf8] sm:$0xff]
      %s1826 = scalar_lea.vmem %s1, 384
      %v1827 = vld [vmem:[%s1826] sm:$0xf]
      %v1828 = vld [vmem:[%s1826 + $0x4] sm:$0xf]
      %v1829 = vld [vmem:[%s1826 + $0x8] sm:$0xf]
      %v1830 = vld [vmem:[%s1826 + $0xc] sm:$0xf]
      %v1831 = vld [vmem:[%s1826 + $0x10] sm:$0xf]
      %v1832 = vld [vmem:[%s1826 + $0x14] sm:$0xf]
      %v1833 = vld [vmem:[%s1826 + $0x18] sm:$0xf]
      %v1834 = vld [vmem:[%s1826 + $0x1c] sm:$0xf]
      %v1835 = vld [vmem:[%s1826 + $0x20] sm:$0xf]
      %v1836 = vld [vmem:[%s1826 + $0x24] sm:$0xf]
      %v1837 = vld [vmem:[%s1826 + $0x28] sm:$0xf]
      %v1838 = vld [vmem:[%s1826 + $0x2c] sm:$0xf]
      %v1839 = vld [vmem:[%s1826 + $0x30] sm:$0xf]
      %v1840 = vld [vmem:[%s1826 + $0x34] sm:$0xf]
      %v1841 = vld [vmem:[%s1826 + $0x38] sm:$0xf]
      %v1842 = vld [vmem:[%s1826 + $0x3c] sm:$0xf]
      %v1843 = vld [vmem:[%s1826 + $0x40] sm:$0xf]
      %v1844 = vld [vmem:[%s1826 + $0x44] sm:$0xf]
      %v1845 = vld [vmem:[%s1826 + $0x48] sm:$0xf]
      %v1846 = vld [vmem:[%s1826 + $0x4c] sm:$0xf]
      %v1847 = vld [vmem:[%s1826 + $0x50] sm:$0xf]
      %v1848 = vld [vmem:[%s1826 + $0x54] sm:$0xf]
      %v1849 = vld [vmem:[%s1826 + $0x58] sm:$0xf]
      %v1850 = vld [vmem:[%s1826 + $0x5c] sm:$0xf]
      %v1851 = vld [vmem:[%s1826 + $0x60] sm:$0xf]
      %v1852 = vld [vmem:[%s1826 + $0x64] sm:$0xf]
      %v1853 = vld [vmem:[%s1826 + $0x68] sm:$0xf]
      %v1854 = vld [vmem:[%s1826 + $0x6c] sm:$0xf]
      %v1855 = vld [vmem:[%s1826 + $0x70] sm:$0xf]
      %v1856 = vld [vmem:[%s1826 + $0x74] sm:$0xf]
      %v1857 = vld [vmem:[%s1826 + $0x78] sm:$0xf]
      %v1858 = vld [vmem:[%s1826 + $0x7c] sm:$0xf]
      %v1891 = vunpack.c.l.b16 %v1794
      %v1892 = vunpack.c.h.b16 %v1794
      %v1893 = vunpack.c.l.b16 %v1795
      %v1894 = vunpack.c.h.b16 %v1795
      %v1895 = vunpack.c.l.b16 %v1796
      %v1896 = vunpack.c.h.b16 %v1796
      %v1897 = vunpack.c.l.b16 %v1797
      %v1898 = vunpack.c.h.b16 %v1797
      %v1899 = vunpack.c.l.b16 %v1798
      %v1900 = vunpack.c.h.b16 %v1798
      %v1901 = vunpack.c.l.b16 %v1799
      %v1902 = vunpack.c.h.b16 %v1799
      %v1903 = vunpack.c.l.b16 %v1800
      %v1904 = vunpack.c.h.b16 %v1800
      %v1905 = vunpack.c.l.b16 %v1801
      %v1906 = vunpack.c.h.b16 %v1801
      %v1907 = vunpack.c.l.b16 %v1802
      %v1908 = vunpack.c.h.b16 %v1802
      %v1909 = vunpack.c.l.b16 %v1803
      %v1910 = vunpack.c.h.b16 %v1803
      %v1911 = vunpack.c.l.b16 %v1804
      %v1912 = vunpack.c.h.b16 %v1804
      %v1913 = vunpack.c.l.b16 %v1805
      %v1914 = vunpack.c.h.b16 %v1805
      %v1915 = vunpack.c.l.b16 %v1806
      %v1916 = vunpack.c.h.b16 %v1806
      %v1917 = vunpack.c.l.b16 %v1807
      %v1918 = vunpack.c.h.b16 %v1807
      %v1919 = vunpack.c.l.b16 %v1808
      %v1920 = vunpack.c.h.b16 %v1808
      %v1921 = vunpack.c.l.b16 %v1809
      %v1922 = vunpack.c.h.b16 %v1809
      %v1923 = vunpack.c.l.b16 %v1810
      %v1924 = vunpack.c.h.b16 %v1810
      %v1925 = vunpack.c.l.b16 %v1811
      %v1926 = vunpack.c.h.b16 %v1811
      %v1927 = vunpack.c.l.b16 %v1812
      %v1928 = vunpack.c.h.b16 %v1812
      %v1929 = vunpack.c.l.b16 %v1813
      %v1930 = vunpack.c.h.b16 %v1813
      %v1931 = vunpack.c.l.b16 %v1814
      %v1932 = vunpack.c.h.b16 %v1814
      %v1933 = vunpack.c.l.b16 %v1815
      %v1934 = vunpack.c.h.b16 %v1815
      %v1935 = vunpack.c.l.b16 %v1816
      %v1936 = vunpack.c.h.b16 %v1816
      %v1937 = vunpack.c.l.b16 %v1817
      %v1938 = vunpack.c.h.b16 %v1817
      %v1939 = vunpack.c.l.b16 %v1818
      %v1940 = vunpack.c.h.b16 %v1818
      %v1941 = vunpack.c.l.b16 %v1819
      %v1942 = vunpack.c.h.b16 %v1819
      %v1943 = vunpack.c.l.b16 %v1820
      %v1944 = vunpack.c.h.b16 %v1820
      %v1945 = vunpack.c.l.b16 %v1821
      %v1946 = vunpack.c.h.b16 %v1821
      %v1947 = vunpack.c.l.b16 %v1822
      %v1948 = vunpack.c.h.b16 %v1822
      %v1949 = vunpack.c.l.b16 %v1823
      %v1950 = vunpack.c.h.b16 %v1823
      %v1951 = vunpack.c.l.b16 %v1824
      %v1952 = vunpack.c.h.b16 %v1824
      %v1953 = vunpack.c.l.b16 %v1825
      %v1954 = vunpack.c.h.b16 %v1825
      %v1955 = vpack.c.b16 %v1893, %v1891
      %v1956 = vpack.c.b16 %v1894, %v1892
      %v1957 = vpack.c.b16 %v1897, %v1895
      %v1958 = vpack.c.b16 %v1898, %v1896
      %v1959 = vpack.c.b16 %v1901, %v1899
      %v1960 = vpack.c.b16 %v1902, %v1900
      %v1961 = vpack.c.b16 %v1905, %v1903
      %v1962 = vpack.c.b16 %v1906, %v1904
      %v1963 = vpack.c.b16 %v1909, %v1907
      %v1964 = vpack.c.b16 %v1910, %v1908
      %v1965 = vpack.c.b16 %v1913, %v1911
      %v1966 = vpack.c.b16 %v1914, %v1912
      %v1967 = vpack.c.b16 %v1917, %v1915
      %v1968 = vpack.c.b16 %v1918, %v1916
      %v1969 = vpack.c.b16 %v1921, %v1919
      %v1970 = vpack.c.b16 %v1922, %v1920
      %v1971 = vpack.c.b16 %v1925, %v1923
      %v1972 = vpack.c.b16 %v1926, %v1924
      %v1973 = vpack.c.b16 %v1929, %v1927
      %v1974 = vpack.c.b16 %v1930, %v1928
      %v1975 = vpack.c.b16 %v1933, %v1931
      %v1976 = vpack.c.b16 %v1934, %v1932
      %v1977 = vpack.c.b16 %v1937, %v1935
      %v1978 = vpack.c.b16 %v1938, %v1936
      %v1979 = vpack.c.b16 %v1941, %v1939
      %v1980 = vpack.c.b16 %v1942, %v1940
      %v1981 = vpack.c.b16 %v1945, %v1943
      %v1982 = vpack.c.b16 %v1946, %v1944
      %v1983 = vpack.c.b16 %v1949, %v1947
      %v1984 = vpack.c.b16 %v1950, %v1948
      %v1985 = vpack.c.b16 %v1953, %v1951
      %v1986 = vpack.c.b16 %v1954, %v1952
      %v2051 = vunpack.c.l.b16 %v1827
      %v2052 = vunpack.c.l.b16 %v1828
      %v2053 = vunpack.c.l.b16 %v1829
      %v2054 = vunpack.c.l.b16 %v1830
      %v2055 = vunpack.c.l.b16 %v1831
      %v2056 = vunpack.c.l.b16 %v1832
      %v2057 = vunpack.c.l.b16 %v1833
      %v2058 = vunpack.c.l.b16 %v1834
      %v2059 = vunpack.c.l.b16 %v1835
      %v2060 = vunpack.c.l.b16 %v1836
      %v2061 = vunpack.c.l.b16 %v1837
      %v2062 = vunpack.c.l.b16 %v1838
      %v2063 = vunpack.c.l.b16 %v1839
      %v2064 = vunpack.c.l.b16 %v1840
      %v2065 = vunpack.c.l.b16 %v1841
      %v2066 = vunpack.c.l.b16 %v1842
      %v2067 = vunpack.c.l.b16 %v1843
      %v2068 = vunpack.c.l.b16 %v1844
      %v2069 = vunpack.c.l.b16 %v1845
      %v2070 = vunpack.c.l.b16 %v1846
      %v2071 = vunpack.c.l.b16 %v1847
      %v2072 = vunpack.c.l.b16 %v1848
      %v2073 = vunpack.c.l.b16 %v1849
      %v2074 = vunpack.c.l.b16 %v1850
      %v2075 = vunpack.c.l.b16 %v1851
      %v2076 = vunpack.c.l.b16 %v1852
      %v2077 = vunpack.c.l.b16 %v1853
      %v2078 = vunpack.c.l.b16 %v1854
      %v2079 = vunpack.c.l.b16 %v1855
      %v2080 = vunpack.c.l.b16 %v1856
      %v2081 = vunpack.c.l.b16 %v1857
      %v2082 = vunpack.c.l.b16 %v1858
      %v2083 = vpack.c.b16 %v2052, %v2051
      %v2084 = vpack.c.b16 %v2054, %v2053
      %v2085 = vpack.c.b16 %v2056, %v2055
      %v2086 = vpack.c.b16 %v2058, %v2057
      %v2087 = vpack.c.b16 %v2060, %v2059
      %v2088 = vpack.c.b16 %v2062, %v2061
      %v2089 = vpack.c.b16 %v2064, %v2063
      %v2090 = vpack.c.b16 %v2066, %v2065
      %v2091 = vpack.c.b16 %v2068, %v2067
      %v2092 = vpack.c.b16 %v2070, %v2069
      %v2093 = vpack.c.b16 %v2072, %v2071
      %v2094 = vpack.c.b16 %v2074, %v2073
      %v2095 = vpack.c.b16 %v2076, %v2075
      %v2096 = vpack.c.b16 %v2078, %v2077
      %v2097 = vpack.c.b16 %v2080, %v2079
      %v2098 = vpack.c.b16 %v2082, %v2081
      %2115 = vmatpush.bf16.msra.mxu0 %v2090
      %2116 = vmatpush.bf16.msra.mxu0 %v2089
      %2117 = vmatpush.bf16.msra.mxu0 %v2088
      %2118 = vmatpush.bf16.msra.mxu0 %v2087
      %2119 = vmatpush.bf16.msra.mxu0 %v2086
      %2120 = vmatpush.bf16.msra.mxu0 %v2085
      %2121 = vmatpush.bf16.msra.mxu0 %v2084
      %2122 = vmatpush.bf16.msra.mxu0 %v2083
      %2123 = vmatmul.bf16.gmra.mxu0 %v1955
      %v2124 = vpop.f32.mrf.mxu0
      %v2125 = vadd.f32 0.0, %v2124
      %v2126 = vpop.f32.mrf.mxu0
      %v2127 = vadd.f32 0.0, %v2126
      %2128 = vmatmul.bf16.gmra.mxu0 %v1957
      %v2129 = vpop.f32.mrf.mxu0
      %v2130 = vadd.f32 0.0, %v2129
      %v2131 = vpop.f32.mrf.mxu0
      %v2132 = vadd.f32 0.0, %v2131
      %2133 = vmatmul.bf16.gmra.mxu0 %v1959
      %v2134 = vpop.f32.mrf.mxu0
      %v2135 = vadd.f32 0.0, %v2134
      %v2136 = vpop.f32.mrf.mxu0
      %v2137 = vadd.f32 0.0, %v2136
      %2138 = vmatmul.bf16.gmra.mxu0 %v1961
      %v2139 = vpop.f32.mrf.mxu0
      %v2140 = vadd.f32 0.0, %v2139
      %v2141 = vpop.f32.mrf.mxu0
      %v2142 = vadd.f32 0.0, %v2141
      %2143 = vmatmul.bf16.gmra.mxu0 %v1963
      %v2144 = vpop.f32.mrf.mxu0
      %v2145 = vadd.f32 0.0, %v2144
      %v2146 = vpop.f32.mrf.mxu0
      %v2147 = vadd.f32 0.0, %v2146
      %2148 = vmatmul.bf16.gmra.mxu0 %v1965
      %v2149 = vpop.f32.mrf.mxu0
      %v2150 = vadd.f32 0.0, %v2149
      %v2151 = vpop.f32.mrf.mxu0
      %v2152 = vadd.f32 0.0, %v2151
      %2153 = vmatmul.bf16.gmra.mxu0 %v1967
      %v2154 = vpop.f32.mrf.mxu0
      %v2155 = vadd.f32 0.0, %v2154
      %v2156 = vpop.f32.mrf.mxu0
      %v2157 = vadd.f32 0.0, %v2156
      %2158 = vmatmul.bf16.gmra.mxu0 %v1969
      %v2159 = vpop.f32.mrf.mxu0
      %v2160 = vadd.f32 0.0, %v2159
      %v2161 = vpop.f32.mrf.mxu0
      %v2162 = vadd.f32 0.0, %v2161
      %2163 = vmatmul.bf16.gmra.mxu0 %v1971
      %v2164 = vpop.f32.mrf.mxu0
      %v2165 = vadd.f32 0.0, %v2164
      %v2166 = vpop.f32.mrf.mxu0
      %v2167 = vadd.f32 0.0, %v2166
      %2168 = vmatmul.bf16.gmra.mxu0 %v1973
      %v2169 = vpop.f32.mrf.mxu0
      %v2170 = vadd.f32 0.0, %v2169
      %v2171 = vpop.f32.mrf.mxu0
      %v2172 = vadd.f32 0.0, %v2171
      %2173 = vmatmul.bf16.gmra.mxu0 %v1975
      %v2174 = vpop.f32.mrf.mxu0
      %v2175 = vadd.f32 0.0, %v2174
      %v2176 = vpop.f32.mrf.mxu0
      %v2177 = vadd.f32 0.0, %v2176
      %2178 = vmatmul.bf16.gmra.mxu0 %v1977
      %v2179 = vpop.f32.mrf.mxu0
      %v2180 = vadd.f32 0.0, %v2179
      %v2181 = vpop.f32.mrf.mxu0
      %v2182 = vadd.f32 0.0, %v2181
      %2183 = vmatmul.bf16.gmra.mxu0 %v1979
      %v2184 = vpop.f32.mrf.mxu0
      %v2185 = vadd.f32 0.0, %v2184
      %v2186 = vpop.f32.mrf.mxu0
      %v2187 = vadd.f32 0.0, %v2186
      %2188 = vmatmul.bf16.gmra.mxu0 %v1981
      %v2189 = vpop.f32.mrf.mxu0
      %v2190 = vadd.f32 0.0, %v2189
      %v2191 = vpop.f32.mrf.mxu0
      %v2192 = vadd.f32 0.0, %v2191
      %2193 = vmatmul.bf16.gmra.mxu0 %v1983
      %v2194 = vpop.f32.mrf.mxu0
      %v2195 = vadd.f32 0.0, %v2194
      %v2196 = vpop.f32.mrf.mxu0
      %v2197 = vadd.f32 0.0, %v2196
      %2198 = vmatmul.bf16.gmra.mxu0 %v1985
      %v2199 = vpop.f32.mrf.mxu0
      %v2200 = vadd.f32 0.0, %v2199
      %v2201 = vpop.f32.mrf.mxu0
      %v2202 = vadd.f32 0.0, %v2201
      %2203 = vdwg.mxu0
      %2204 = vmatpush.bf16.msra.mxu0 %v2098
      %2205 = vmatpush.bf16.msra.mxu0 %v2097
      %2206 = vmatpush.bf16.msra.mxu0 %v2096
      %2207 = vmatpush.bf16.msra.mxu0 %v2095
      %2208 = vmatpush.bf16.msra.mxu0 %v2094
      %2209 = vmatpush.bf16.msra.mxu0 %v2093
      %2210 = vmatpush.bf16.msra.mxu0 %v2092
      %2211 = vmatpush.bf16.msra.mxu0 %v2091
      %2212 = vmatmul.bf16.gmra.mxu0 %v1956
      %v2213 = vpop.f32.mrf.mxu0
      %v2214 = vadd.f32 %v2125, %v2213
      %v2215 = vpop.f32.mrf.mxu0
      %v2216 = vadd.f32 %v2127, %v2215
      %2217 = vmatmul.bf16.gmra.mxu0 %v1958
      %v2218 = vpop.f32.mrf.mxu0
      %v2219 = vadd.f32 %v2130, %v2218
      %v2220 = vpop.f32.mrf.mxu0
      %v2221 = vadd.f32 %v2132, %v2220
      %2222 = vmatmul.bf16.gmra.mxu0 %v1960
      %v2223 = vpop.f32.mrf.mxu0
      %v2224 = vadd.f32 %v2135, %v2223
      %v2225 = vpop.f32.mrf.mxu0
      %v2226 = vadd.f32 %v2137, %v2225
      %2227 = vmatmul.bf16.gmra.mxu0 %v1962
      %v2228 = vpop.f32.mrf.mxu0
      %v2229 = vadd.f32 %v2140, %v2228
      %v2230 = vpop.f32.mrf.mxu0
      %v2231 = vadd.f32 %v2142, %v2230
      %2232 = vmatmul.bf16.gmra.mxu0 %v1964
      %v2233 = vpop.f32.mrf.mxu0
      %v2234 = vadd.f32 %v2145, %v2233
      %v2235 = vpop.f32.mrf.mxu0
      %v2236 = vadd.f32 %v2147, %v2235
      %2237 = vmatmul.bf16.gmra.mxu0 %v1966
      %v2238 = vpop.f32.mrf.mxu0
      %v2239 = vadd.f32 %v2150, %v2238
      %v2240 = vpop.f32.mrf.mxu0
      %v2241 = vadd.f32 %v2152, %v2240
      %2242 = vmatmul.bf16.gmra.mxu0 %v1968
      %v2243 = vpop.f32.mrf.mxu0
      %v2244 = vadd.f32 %v2155, %v2243
      %v2245 = vpop.f32.mrf.mxu0
      %v2246 = vadd.f32 %v2157, %v2245
      %2247 = vmatmul.bf16.gmra.mxu0 %v1970
      %v2248 = vpop.f32.mrf.mxu0
      %v2249 = vadd.f32 %v2160, %v2248
      %v2250 = vpop.f32.mrf.mxu0
      %v2251 = vadd.f32 %v2162, %v2250
      %2252 = vmatmul.bf16.gmra.mxu0 %v1972
      %v2253 = vpop.f32.mrf.mxu0
      %v2254 = vadd.f32 %v2165, %v2253
      %v2255 = vpop.f32.mrf.mxu0
      %v2256 = vadd.f32 %v2167, %v2255
      %2257 = vmatmul.bf16.gmra.mxu0 %v1974
      %v2258 = vpop.f32.mrf.mxu0
      %v2259 = vadd.f32 %v2170, %v2258
      %v2260 = vpop.f32.mrf.mxu0
      %v2261 = vadd.f32 %v2172, %v2260
      %2262 = vmatmul.bf16.gmra.mxu0 %v1976
      %v2263 = vpop.f32.mrf.mxu0
      %v2264 = vadd.f32 %v2175, %v2263
      %v2265 = vpop.f32.mrf.mxu0
      %v2266 = vadd.f32 %v2177, %v2265
      %2267 = vmatmul.bf16.gmra.mxu0 %v1978
      %v2268 = vpop.f32.mrf.mxu0
      %v2269 = vadd.f32 %v2180, %v2268
      %v2270 = vpop.f32.mrf.mxu0
      %v2271 = vadd.f32 %v2182, %v2270
      %2272 = vmatmul.bf16.gmra.mxu0 %v1980
      %v2273 = vpop.f32.mrf.mxu0
      %v2274 = vadd.f32 %v2185, %v2273
      %v2275 = vpop.f32.mrf.mxu0
      %v2276 = vadd.f32 %v2187, %v2275
      %2277 = vmatmul.bf16.gmra.mxu0 %v1982
      %v2278 = vpop.f32.mrf.mxu0
      %v2279 = vadd.f32 %v2190, %v2278
      %v2280 = vpop.f32.mrf.mxu0
      %v2281 = vadd.f32 %v2192, %v2280
      %2282 = vmatmul.bf16.gmra.mxu0 %v1984
      %v2283 = vpop.f32.mrf.mxu0
      %v2284 = vadd.f32 %v2195, %v2283
      %v2285 = vpop.f32.mrf.mxu0
      %v2286 = vadd.f32 %v2197, %v2285
      %2287 = vmatmul.bf16.gmra.mxu0 %v1986
      %v2288 = vpop.f32.mrf.mxu0
      %v2289 = vadd.f32 %v2200, %v2288
      %v2290 = vpop.f32.mrf.mxu0
      %v2291 = vadd.f32 %v2202, %v2290
      %2292 = vdwg.mxu0
      %v2293 = vadd.f32 %v1758, %v2214
      %v2294 = vadd.f32 %v1759, %v2216
      %v2295 = vadd.f32 %v1760, %v2219
      %v2296 = vadd.f32 %v1761, %v2221
      %v2297 = vadd.f32 %v1762, %v2224
      %v2298 = vadd.f32 %v1763, %v2226
      %v2299 = vadd.f32 %v1764, %v2229
      %v2300 = vadd.f32 %v1765, %v2231
      %v2301 = vadd.f32 %v1766, %v2234
      %v2302 = vadd.f32 %v1767, %v2236
      %v2303 = vadd.f32 %v1768, %v2239
      %v2304 = vadd.f32 %v1769, %v2241
      %v2305 = vadd.f32 %v1770, %v2244
      %v2306 = vadd.f32 %v1771, %v2246
      %v2307 = vadd.f32 %v1772, %v2249
      %v2308 = vadd.f32 %v1773, %v2251
      %v2309 = vadd.f32 %v1774, %v2254
      %v2310 = vadd.f32 %v1775, %v2256
      %v2311 = vadd.f32 %v1776, %v2259
      %v2312 = vadd.f32 %v1777, %v2261
      %v2313 = vadd.f32 %v1778, %v2264
      %v2314 = vadd.f32 %v1779, %v2266
      %v2315 = vadd.f32 %v1780, %v2269
      %v2316 = vadd.f32 %v1781, %v2271
      %v2317 = vadd.f32 %v1782, %v2274
      %v2318 = vadd.f32 %v1783, %v2276
      %v2319 = vadd.f32 %v1784, %v2279
      %v2320 = vadd.f32 %v1785, %v2281
      %v2321 = vadd.f32 %v1786, %v2284
      %v2322 = vadd.f32 %v1787, %v2286
      %v2323 = vadd.f32 %v1788, %v2289
      %v2324 = vadd.f32 %v1789, %v2291
      %s2325 = sadd.s32 %s250, 4
      %s2326 = smul.u32 %s2325, 16
      %s2327 = smul.addr %s2326, 4
      %s2328 = scalar_lea.vmem %s238, %s2327
      %v2329 = vld [vmem:[%s2328] sm:$0xff]
      %v2330 = vld [vmem:[%s2328 + $0x8] sm:$0xff]
      %v2331 = vld [vmem:[%s2328 + $0x10] sm:$0xff]
      %v2332 = vld [vmem:[%s2328 + $0x18] sm:$0xff]
      %v2333 = vld [vmem:[%s2328 + $0x20] sm:$0xff]
      %v2334 = vld [vmem:[%s2328 + $0x28] sm:$0xff]
      %v2335 = vld [vmem:[%s2328 + $0x30] sm:$0xff]
      %v2336 = vld [vmem:[%s2328 + $0x38] sm:$0xff]
      %v2337 = vld [vmem:[%s2328 + $0x40] sm:$0xff]
      %v2338 = vld [vmem:[%s2328 + $0x48] sm:$0xff]
      %v2339 = vld [vmem:[%s2328 + $0x50] sm:$0xff]
      %v2340 = vld [vmem:[%s2328 + $0x58] sm:$0xff]
      %v2341 = vld [vmem:[%s2328 + $0x60] sm:$0xff]
      %v2342 = vld [vmem:[%s2328 + $0x68] sm:$0xff]
      %v2343 = vld [vmem:[%s2328 + $0x70] sm:$0xff]
      %v2344 = vld [vmem:[%s2328 + $0x78] sm:$0xff]
      %v2345 = vld [vmem:[%s2328 + $0x80] sm:$0xff]
      %v2346 = vld [vmem:[%s2328 + $0x88] sm:$0xff]
      %v2347 = vld [vmem:[%s2328 + $0x90] sm:$0xff]
      %v2348 = vld [vmem:[%s2328 + $0x98] sm:$0xff]
      %v2349 = vld [vmem:[%s2328 + $0xa0] sm:$0xff]
      %v2350 = vld [vmem:[%s2328 + $0xa8] sm:$0xff]
      %v2351 = vld [vmem:[%s2328 + $0xb0] sm:$0xff]
      %v2352 = vld [vmem:[%s2328 + $0xb8] sm:$0xff]
      %v2353 = vld [vmem:[%s2328 + $0xc0] sm:$0xff]
      %v2354 = vld [vmem:[%s2328 + $0xc8] sm:$0xff]
      %v2355 = vld [vmem:[%s2328 + $0xd0] sm:$0xff]
      %v2356 = vld [vmem:[%s2328 + $0xd8] sm:$0xff]
      %v2357 = vld [vmem:[%s2328 + $0xe0] sm:$0xff]
      %v2358 = vld [vmem:[%s2328 + $0xe8] sm:$0xff]
      %v2359 = vld [vmem:[%s2328 + $0xf0] sm:$0xff]
      %v2360 = vld [vmem:[%s2328 + $0xf8] sm:$0xff]
      %s2361 = scalar_lea.vmem %s1, 512
      %v2362 = vld [vmem:[%s2361] sm:$0xf]
      %v2363 = vld [vmem:[%s2361 + $0x4] sm:$0xf]
      %v2364 = vld [vmem:[%s2361 + $0x8] sm:$0xf]
      %v2365 = vld [vmem:[%s2361 + $0xc] sm:$0xf]
      %v2366 = vld [vmem:[%s2361 + $0x10] sm:$0xf]
      %v2367 = vld [vmem:[%s2361 + $0x14] sm:$0xf]
      %v2368 = vld [vmem:[%s2361 + $0x18] sm:$0xf]
      %v2369 = vld [vmem:[%s2361 + $0x1c] sm:$0xf]
      %v2370 = vld [vmem:[%s2361 + $0x20] sm:$0xf]
      %v2371 = vld [vmem:[%s2361 + $0x24] sm:$0xf]
      %v2372 = vld [vmem:[%s2361 + $0x28] sm:$0xf]
      %v2373 = vld [vmem:[%s2361 + $0x2c] sm:$0xf]
      %v2374 = vld [vmem:[%s2361 + $0x30] sm:$0xf]
      %v2375 = vld [vmem:[%s2361 + $0x34] sm:$0xf]
      %v2376 = vld [vmem:[%s2361 + $0x38] sm:$0xf]
      %v2377 = vld [vmem:[%s2361 + $0x3c] sm:$0xf]
      %v2378 = vld [vmem:[%s2361 + $0x40] sm:$0xf]
      %v2379 = vld [vmem:[%s2361 + $0x44] sm:$0xf]
      %v2380 = vld [vmem:[%s2361 + $0x48] sm:$0xf]
      %v2381 = vld [vmem:[%s2361 + $0x4c] sm:$0xf]
      %v2382 = vld [vmem:[%s2361 + $0x50] sm:$0xf]
      %v2383 = vld [vmem:[%s2361 + $0x54] sm:$0xf]
      %v2384 = vld [vmem:[%s2361 + $0x58] sm:$0xf]
      %v2385 = vld [vmem:[%s2361 + $0x5c] sm:$0xf]
      %v2386 = vld [vmem:[%s2361 + $0x60] sm:$0xf]
      %v2387 = vld [vmem:[%s2361 + $0x64] sm:$0xf]
      %v2388 = vld [vmem:[%s2361 + $0x68] sm:$0xf]
      %v2389 = vld [vmem:[%s2361 + $0x6c] sm:$0xf]
      %v2390 = vld [vmem:[%s2361 + $0x70] sm:$0xf]
      %v2391 = vld [vmem:[%s2361 + $0x74] sm:$0xf]
      %v2392 = vld [vmem:[%s2361 + $0x78] sm:$0xf]
      %v2393 = vld [vmem:[%s2361 + $0x7c] sm:$0xf]
      %v2426 = vunpack.c.l.b16 %v2329
      %v2427 = vunpack.c.h.b16 %v2329
      %v2428 = vunpack.c.l.b16 %v2330
      %v2429 = vunpack.c.h.b16 %v2330
      %v2430 = vunpack.c.l.b16 %v2331
      %v2431 = vunpack.c.h.b16 %v2331
      %v2432 = vunpack.c.l.b16 %v2332
      %v2433 = vunpack.c.h.b16 %v2332
      %v2434 = vunpack.c.l.b16 %v2333
      %v2435 = vunpack.c.h.b16 %v2333
      %v2436 = vunpack.c.l.b16 %v2334
      %v2437 = vunpack.c.h.b16 %v2334
      %v2438 = vunpack.c.l.b16 %v2335
      %v2439 = vunpack.c.h.b16 %v2335
      %v2440 = vunpack.c.l.b16 %v2336
      %v2441 = vunpack.c.h.b16 %v2336
      %v2442 = vunpack.c.l.b16 %v2337
      %v2443 = vunpack.c.h.b16 %v2337
      %v2444 = vunpack.c.l.b16 %v2338
      %v2445 = vunpack.c.h.b16 %v2338
      %v2446 = vunpack.c.l.b16 %v2339
      %v2447 = vunpack.c.h.b16 %v2339
      %v2448 = vunpack.c.l.b16 %v2340
      %v2449 = vunpack.c.h.b16 %v2340
      %v2450 = vunpack.c.l.b16 %v2341
      %v2451 = vunpack.c.h.b16 %v2341
      %v2452 = vunpack.c.l.b16 %v2342
      %v2453 = vunpack.c.h.b16 %v2342
      %v2454 = vunpack.c.l.b16 %v2343
      %v2455 = vunpack.c.h.b16 %v2343
      %v2456 = vunpack.c.l.b16 %v2344
      %v2457 = vunpack.c.h.b16 %v2344
      %v2458 = vunpack.c.l.b16 %v2345
      %v2459 = vunpack.c.h.b16 %v2345
      %v2460 = vunpack.c.l.b16 %v2346
      %v2461 = vunpack.c.h.b16 %v2346
      %v2462 = vunpack.c.l.b16 %v2347
      %v2463 = vunpack.c.h.b16 %v2347
      %v2464 = vunpack.c.l.b16 %v2348
      %v2465 = vunpack.c.h.b16 %v2348
      %v2466 = vunpack.c.l.b16 %v2349
      %v2467 = vunpack.c.h.b16 %v2349
      %v2468 = vunpack.c.l.b16 %v2350
      %v2469 = vunpack.c.h.b16 %v2350
      %v2470 = vunpack.c.l.b16 %v2351
      %v2471 = vunpack.c.h.b16 %v2351
      %v2472 = vunpack.c.l.b16 %v2352
      %v2473 = vunpack.c.h.b16 %v2352
      %v2474 = vunpack.c.l.b16 %v2353
      %v2475 = vunpack.c.h.b16 %v2353
      %v2476 = vunpack.c.l.b16 %v2354
      %v2477 = vunpack.c.h.b16 %v2354
      %v2478 = vunpack.c.l.b16 %v2355
      %v2479 = vunpack.c.h.b16 %v2355
      %v2480 = vunpack.c.l.b16 %v2356
      %v2481 = vunpack.c.h.b16 %v2356
      %v2482 = vunpack.c.l.b16 %v2357
      %v2483 = vunpack.c.h.b16 %v2357
      %v2484 = vunpack.c.l.b16 %v2358
      %v2485 = vunpack.c.h.b16 %v2358
      %v2486 = vunpack.c.l.b16 %v2359
      %v2487 = vunpack.c.h.b16 %v2359
      %v2488 = vunpack.c.l.b16 %v2360
      %v2489 = vunpack.c.h.b16 %v2360
      %v2490 = vpack.c.b16 %v2428, %v2426
      %v2491 = vpack.c.b16 %v2429, %v2427
      %v2492 = vpack.c.b16 %v2432, %v2430
      %v2493 = vpack.c.b16 %v2433, %v2431
      %v2494 = vpack.c.b16 %v2436, %v2434
      %v2495 = vpack.c.b16 %v2437, %v2435
      %v2496 = vpack.c.b16 %v2440, %v2438
      %v2497 = vpack.c.b16 %v2441, %v2439
      %v2498 = vpack.c.b16 %v2444, %v2442
      %v2499 = vpack.c.b16 %v2445, %v2443
      %v2500 = vpack.c.b16 %v2448, %v2446
      %v2501 = vpack.c.b16 %v2449, %v2447
      %v2502 = vpack.c.b16 %v2452, %v2450
      %v2503 = vpack.c.b16 %v2453, %v2451
      %v2504 = vpack.c.b16 %v2456, %v2454
      %v2505 = vpack.c.b16 %v2457, %v2455
      %v2506 = vpack.c.b16 %v2460, %v2458
      %v2507 = vpack.c.b16 %v2461, %v2459
      %v2508 = vpack.c.b16 %v2464, %v2462
      %v2509 = vpack.c.b16 %v2465, %v2463
      %v2510 = vpack.c.b16 %v2468, %v2466
      %v2511 = vpack.c.b16 %v2469, %v2467
      %v2512 = vpack.c.b16 %v2472, %v2470
      %v2513 = vpack.c.b16 %v2473, %v2471
      %v2514 = vpack.c.b16 %v2476, %v2474
      %v2515 = vpack.c.b16 %v2477, %v2475
      %v2516 = vpack.c.b16 %v2480, %v2478
      %v2517 = vpack.c.b16 %v2481, %v2479
      %v2518 = vpack.c.b16 %v2484, %v2482
      %v2519 = vpack.c.b16 %v2485, %v2483
      %v2520 = vpack.c.b16 %v2488, %v2486
      %v2521 = vpack.c.b16 %v2489, %v2487
      %v2586 = vunpack.c.l.b16 %v2362
      %v2587 = vunpack.c.l.b16 %v2363
      %v2588 = vunpack.c.l.b16 %v2364
      %v2589 = vunpack.c.l.b16 %v2365
      %v2590 = vunpack.c.l.b16 %v2366
      %v2591 = vunpack.c.l.b16 %v2367
      %v2592 = vunpack.c.l.b16 %v2368
      %v2593 = vunpack.c.l.b16 %v2369
      %v2594 = vunpack.c.l.b16 %v2370
      %v2595 = vunpack.c.l.b16 %v2371
      %v2596 = vunpack.c.l.b16 %v2372
      %v2597 = vunpack.c.l.b16 %v2373
      %v2598 = vunpack.c.l.b16 %v2374
      %v2599 = vunpack.c.l.b16 %v2375
      %v2600 = vunpack.c.l.b16 %v2376
      %v2601 = vunpack.c.l.b16 %v2377
      %v2602 = vunpack.c.l.b16 %v2378
      %v2603 = vunpack.c.l.b16 %v2379
      %v2604 = vunpack.c.l.b16 %v2380
      %v2605 = vunpack.c.l.b16 %v2381
      %v2606 = vunpack.c.l.b16 %v2382
      %v2607 = vunpack.c.l.b16 %v2383
      %v2608 = vunpack.c.l.b16 %v2384
      %v2609 = vunpack.c.l.b16 %v2385
      %v2610 = vunpack.c.l.b16 %v2386
      %v2611 = vunpack.c.l.b16 %v2387
      %v2612 = vunpack.c.l.b16 %v2388
      %v2613 = vunpack.c.l.b16 %v2389
      %v2614 = vunpack.c.l.b16 %v2390
      %v2615 = vunpack.c.l.b16 %v2391
      %v2616 = vunpack.c.l.b16 %v2392
      %v2617 = vunpack.c.l.b16 %v2393
      %v2618 = vpack.c.b16 %v2587, %v2586
      %v2619 = vpack.c.b16 %v2589, %v2588
      %v2620 = vpack.c.b16 %v2591, %v2590
      %v2621 = vpack.c.b16 %v2593, %v2592
      %v2622 = vpack.c.b16 %v2595, %v2594
      %v2623 = vpack.c.b16 %v2597, %v2596
      %v2624 = vpack.c.b16 %v2599, %v2598
      %v2625 = vpack.c.b16 %v2601, %v2600
      %v2626 = vpack.c.b16 %v2603, %v2602
      %v2627 = vpack.c.b16 %v2605, %v2604
      %v2628 = vpack.c.b16 %v2607, %v2606
      %v2629 = vpack.c.b16 %v2609, %v2608
      %v2630 = vpack.c.b16 %v2611, %v2610
      %v2631 = vpack.c.b16 %v2613, %v2612
      %v2632 = vpack.c.b16 %v2615, %v2614
      %v2633 = vpack.c.b16 %v2617, %v2616
      %2650 = vmatpush.bf16.msra.mxu0 %v2625
      %2651 = vmatpush.bf16.msra.mxu0 %v2624
      %2652 = vmatpush.bf16.msra.mxu0 %v2623
      %2653 = vmatpush.bf16.msra.mxu0 %v2622
      %2654 = vmatpush.bf16.msra.mxu0 %v2621
      %2655 = vmatpush.bf16.msra.mxu0 %v2620
      %2656 = vmatpush.bf16.msra.mxu0 %v2619
      %2657 = vmatpush.bf16.msra.mxu0 %v2618
      %2658 = vmatmul.bf16.gmra.mxu0 %v2490
      %v2659 = vpop.f32.mrf.mxu0
      %v2660 = vadd.f32 0.0, %v2659
      %v2661 = vpop.f32.mrf.mxu0
      %v2662 = vadd.f32 0.0, %v2661
      %2663 = vmatmul.bf16.gmra.mxu0 %v2492
      %v2664 = vpop.f32.mrf.mxu0
      %v2665 = vadd.f32 0.0, %v2664
      %v2666 = vpop.f32.mrf.mxu0
      %v2667 = vadd.f32 0.0, %v2666
      %2668 = vmatmul.bf16.gmra.mxu0 %v2494
      %v2669 = vpop.f32.mrf.mxu0
      %v2670 = vadd.f32 0.0, %v2669
      %v2671 = vpop.f32.mrf.mxu0
      %v2672 = vadd.f32 0.0, %v2671
      %2673 = vmatmul.bf16.gmra.mxu0 %v2496
      %v2674 = vpop.f32.mrf.mxu0
      %v2675 = vadd.f32 0.0, %v2674
      %v2676 = vpop.f32.mrf.mxu0
      %v2677 = vadd.f32 0.0, %v2676
      %2678 = vmatmul.bf16.gmra.mxu0 %v2498
      %v2679 = vpop.f32.mrf.mxu0
      %v2680 = vadd.f32 0.0, %v2679
      %v2681 = vpop.f32.mrf.mxu0
      %v2682 = vadd.f32 0.0, %v2681
      %2683 = vmatmul.bf16.gmra.mxu0 %v2500
      %v2684 = vpop.f32.mrf.mxu0
      %v2685 = vadd.f32 0.0, %v2684
      %v2686 = vpop.f32.mrf.mxu0
      %v2687 = vadd.f32 0.0, %v2686
      %2688 = vmatmul.bf16.gmra.mxu0 %v2502
      %v2689 = vpop.f32.mrf.mxu0
      %v2690 = vadd.f32 0.0, %v2689
      %v2691 = vpop.f32.mrf.mxu0
      %v2692 = vadd.f32 0.0, %v2691
      %2693 = vmatmul.bf16.gmra.mxu0 %v2504
      %v2694 = vpop.f32.mrf.mxu0
      %v2695 = vadd.f32 0.0, %v2694
      %v2696 = vpop.f32.mrf.mxu0
      %v2697 = vadd.f32 0.0, %v2696
      %2698 = vmatmul.bf16.gmra.mxu0 %v2506
      %v2699 = vpop.f32.mrf.mxu0
      %v2700 = vadd.f32 0.0, %v2699
      %v2701 = vpop.f32.mrf.mxu0
      %v2702 = vadd.f32 0.0, %v2701
      %2703 = vmatmul.bf16.gmra.mxu0 %v2508
      %v2704 = vpop.f32.mrf.mxu0
      %v2705 = vadd.f32 0.0, %v2704
      %v2706 = vpop.f32.mrf.mxu0
      %v2707 = vadd.f32 0.0, %v2706
      %2708 = vmatmul.bf16.gmra.mxu0 %v2510
      %v2709 = vpop.f32.mrf.mxu0
      %v2710 = vadd.f32 0.0, %v2709
      %v2711 = vpop.f32.mrf.mxu0
      %v2712 = vadd.f32 0.0, %v2711
      %2713 = vmatmul.bf16.gmra.mxu0 %v2512
      %v2714 = vpop.f32.mrf.mxu0
      %v2715 = vadd.f32 0.0, %v2714
      %v2716 = vpop.f32.mrf.mxu0
      %v2717 = vadd.f32 0.0, %v2716
      %2718 = vmatmul.bf16.gmra.mxu0 %v2514
      %v2719 = vpop.f32.mrf.mxu0
      %v2720 = vadd.f32 0.0, %v2719
      %v2721 = vpop.f32.mrf.mxu0
      %v2722 = vadd.f32 0.0, %v2721
      %2723 = vmatmul.bf16.gmra.mxu0 %v2516
      %v2724 = vpop.f32.mrf.mxu0
      %v2725 = vadd.f32 0.0, %v2724
      %v2726 = vpop.f32.mrf.mxu0
      %v2727 = vadd.f32 0.0, %v2726
      %2728 = vmatmul.bf16.gmra.mxu0 %v2518
      %v2729 = vpop.f32.mrf.mxu0
      %v2730 = vadd.f32 0.0, %v2729
      %v2731 = vpop.f32.mrf.mxu0
      %v2732 = vadd.f32 0.0, %v2731
      %2733 = vmatmul.bf16.gmra.mxu0 %v2520
      %v2734 = vpop.f32.mrf.mxu0
      %v2735 = vadd.f32 0.0, %v2734
      %v2736 = vpop.f32.mrf.mxu0
      %v2737 = vadd.f32 0.0, %v2736
      %2738 = vdwg.mxu0
      %2739 = vmatpush.bf16.msra.mxu0 %v2633
      %2740 = vmatpush.bf16.msra.mxu0 %v2632
      %2741 = vmatpush.bf16.msra.mxu0 %v2631
      %2742 = vmatpush.bf16.msra.mxu0 %v2630
      %2743 = vmatpush.bf16.msra.mxu0 %v2629
      %2744 = vmatpush.bf16.msra.mxu0 %v2628
      %2745 = vmatpush.bf16.msra.mxu0 %v2627
      %2746 = vmatpush.bf16.msra.mxu0 %v2626
      %2747 = vmatmul.bf16.gmra.mxu0 %v2491
      %v2748 = vpop.f32.mrf.mxu0
      %v2749 = vadd.f32 %v2660, %v2748
      %v2750 = vpop.f32.mrf.mxu0
      %v2751 = vadd.f32 %v2662, %v2750
      %2752 = vmatmul.bf16.gmra.mxu0 %v2493
      %v2753 = vpop.f32.mrf.mxu0
      %v2754 = vadd.f32 %v2665, %v2753
      %v2755 = vpop.f32.mrf.mxu0
      %v2756 = vadd.f32 %v2667, %v2755
      %2757 = vmatmul.bf16.gmra.mxu0 %v2495
      %v2758 = vpop.f32.mrf.mxu0
      %v2759 = vadd.f32 %v2670, %v2758
      %v2760 = vpop.f32.mrf.mxu0
      %v2761 = vadd.f32 %v2672, %v2760
      %2762 = vmatmul.bf16.gmra.mxu0 %v2497
      %v2763 = vpop.f32.mrf.mxu0
      %v2764 = vadd.f32 %v2675, %v2763
      %v2765 = vpop.f32.mrf.mxu0
      %v2766 = vadd.f32 %v2677, %v2765
      %2767 = vmatmul.bf16.gmra.mxu0 %v2499
      %v2768 = vpop.f32.mrf.mxu0
      %v2769 = vadd.f32 %v2680, %v2768
      %v2770 = vpop.f32.mrf.mxu0
      %v2771 = vadd.f32 %v2682, %v2770
      %2772 = vmatmul.bf16.gmra.mxu0 %v2501
      %v2773 = vpop.f32.mrf.mxu0
      %v2774 = vadd.f32 %v2685, %v2773
      %v2775 = vpop.f32.mrf.mxu0
      %v2776 = vadd.f32 %v2687, %v2775
      %2777 = vmatmul.bf16.gmra.mxu0 %v2503
      %v2778 = vpop.f32.mrf.mxu0
      %v2779 = vadd.f32 %v2690, %v2778
      %v2780 = vpop.f32.mrf.mxu0
      %v2781 = vadd.f32 %v2692, %v2780
      %2782 = vmatmul.bf16.gmra.mxu0 %v2505
      %v2783 = vpop.f32.mrf.mxu0
      %v2784 = vadd.f32 %v2695, %v2783
      %v2785 = vpop.f32.mrf.mxu0
      %v2786 = vadd.f32 %v2697, %v2785
      %2787 = vmatmul.bf16.gmra.mxu0 %v2507
      %v2788 = vpop.f32.mrf.mxu0
      %v2789 = vadd.f32 %v2700, %v2788
      %v2790 = vpop.f32.mrf.mxu0
      %v2791 = vadd.f32 %v2702, %v2790
      %2792 = vmatmul.bf16.gmra.mxu0 %v2509
      %v2793 = vpop.f32.mrf.mxu0
      %v2794 = vadd.f32 %v2705, %v2793
      %v2795 = vpop.f32.mrf.mxu0
      %v2796 = vadd.f32 %v2707, %v2795
      %2797 = vmatmul.bf16.gmra.mxu0 %v2511
      %v2798 = vpop.f32.mrf.mxu0
      %v2799 = vadd.f32 %v2710, %v2798
      %v2800 = vpop.f32.mrf.mxu0
      %v2801 = vadd.f32 %v2712, %v2800
      %2802 = vmatmul.bf16.gmra.mxu0 %v2513
      %v2803 = vpop.f32.mrf.mxu0
      %v2804 = vadd.f32 %v2715, %v2803
      %v2805 = vpop.f32.mrf.mxu0
      %v2806 = vadd.f32 %v2717, %v2805
      %2807 = vmatmul.bf16.gmra.mxu0 %v2515
      %v2808 = vpop.f32.mrf.mxu0
      %v2809 = vadd.f32 %v2720, %v2808
      %v2810 = vpop.f32.mrf.mxu0
      %v2811 = vadd.f32 %v2722, %v2810
      %2812 = vmatmul.bf16.gmra.mxu0 %v2517
      %v2813 = vpop.f32.mrf.mxu0
      %v2814 = vadd.f32 %v2725, %v2813
      %v2815 = vpop.f32.mrf.mxu0
      %v2816 = vadd.f32 %v2727, %v2815
      %2817 = vmatmul.bf16.gmra.mxu0 %v2519
      %v2818 = vpop.f32.mrf.mxu0
      %v2819 = vadd.f32 %v2730, %v2818
      %v2820 = vpop.f32.mrf.mxu0
      %v2821 = vadd.f32 %v2732, %v2820
      %2822 = vmatmul.bf16.gmra.mxu0 %v2521
      %v2823 = vpop.f32.mrf.mxu0
      %v2824 = vadd.f32 %v2735, %v2823
      %v2825 = vpop.f32.mrf.mxu0
      %v2826 = vadd.f32 %v2737, %v2825
      %2827 = vdwg.mxu0
      %v2828 = vadd.f32 %v2293, %v2749
      %v2829 = vadd.f32 %v2294, %v2751
      %v2830 = vadd.f32 %v2295, %v2754
      %v2831 = vadd.f32 %v2296, %v2756
      %v2832 = vadd.f32 %v2297, %v2759
      %v2833 = vadd.f32 %v2298, %v2761
      %v2834 = vadd.f32 %v2299, %v2764
      %v2835 = vadd.f32 %v2300, %v2766
      %v2836 = vadd.f32 %v2301, %v2769
      %v2837 = vadd.f32 %v2302, %v2771
      %v2838 = vadd.f32 %v2303, %v2774
      %v2839 = vadd.f32 %v2304, %v2776
      %v2840 = vadd.f32 %v2305, %v2779
      %v2841 = vadd.f32 %v2306, %v2781
      %v2842 = vadd.f32 %v2307, %v2784
      %v2843 = vadd.f32 %v2308, %v2786
      %v2844 = vadd.f32 %v2309, %v2789
      %v2845 = vadd.f32 %v2310, %v2791
      %v2846 = vadd.f32 %v2311, %v2794
      %v2847 = vadd.f32 %v2312, %v2796
      %v2848 = vadd.f32 %v2313, %v2799
      %v2849 = vadd.f32 %v2314, %v2801
      %v2850 = vadd.f32 %v2315, %v2804
      %v2851 = vadd.f32 %v2316, %v2806
      %v2852 = vadd.f32 %v2317, %v2809
      %v2853 = vadd.f32 %v2318, %v2811
      %v2854 = vadd.f32 %v2319, %v2814
      %v2855 = vadd.f32 %v2320, %v2816
      %v2856 = vadd.f32 %v2321, %v2819
      %v2857 = vadd.f32 %v2322, %v2821
      %v2858 = vadd.f32 %v2323, %v2824
      %v2859 = vadd.f32 %v2324, %v2826
      %v2860 = vld [vmem:[%s2] sm:$0x1]
      %v2862 = vperm.slane %v2860, 0
      %v2864 = vmul.f32 %v2828, %v2862
      %v2865 = vmul.f32 %v2829, %v2862
      %v2866 = vmul.f32 %v2830, %v2862
      %v2867 = vmul.f32 %v2831, %v2862
      %v2868 = vmul.f32 %v2832, %v2862
      %v2869 = vmul.f32 %v2833, %v2862
      %v2870 = vmul.f32 %v2834, %v2862
      %v2871 = vmul.f32 %v2835, %v2862
      %v2872 = vmul.f32 %v2836, %v2862
      %v2873 = vmul.f32 %v2837, %v2862
      %v2874 = vmul.f32 %v2838, %v2862
      %v2875 = vmul.f32 %v2839, %v2862
      %v2876 = vmul.f32 %v2840, %v2862
      %v2877 = vmul.f32 %v2841, %v2862
      %v2878 = vmul.f32 %v2842, %v2862
      %v2879 = vmul.f32 %v2843, %v2862
      %v2880 = vmul.f32 %v2844, %v2862
      %v2881 = vmul.f32 %v2845, %v2862
      %v2882 = vmul.f32 %v2846, %v2862
      %v2883 = vmul.f32 %v2847, %v2862
      %v2884 = vmul.f32 %v2848, %v2862
      %v2885 = vmul.f32 %v2849, %v2862
      %v2886 = vmul.f32 %v2850, %v2862
      %v2887 = vmul.f32 %v2851, %v2862
      %v2888 = vmul.f32 %v2852, %v2862
      %v2889 = vmul.f32 %v2853, %v2862
      %v2890 = vmul.f32 %v2854, %v2862
      %v2891 = vmul.f32 %v2855, %v2862
      %v2892 = vmul.f32 %v2856, %v2862
      %v2893 = vmul.f32 %v2857, %v2862
      %v2894 = vmul.f32 %v2858, %v2862
      %v2895 = vmul.f32 %v2859, %v2862
      %v2896 = vld [vmem:[%s3] sm:$0x1]
      %v2898 = vperm.slane %v2896, 0
      %v2900 = vadd.f32 %v2864, %v2898
      %v2901 = vadd.f32 %v2865, %v2898
      %v2902 = vadd.f32 %v2866, %v2898
      %v2903 = vadd.f32 %v2867, %v2898
      %v2904 = vadd.f32 %v2868, %v2898
      %v2905 = vadd.f32 %v2869, %v2898
      %v2906 = vadd.f32 %v2870, %v2898
      %v2907 = vadd.f32 %v2871, %v2898
      %v2908 = vadd.f32 %v2872, %v2898
      %v2909 = vadd.f32 %v2873, %v2898
      %v2910 = vadd.f32 %v2874, %v2898
      %v2911 = vadd.f32 %v2875, %v2898
      %v2912 = vadd.f32 %v2876, %v2898
      %v2913 = vadd.f32 %v2877, %v2898
      %v2914 = vadd.f32 %v2878, %v2898
      %v2915 = vadd.f32 %v2879, %v2898
      %v2916 = vadd.f32 %v2880, %v2898
      %v2917 = vadd.f32 %v2881, %v2898
      %v2918 = vadd.f32 %v2882, %v2898
      %v2919 = vadd.f32 %v2883, %v2898
      %v2920 = vadd.f32 %v2884, %v2898
      %v2921 = vadd.f32 %v2885, %v2898
      %v2922 = vadd.f32 %v2886, %v2898
      %v2923 = vadd.f32 %v2887, %v2898
      %v2924 = vadd.f32 %v2888, %v2898
      %v2925 = vadd.f32 %v2889, %v2898
      %v2926 = vadd.f32 %v2890, %v2898
      %v2927 = vadd.f32 %v2891, %v2898
      %v2928 = vadd.f32 %v2892, %v2898
      %v2929 = vadd.f32 %v2893, %v2898
      %v2930 = vadd.f32 %v2894, %v2898
      %v2931 = vadd.f32 %v2895, %v2898
      %vm2932 = vcmp.ge.f32.partialorder %v2900, 0.0
      %vm2933 = vcmp.ge.f32.partialorder %v2901, 0.0
      %vm2934 = vcmp.ge.f32.partialorder %v2902, 0.0
      %vm2935 = vcmp.ge.f32.partialorder %v2903, 0.0
      %vm2936 = vcmp.ge.f32.partialorder %v2904, 0.0
      %vm2937 = vcmp.ge.f32.partialorder %v2905, 0.0
      %vm2938 = vcmp.ge.f32.partialorder %v2906, 0.0
      %vm2939 = vcmp.ge.f32.partialorder %v2907, 0.0
      %vm2940 = vcmp.ge.f32.partialorder %v2908, 0.0
      %vm2941 = vcmp.ge.f32.partialorder %v2909, 0.0
      %vm2942 = vcmp.ge.f32.partialorder %v2910, 0.0
      %vm2943 = vcmp.ge.f32.partialorder %v2911, 0.0
      %vm2944 = vcmp.ge.f32.partialorder %v2912, 0.0
      %vm2945 = vcmp.ge.f32.partialorder %v2913, 0.0
      %vm2946 = vcmp.ge.f32.partialorder %v2914, 0.0
      %vm2947 = vcmp.ge.f32.partialorder %v2915, 0.0
      %vm2948 = vcmp.ge.f32.partialorder %v2916, 0.0
      %vm2949 = vcmp.ge.f32.partialorder %v2917, 0.0
      %vm2950 = vcmp.ge.f32.partialorder %v2918, 0.0
      %vm2951 = vcmp.ge.f32.partialorder %v2919, 0.0
      %vm2952 = vcmp.ge.f32.partialorder %v2920, 0.0
      %vm2953 = vcmp.ge.f32.partialorder %v2921, 0.0
      %vm2954 = vcmp.ge.f32.partialorder %v2922, 0.0
      %vm2955 = vcmp.ge.f32.partialorder %v2923, 0.0
      %vm2956 = vcmp.ge.f32.partialorder %v2924, 0.0
      %vm2957 = vcmp.ge.f32.partialorder %v2925, 0.0
      %vm2958 = vcmp.ge.f32.partialorder %v2926, 0.0
      %vm2959 = vcmp.ge.f32.partialorder %v2927, 0.0
      %vm2960 = vcmp.ge.f32.partialorder %v2928, 0.0
      %vm2961 = vcmp.ge.f32.partialorder %v2929, 0.0
      %vm2962 = vcmp.ge.f32.partialorder %v2930, 0.0
      %vm2963 = vcmp.ge.f32.partialorder %v2931, 0.0
      %v2964 = vld [vmem:[%s4] sm:$0x1]
      %v2966 = vperm.slane %v2964, 0
      %v2968 = vmul.f32 %v2966, %v2900
      %v2969 = vmul.f32 %v2966, %v2901
      %v2970 = vmul.f32 %v2966, %v2902
      %v2971 = vmul.f32 %v2966, %v2903
      %v2972 = vmul.f32 %v2966, %v2904
      %v2973 = vmul.f32 %v2966, %v2905
      %v2974 = vmul.f32 %v2966, %v2906
      %v2975 = vmul.f32 %v2966, %v2907
      %v2976 = vmul.f32 %v2966, %v2908
      %v2977 = vmul.f32 %v2966, %v2909
      %v2978 = vmul.f32 %v2966, %v2910
      %v2979 = vmul.f32 %v2966, %v2911
      %v2980 = vmul.f32 %v2966, %v2912
      %v2981 = vmul.f32 %v2966, %v2913
      %v2982 = vmul.f32 %v2966, %v2914
      %v2983 = vmul.f32 %v2966, %v2915
      %v2984 = vmul.f32 %v2966, %v2916
      %v2985 = vmul.f32 %v2966, %v2917
      %v2986 = vmul.f32 %v2966, %v2918
      %v2987 = vmul.f32 %v2966, %v2919
      %v2988 = vmul.f32 %v2966, %v2920
      %v2989 = vmul.f32 %v2966, %v2921
      %v2990 = vmul.f32 %v2966, %v2922
      %v2991 = vmul.f32 %v2966, %v2923
      %v2992 = vmul.f32 %v2966, %v2924
      %v2993 = vmul.f32 %v2966, %v2925
      %v2994 = vmul.f32 %v2966, %v2926
      %v2995 = vmul.f32 %v2966, %v2927
      %v2996 = vmul.f32 %v2966, %v2928
      %v2997 = vmul.f32 %v2966, %v2929
      %v2998 = vmul.f32 %v2966, %v2930
      %v2999 = vmul.f32 %v2966, %v2931
      %v3000 = vsel %vm2932, %v2900, %v2968
      %v3001 = vsel %vm2933, %v2901, %v2969
      %v3002 = vsel %vm2934, %v2902, %v2970
      %v3003 = vsel %vm2935, %v2903, %v2971
      %v3004 = vsel %vm2936, %v2904, %v2972
      %v3005 = vsel %vm2937, %v2905, %v2973
      %v3006 = vsel %vm2938, %v2906, %v2974
      %v3007 = vsel %vm2939, %v2907, %v2975
      %v3008 = vsel %vm2940, %v2908, %v2976
      %v3009 = vsel %vm2941, %v2909, %v2977
      %v3010 = vsel %vm2942, %v2910, %v2978
      %v3011 = vsel %vm2943, %v2911, %v2979
      %v3012 = vsel %vm2944, %v2912, %v2980
      %v3013 = vsel %vm2945, %v2913, %v2981
      %v3014 = vsel %vm2946, %v2914, %v2982
      %v3015 = vsel %vm2947, %v2915, %v2983
      %v3016 = vsel %vm2948, %v2916, %v2984
      %v3017 = vsel %vm2949, %v2917, %v2985
      %v3018 = vsel %vm2950, %v2918, %v2986
      %v3019 = vsel %vm2951, %v2919, %v2987
      %v3020 = vsel %vm2952, %v2920, %v2988
      %v3021 = vsel %vm2953, %v2921, %v2989
      %v3022 = vsel %vm2954, %v2922, %v2990
      %v3023 = vsel %vm2955, %v2923, %v2991
      %v3024 = vsel %vm2956, %v2924, %v2992
      %v3025 = vsel %vm2957, %v2925, %v2993
      %v3026 = vsel %vm2958, %v2926, %v2994
      %v3027 = vsel %vm2959, %v2927, %v2995
      %v3028 = vsel %vm2960, %v2928, %v2996
      %v3029 = vsel %vm2961, %v2929, %v2997
      %v3030 = vsel %vm2962, %v2930, %v2998
      %v3031 = vsel %vm2963, %v2931, %v2999
      %3032 = vst [vmem:[#allocation2] sm:$0xff] -3.4028235e+38
      %3033 = vst [vmem:[#allocation2 + $0x8] sm:$0x3] -3.4028235e+38
      %3034 = vst [vmem:[#allocation2 + $0x10] sm:$0xff] -3.4028235e+38
      %3035 = vst [vmem:[#allocation2 + $0x18] sm:$0x3] -3.4028235e+38
      %3036 = vst [vmem:[#allocation2 + $0x20] sm:$0xff] -3.4028235e+38
      %3037 = vst [vmem:[#allocation2 + $0x28] sm:$0x3] -3.4028235e+38
      %3038 = vst [vmem:[#allocation2 + $0x30] sm:$0xff] -3.4028235e+38
      %3039 = vst [vmem:[#allocation2 + $0x38] sm:$0x3] -3.4028235e+38
      %3040 = vst [vmem:[#allocation2 + $0x40] sm:$0xff] -3.4028235e+38
      %3041 = vst [vmem:[#allocation2 + $0x48] sm:$0x3] -3.4028235e+38
      %3042 = vst [vmem:[#allocation2 + $0x50] sm:$0xff] -3.4028235e+38
      %3043 = vst [vmem:[#allocation2 + $0x58] sm:$0x3] -3.4028235e+38
      %3044 = vst [vmem:[#allocation2 + $0x60] sm:$0xff] -3.4028235e+38
      %3045 = vst [vmem:[#allocation2 + $0x68] sm:$0x3] -3.4028235e+38
      %3046 = vst [vmem:[#allocation2 + $0x70] sm:$0xff] -3.4028235e+38
      %3047 = vst [vmem:[#allocation2 + $0x78] sm:$0x3] -3.4028235e+38
      %3048 = vst [vmem:[#allocation2 + $0x80] sm:$0xff] -3.4028235e+38
      %3049 = vst [vmem:[#allocation2 + $0x88] sm:$0x3] -3.4028235e+38
      %3050 = vst [vmem:[#allocation2 + $0x90] sm:$0xff] -3.4028235e+38
      %3051 = vst [vmem:[#allocation2 + $0x98] sm:$0x3] -3.4028235e+38
      %3052 = vst [vmem:[#allocation2 + $0xa0] sm:$0xff] -3.4028235e+38
      %3053 = vst [vmem:[#allocation2 + $0xa8] sm:$0x3] -3.4028235e+38
      %3054 = vst [vmem:[#allocation2 + $0xb0] sm:$0xff] -3.4028235e+38
      %3055 = vst [vmem:[#allocation2 + $0xb8] sm:$0x3] -3.4028235e+38
      %3056 = vst [vmem:[#allocation2 + $0xc0] sm:$0xff] -3.4028235e+38
      %3057 = vst [vmem:[#allocation2 + $0xc8] sm:$0x3] -3.4028235e+38
      %3058 = vst [vmem:[#allocation2 + $0xd0] sm:$0xff] -3.4028235e+38
      %3059 = vst [vmem:[#allocation2 + $0xd8] sm:$0x3] -3.4028235e+38
      %3060 = vst [vmem:[#allocation2 + $0xe0] sm:$0xff] -3.4028235e+38
      %3061 = vst [vmem:[#allocation2 + $0xe8] sm:$0x3] -3.4028235e+38
      %3062 = vst [vmem:[#allocation2 + $0xf0] sm:$0xff] -3.4028235e+38
      %3063 = vst [vmem:[#allocation2 + $0xf8] sm:$0x3] -3.4028235e+38
      %3064 = vst [vmem:[#allocation2 + $0x100] sm:$0xff] -3.4028235e+38
      %3065 = vst [vmem:[#allocation2 + $0x108] sm:$0x3] -3.4028235e+38
      %3066 = vst [vmem:[#allocation2 + $0x110] sm:$0xff] -3.4028235e+38
      %3067 = vst [vmem:[#allocation2 + $0x118] sm:$0x3] -3.4028235e+38
      %3068 = vst [vmem:[#allocation2 + $0x120] sm:$0xff] -3.4028235e+38
      %3069 = vst [vmem:[#allocation2 + $0x128] sm:$0x3] -3.4028235e+38
      %3070 = vst [vmem:[#allocation2 + $0x130] sm:$0xff] -3.4028235e+38
      %3071 = vst [vmem:[#allocation2 + $0x138] sm:$0x3] -3.4028235e+38
      %3072 = vst [vmem:[#allocation2 + $0x140] sm:$0xff] -3.4028235e+38
      %3073 = vst [vmem:[#allocation2 + $0x148] sm:$0x3] -3.4028235e+38
      %3074 = vst [vmem:[#allocation2 + $0x150] sm:$0xff] -3.4028235e+38
      %3075 = vst [vmem:[#allocation2 + $0x158] sm:$0x3] -3.4028235e+38
      %3076 = vst [vmem:[#allocation2 + $0x160] sm:$0xff] -3.4028235e+38
      %3077 = vst [vmem:[#allocation2 + $0x168] sm:$0x3] -3.4028235e+38
      %3078 = vst [vmem:[#allocation2 + $0x170] sm:$0xff] -3.4028235e+38
      %3079 = vst [vmem:[#allocation2 + $0x178] sm:$0x3] -3.4028235e+38
      %3080 = vst [vmem:[#allocation2 + $0x180] sm:$0xff] -3.4028235e+38
      %3081 = vst [vmem:[#allocation2 + $0x188] sm:$0x3] -3.4028235e+38
      %3082 = vst [vmem:[#allocation2 + $0x190] sm:$0xff] -3.4028235e+38
      %3083 = vst [vmem:[#allocation2 + $0x198] sm:$0x3] -3.4028235e+38
      %3084 = vst [vmem:[#allocation2 + $0x1a0] sm:$0xff] -3.4028235e+38
      %3085 = vst [vmem:[#allocation2 + $0x1a8] sm:$0x3] -3.4028235e+38
      %3086 = vst [vmem:[#allocation2 + $0x1b0] sm:$0xff] -3.4028235e+38
      %3087 = vst [vmem:[#allocation2 + $0x1b8] sm:$0x3] -3.4028235e+38
      %3088 = vst [vmem:[#allocation2 + $0x1c0] sm:$0xff] -3.4028235e+38
      %3089 = vst [vmem:[#allocation2 + $0x1c8] sm:$0x3] -3.4028235e+38
      %3090 = vst [vmem:[#allocation2 + $0x1d0] sm:$0xff] -3.4028235e+38
      %3091 = vst [vmem:[#allocation2 + $0x1d8] sm:$0x3] -3.4028235e+38
      %3092 = vst [vmem:[#allocation2 + $0x1e0] sm:$0xff] -3.4028235e+38
      %3093 = vst [vmem:[#allocation2 + $0x1e8] sm:$0x3] -3.4028235e+38
      %3094 = vst [vmem:[#allocation2 + $0x1f0] sm:$0xff] -3.4028235e+38
      %3095 = vst [vmem:[#allocation2 + $0x1f8] sm:$0x3] -3.4028235e+38
      %3096 = vst [vmem:[#allocation2 + $0x200] sm:$0xff] -3.4028235e+38
      %3097 = vst [vmem:[#allocation2 + $0x208] sm:$0x3] -3.4028235e+38
      %3098 = vst [vmem:[#allocation2 + $0x210] sm:$0xff] -3.4028235e+38
      %3099 = vst [vmem:[#allocation2 + $0x218] sm:$0x3] -3.4028235e+38
      %3100 = vst [vmem:[#allocation2 + $0x220] sm:$0xff] -3.4028235e+38
      %3101 = vst [vmem:[#allocation2 + $0x228] sm:$0x3] -3.4028235e+38
      %3102 = vst [vmem:[#allocation2 + $0x230] sm:$0xff] -3.4028235e+38
      %3103 = vst [vmem:[#allocation2 + $0x238] sm:$0x3] -3.4028235e+38
      %3104 = vst [vmem:[#allocation2 + $0x240] sm:$0xff] -3.4028235e+38
      %3105 = vst [vmem:[#allocation2 + $0x248] sm:$0x3] -3.4028235e+38
      %3106 = vst [vmem:[#allocation2 + $0x250] sm:$0xff] -3.4028235e+38
      %3107 = vst [vmem:[#allocation2 + $0x258] sm:$0x3] -3.4028235e+38
      %3108 = vst [vmem:[#allocation2 + $0x260] sm:$0xff] -3.4028235e+38
      %3109 = vst [vmem:[#allocation2 + $0x268] sm:$0x3] -3.4028235e+38
      %3110 = vst [vmem:[#allocation2 + $0x270] sm:$0xff] -3.4028235e+38
      %3111 = vst [vmem:[#allocation2 + $0x278] sm:$0x3] -3.4028235e+38
      %s3112 = scalar_lea.vmem [#allocation2], 16
      %3113 = vst [vmem:[%s3112 + $0x1] sm:$0xff] %v3000
      %3114 = vst [vmem:[%s3112 + $0x11] sm:$0xff] %v3001
      %3115 = vst [vmem:[%s3112 + $0x21] sm:$0xff] %v3002
      %3116 = vst [vmem:[%s3112 + $0x31] sm:$0xff] %v3003
      %3117 = vst [vmem:[%s3112 + $0x41] sm:$0xff] %v3004
      %3118 = vst [vmem:[%s3112 + $0x51] sm:$0xff] %v3005
      %3119 = vst [vmem:[%s3112 + $0x61] sm:$0xff] %v3006
      %3120 = vst [vmem:[%s3112 + $0x71] sm:$0xff] %v3007
      %3121 = vst [vmem:[%s3112 + $0xa1] sm:$0xff] %v3008
      %3122 = vst [vmem:[%s3112 + $0xb1] sm:$0xff] %v3009
      %3123 = vst [vmem:[%s3112 + $0xc1] sm:$0xff] %v3010
      %3124 = vst [vmem:[%s3112 + $0xd1] sm:$0xff] %v3011
      %3125 = vst [vmem:[%s3112 + $0xe1] sm:$0xff] %v3012
      %3126 = vst [vmem:[%s3112 + $0xf1] sm:$0xff] %v3013
      %3127 = vst [vmem:[%s3112 + $0x101] sm:$0xff] %v3014
      %3128 = vst [vmem:[%s3112 + $0x111] sm:$0xff] %v3015
      %3129 = vst [vmem:[%s3112 + $0x141] sm:$0xff] %v3016
      %3130 = vst [vmem:[%s3112 + $0x151] sm:$0xff] %v3017
      %3131 = vst [vmem:[%s3112 + $0x161] sm:$0xff] %v3018
      %3132 = vst [vmem:[%s3112 + $0x171] sm:$0xff] %v3019
      %3133 = vst [vmem:[%s3112 + $0x181] sm:$0xff] %v3020
      %3134 = vst [vmem:[%s3112 + $0x191] sm:$0xff] %v3021
      %3135 = vst [vmem:[%s3112 + $0x1a1] sm:$0xff] %v3022
      %3136 = vst [vmem:[%s3112 + $0x1b1] sm:$0xff] %v3023
      %3137 = vst [vmem:[%s3112 + $0x1e1] sm:$0xff] %v3024
      %3138 = vst [vmem:[%s3112 + $0x1f1] sm:$0xff] %v3025
      %3139 = vst [vmem:[%s3112 + $0x201] sm:$0xff] %v3026
      %3140 = vst [vmem:[%s3112 + $0x211] sm:$0xff] %v3027
      %3141 = vst [vmem:[%s3112 + $0x221] sm:$0xff] %v3028
      %3142 = vst [vmem:[%s3112 + $0x231] sm:$0xff] %v3029
      %3143 = vst [vmem:[%s3112 + $0x241] sm:$0xff] %v3030
      %3144 = vst [vmem:[%s3112 + $0x251] sm:$0xff] %v3031
      %v3145 = vld [vmem:[#allocation2] ss:$2 sm:$0xf]
      %s3146 = scalar_lea.vmem [#allocation2], 32
      %v3147 = vld [vmem:[%s3146] ss:$2 sm:$0xf]
      %s3148 = scalar_lea.vmem [#allocation2], 64
      %v3149 = vld [vmem:[%s3148] ss:$2 sm:$0xf]
      %s3150 = scalar_lea.vmem [#allocation2], 96
      %v3151 = vld [vmem:[%s3150] ss:$2 sm:$0xf]
      %s3152 = scalar_lea.vmem [#allocation2], 160
      %v3153 = vld [vmem:[%s3152] ss:$2 sm:$0xf]
      %s3154 = scalar_lea.vmem [#allocation2], 192
      %v3155 = vld [vmem:[%s3154] ss:$2 sm:$0xf]
      %s3156 = scalar_lea.vmem [#allocation2], 224
      %v3157 = vld [vmem:[%s3156] ss:$2 sm:$0xf]
      %s3158 = scalar_lea.vmem [#allocation2], 256
      %v3159 = vld [vmem:[%s3158] ss:$2 sm:$0xf]
      %s3160 = scalar_lea.vmem [#allocation2], 320
      %v3161 = vld [vmem:[%s3160] ss:$2 sm:$0xf]
      %s3162 = scalar_lea.vmem [#allocation2], 352
      %v3163 = vld [vmem:[%s3162] ss:$2 sm:$0xf]
      %s3164 = scalar_lea.vmem [#allocation2], 384
      %v3165 = vld [vmem:[%s3164] ss:$2 sm:$0xf]
      %s3166 = scalar_lea.vmem [#allocation2], 416
      %v3167 = vld [vmem:[%s3166] ss:$2 sm:$0xf]
      %s3168 = scalar_lea.vmem [#allocation2], 480
      %v3169 = vld [vmem:[%s3168] ss:$2 sm:$0xf]
      %s3170 = scalar_lea.vmem [#allocation2], 512
      %v3171 = vld [vmem:[%s3170] ss:$2 sm:$0xf]
      %s3172 = scalar_lea.vmem [#allocation2], 544
      %v3173 = vld [vmem:[%s3172] ss:$2 sm:$0xf]
      %s3174 = scalar_lea.vmem [#allocation2], 576
      %v3175 = vld [vmem:[%s3174] ss:$2 sm:$0xf]
      %s3176 = scalar_lea.vmem [#allocation2], 1
      %v3177 = vld [vmem:[%s3176] ss:$2 sm:$0xf]
      %s3178 = scalar_lea.vmem [#allocation2], 33
      %v3179 = vld [vmem:[%s3178] ss:$2 sm:$0xf]
      %s3180 = scalar_lea.vmem [#allocation2], 65
      %v3181 = vld [vmem:[%s3180] ss:$2 sm:$0xf]
      %s3182 = scalar_lea.vmem [#allocation2], 97
      %v3183 = vld [vmem:[%s3182] ss:$2 sm:$0xf]
      %s3184 = scalar_lea.vmem [#allocation2], 161
      %v3185 = vld [vmem:[%s3184] ss:$2 sm:$0xf]
      %s3186 = scalar_lea.vmem [#allocation2], 193
      %v3187 = vld [vmem:[%s3186] ss:$2 sm:$0xf]
      %s3188 = scalar_lea.vmem [#allocation2], 225
      %v3189 = vld [vmem:[%s3188] ss:$2 sm:$0xf]
      %s3190 = scalar_lea.vmem [#allocation2], 257
      %v3191 = vld [vmem:[%s3190] ss:$2 sm:$0xf]
      %s3192 = scalar_lea.vmem [#allocation2], 321
      %v3193 = vld [vmem:[%s3192] ss:$2 sm:$0xf]
      %s3194 = scalar_lea.vmem [#allocation2], 353
      %v3195 = vld [vmem:[%s3194] ss:$2 sm:$0xf]
      %s3196 = scalar_lea.vmem [#allocation2], 385
      %v3197 = vld [vmem:[%s3196] ss:$2 sm:$0xf]
      %s3198 = scalar_lea.vmem [#allocation2], 417
      %v3199 = vld [vmem:[%s3198] ss:$2 sm:$0xf]
      %s3200 = scalar_lea.vmem [#allocation2], 481
      %v3201 = vld [vmem:[%s3200] ss:$2 sm:$0xf]
      %s3202 = scalar_lea.vmem [#allocation2], 513
      %v3203 = vld [vmem:[%s3202] ss:$2 sm:$0xf]
      %s3204 = scalar_lea.vmem [#allocation2], 545
      %v3205 = vld [vmem:[%s3204] ss:$2 sm:$0xf]
      %s3206 = scalar_lea.vmem [#allocation2], 577
      %v3207 = vld [vmem:[%s3206] ss:$2 sm:$0xf]
      %v3208 = vmax.f32 %v3145, %v3177
      %v3209 = vmax.f32 %v3147, %v3179
      %v3210 = vmax.f32 %v3149, %v3181
      %v3211 = vmax.f32 %v3151, %v3183
      %v3212 = vmax.f32 %v3153, %v3185
      %v3213 = vmax.f32 %v3155, %v3187
      %v3214 = vmax.f32 %v3157, %v3189
      %v3215 = vmax.f32 %v3159, %v3191
      %v3216 = vmax.f32 %v3161, %v3193
      %v3217 = vmax.f32 %v3163, %v3195
      %v3218 = vmax.f32 %v3165, %v3197
      %v3219 = vmax.f32 %v3167, %v3199
      %v3220 = vmax.f32 %v3169, %v3201
      %v3221 = vmax.f32 %v3171, %v3203
      %v3222 = vmax.f32 %v3173, %v3205
      %v3223 = vmax.f32 %v3175, %v3207
      %s3224 = scalar_lea.vmem [#allocation2], 2
      %v3225 = vld [vmem:[%s3224] ss:$2 sm:$0xf]
      %s3226 = scalar_lea.vmem [#allocation2], 34
      %v3227 = vld [vmem:[%s3226] ss:$2 sm:$0xf]
      %s3228 = scalar_lea.vmem [#allocation2], 66
      %v3229 = vld [vmem:[%s3228] ss:$2 sm:$0xf]
      %s3230 = scalar_lea.vmem [#allocation2], 98
      %v3231 = vld [vmem:[%s3230] ss:$2 sm:$0xf]
      %s3232 = scalar_lea.vmem [#allocation2], 162
      %v3233 = vld [vmem:[%s3232] ss:$2 sm:$0xf]
      %s3234 = scalar_lea.vmem [#allocation2], 194
      %v3235 = vld [vmem:[%s3234] ss:$2 sm:$0xf]
      %s3236 = scalar_lea.vmem [#allocation2], 226
      %v3237 = vld [vmem:[%s3236] ss:$2 sm:$0xf]
      %s3238 = scalar_lea.vmem [#allocation2], 258
      %v3239 = vld [vmem:[%s3238] ss:$2 sm:$0xf]
      %s3240 = scalar_lea.vmem [#allocation2], 322
      %v3241 = vld [vmem:[%s3240] ss:$2 sm:$0xf]
      %s3242 = scalar_lea.vmem [#allocation2], 354
      %v3243 = vld [vmem:[%s3242] ss:$2 sm:$0xf]
      %s3244 = scalar_lea.vmem [#allocation2], 386
      %v3245 = vld [vmem:[%s3244] ss:$2 sm:$0xf]
      %s3246 = scalar_lea.vmem [#allocation2], 418
      %v3247 = vld [vmem:[%s3246] ss:$2 sm:$0xf]
      %s3248 = scalar_lea.vmem [#allocation2], 482
      %v3249 = vld [vmem:[%s3248] ss:$2 sm:$0xf]
      %s3250 = scalar_lea.vmem [#allocation2], 514
      %v3251 = vld [vmem:[%s3250] ss:$2 sm:$0xf]
      %s3252 = scalar_lea.vmem [#allocation2], 546
      %v3253 = vld [vmem:[%s3252] ss:$2 sm:$0xf]
      %s3254 = scalar_lea.vmem [#allocation2], 578
      %v3255 = vld [vmem:[%s3254] ss:$2 sm:$0xf]
      %v3256 = vmax.f32 %v3208, %v3225
      %v3257 = vmax.f32 %v3209, %v3227
      %v3258 = vmax.f32 %v3210, %v3229
      %v3259 = vmax.f32 %v3211, %v3231
      %v3260 = vmax.f32 %v3212, %v3233
      %v3261 = vmax.f32 %v3213, %v3235
      %v3262 = vmax.f32 %v3214, %v3237
      %v3263 = vmax.f32 %v3215, %v3239
      %v3264 = vmax.f32 %v3216, %v3241
      %v3265 = vmax.f32 %v3217, %v3243
      %v3266 = vmax.f32 %v3218, %v3245
      %v3267 = vmax.f32 %v3219, %v3247
      %v3268 = vmax.f32 %v3220, %v3249
      %v3269 = vmax.f32 %v3221, %v3251
      %v3270 = vmax.f32 %v3222, %v3253
      %v3271 = vmax.f32 %v3223, %v3255
      %v3272 = vld [vmem:[%s3112] ss:$2 sm:$0xf]
      %s3273 = scalar_lea.vmem %s3112, 32 [#allocation2]
      %v3274 = vld [vmem:[%s3273] ss:$2 sm:$0xf]
      %s3275 = scalar_lea.vmem %s3112, 64 [#allocation2]
      %v3276 = vld [vmem:[%s3275] ss:$2 sm:$0xf]
      %s3277 = scalar_lea.vmem %s3112, 96 [#allocation2]
      %v3278 = vld [vmem:[%s3277] ss:$2 sm:$0xf]
      %s3279 = scalar_lea.vmem %s3112, 160 [#allocation2]
      %v3280 = vld [vmem:[%s3279] ss:$2 sm:$0xf]
      %s3281 = scalar_lea.vmem %s3112, 192 [#allocation2]
      %v3282 = vld [vmem:[%s3281] ss:$2 sm:$0xf]
      %s3283 = scalar_lea.vmem %s3112, 224 [#allocation2]
      %v3284 = vld [vmem:[%s3283] ss:$2 sm:$0xf]
      %s3285 = scalar_lea.vmem %s3112, 256 [#allocation2]
      %v3286 = vld [vmem:[%s3285] ss:$2 sm:$0xf]
      %s3287 = scalar_lea.vmem %s3112, 320 [#allocation2]
      %v3288 = vld [vmem:[%s3287] ss:$2 sm:$0xf]
      %s3289 = scalar_lea.vmem %s3112, 352 [#allocation2]
      %v3290 = vld [vmem:[%s3289] ss:$2 sm:$0xf]
      %s3291 = scalar_lea.vmem %s3112, 384 [#allocation2]
      %v3292 = vld [vmem:[%s3291] ss:$2 sm:$0xf]
      %s3293 = scalar_lea.vmem %s3112, 416 [#allocation2]
      %v3294 = vld [vmem:[%s3293] ss:$2 sm:$0xf]
      %s3295 = scalar_lea.vmem %s3112, 480 [#allocation2]
      %v3296 = vld [vmem:[%s3295] ss:$2 sm:$0xf]
      %s3297 = scalar_lea.vmem %s3112, 512 [#allocation2]
      %v3298 = vld [vmem:[%s3297] ss:$2 sm:$0xf]
      %s3299 = scalar_lea.vmem %s3112, 544 [#allocation2]
      %v3300 = vld [vmem:[%s3299] ss:$2 sm:$0xf]
      %s3301 = scalar_lea.vmem %s3112, 576 [#allocation2]
      %v3302 = vld [vmem:[%s3301] ss:$2 sm:$0xf]
      %v3303 = vmax.f32 %v3256, %v3272
      %v3304 = vmax.f32 %v3257, %v3274
      %v3305 = vmax.f32 %v3258, %v3276
      %v3306 = vmax.f32 %v3259, %v3278
      %v3307 = vmax.f32 %v3260, %v3280
      %v3308 = vmax.f32 %v3261, %v3282
      %v3309 = vmax.f32 %v3262, %v3284
      %v3310 = vmax.f32 %v3263, %v3286
      %v3311 = vmax.f32 %v3264, %v3288
      %v3312 = vmax.f32 %v3265, %v3290
      %v3313 = vmax.f32 %v3266, %v3292
      %v3314 = vmax.f32 %v3267, %v3294
      %v3315 = vmax.f32 %v3268, %v3296
      %v3316 = vmax.f32 %v3269, %v3298
      %v3317 = vmax.f32 %v3270, %v3300
      %v3318 = vmax.f32 %v3271, %v3302
      %s3319 = scalar_lea.vmem %s3112, 1 [#allocation2]
      %v3320 = vld [vmem:[%s3319] ss:$2 sm:$0xf]
      %s3321 = scalar_lea.vmem %s3112, 33 [#allocation2]
      %v3322 = vld [vmem:[%s3321] ss:$2 sm:$0xf]
      %s3323 = scalar_lea.vmem %s3112, 65 [#allocation2]
      %v3324 = vld [vmem:[%s3323] ss:$2 sm:$0xf]
      %s3325 = scalar_lea.vmem %s3112, 97 [#allocation2]
      %v3326 = vld [vmem:[%s3325] ss:$2 sm:$0xf]
      %s3327 = scalar_lea.vmem %s3112, 161 [#allocation2]
      %v3328 = vld [vmem:[%s3327] ss:$2 sm:$0xf]
      %s3329 = scalar_lea.vmem %s3112, 193 [#allocation2]
      %v3330 = vld [vmem:[%s3329] ss:$2 sm:$0xf]
      %s3331 = scalar_lea.vmem %s3112, 225 [#allocation2]
      %v3332 = vld [vmem:[%s3331] ss:$2 sm:$0xf]
      %s3333 = scalar_lea.vmem %s3112, 257 [#allocation2]
      %v3334 = vld [vmem:[%s3333] ss:$2 sm:$0xf]
      %s3335 = scalar_lea.vmem %s3112, 321 [#allocation2]
      %v3336 = vld [vmem:[%s3335] ss:$2 sm:$0xf]
      %s3337 = scalar_lea.vmem %s3112, 353 [#allocation2]
      %v3338 = vld [vmem:[%s3337] ss:$2 sm:$0xf]
      %s3339 = scalar_lea.vmem %s3112, 385 [#allocation2]
      %v3340 = vld [vmem:[%s3339] ss:$2 sm:$0xf]
      %s3341 = scalar_lea.vmem %s3112, 417 [#allocation2]
      %v3342 = vld [vmem:[%s3341] ss:$2 sm:$0xf]
      %s3343 = scalar_lea.vmem %s3112, 481 [#allocation2]
      %v3344 = vld [vmem:[%s3343] ss:$2 sm:$0xf]
      %s3345 = scalar_lea.vmem %s3112, 513 [#allocation2]
      %v3346 = vld [vmem:[%s3345] ss:$2 sm:$0xf]
      %s3347 = scalar_lea.vmem %s3112, 545 [#allocation2]
      %v3348 = vld [vmem:[%s3347] ss:$2 sm:$0xf]
      %s3349 = scalar_lea.vmem %s3112, 577 [#allocation2]
      %v3350 = vld [vmem:[%s3349] ss:$2 sm:$0xf]
      %v3351 = vmax.f32 %v3303, %v3320
      %v3352 = vmax.f32 %v3304, %v3322
      %v3353 = vmax.f32 %v3305, %v3324
      %v3354 = vmax.f32 %v3306, %v3326
      %v3355 = vmax.f32 %v3307, %v3328
      %v3356 = vmax.f32 %v3308, %v3330
      %v3357 = vmax.f32 %v3309, %v3332
      %v3358 = vmax.f32 %v3310, %v3334
      %v3359 = vmax.f32 %v3311, %v3336
      %v3360 = vmax.f32 %v3312, %v3338
      %v3361 = vmax.f32 %v3313, %v3340
      %v3362 = vmax.f32 %v3314, %v3342
      %v3363 = vmax.f32 %v3315, %v3344
      %v3364 = vmax.f32 %v3316, %v3346
      %v3365 = vmax.f32 %v3317, %v3348
      %v3366 = vmax.f32 %v3318, %v3350
      %s3367 = scalar_lea.vmem %s3112, 2 [#allocation2]
      %v3368 = vld [vmem:[%s3367] ss:$2 sm:$0xf]
      %s3369 = scalar_lea.vmem %s3112, 34 [#allocation2]
      %v3370 = vld [vmem:[%s3369] ss:$2 sm:$0xf]
      %s3371 = scalar_lea.vmem %s3112, 66 [#allocation2]
      %v3372 = vld [vmem:[%s3371] ss:$2 sm:$0xf]
      %s3373 = scalar_lea.vmem %s3112, 98 [#allocation2]
      %v3374 = vld [vmem:[%s3373] ss:$2 sm:$0xf]
      %s3375 = scalar_lea.vmem %s3112, 162 [#allocation2]
      %v3376 = vld [vmem:[%s3375] ss:$2 sm:$0xf]
      %s3377 = scalar_lea.vmem %s3112, 194 [#allocation2]
      %v3378 = vld [vmem:[%s3377] ss:$2 sm:$0xf]
      %s3379 = scalar_lea.vmem %s3112, 226 [#allocation2]
      %v3380 = vld [vmem:[%s3379] ss:$2 sm:$0xf]
      %s3381 = scalar_lea.vmem %s3112, 258 [#allocation2]
      %v3382 = vld [vmem:[%s3381] ss:$2 sm:$0xf]
      %s3383 = scalar_lea.vmem %s3112, 322 [#allocation2]
      %v3384 = vld [vmem:[%s3383] ss:$2 sm:$0xf]
      %s3385 = scalar_lea.vmem %s3112, 354 [#allocation2]
      %v3386 = vld [vmem:[%s3385] ss:$2 sm:$0xf]
      %s3387 = scalar_lea.vmem %s3112, 386 [#allocation2]
      %v3388 = vld [vmem:[%s3387] ss:$2 sm:$0xf]
      %s3389 = scalar_lea.vmem %s3112, 418 [#allocation2]
      %v3390 = vld [vmem:[%s3389] ss:$2 sm:$0xf]
      %s3391 = scalar_lea.vmem %s3112, 482 [#allocation2]
      %v3392 = vld [vmem:[%s3391] ss:$2 sm:$0xf]
      %s3393 = scalar_lea.vmem %s3112, 514 [#allocation2]
      %v3394 = vld [vmem:[%s3393] ss:$2 sm:$0xf]
      %s3395 = scalar_lea.vmem %s3112, 546 [#allocation2]
      %v3396 = vld [vmem:[%s3395] ss:$2 sm:$0xf]
      %s3397 = scalar_lea.vmem %s3112, 578 [#allocation2]
      %v3398 = vld [vmem:[%s3397] ss:$2 sm:$0xf]
      %v3399 = vmax.f32 %v3351, %v3368
      %v3400 = vmax.f32 %v3352, %v3370
      %v3401 = vmax.f32 %v3353, %v3372
      %v3402 = vmax.f32 %v3354, %v3374
      %v3403 = vmax.f32 %v3355, %v3376
      %v3404 = vmax.f32 %v3356, %v3378
      %v3405 = vmax.f32 %v3357, %v3380
      %v3406 = vmax.f32 %v3358, %v3382
      %v3407 = vmax.f32 %v3359, %v3384
      %v3408 = vmax.f32 %v3360, %v3386
      %v3409 = vmax.f32 %v3361, %v3388
      %v3410 = vmax.f32 %v3362, %v3390
      %v3411 = vmax.f32 %v3363, %v3392
      %v3412 = vmax.f32 %v3364, %v3394
      %v3413 = vmax.f32 %v3365, %v3396
      %v3414 = vmax.f32 %v3366, %v3398
      %s3415 = scalar_lea.vmem [#allocation2], 32
      %v3416 = vld [vmem:[%s3415] ss:$2 sm:$0xf]
      %s3417 = scalar_lea.vmem %s3415, 32 [#allocation2]
      %v3418 = vld [vmem:[%s3417] ss:$2 sm:$0xf]
      %s3419 = scalar_lea.vmem %s3415, 64 [#allocation2]
      %v3420 = vld [vmem:[%s3419] ss:$2 sm:$0xf]
      %s3421 = scalar_lea.vmem %s3415, 96 [#allocation2]
      %v3422 = vld [vmem:[%s3421] ss:$2 sm:$0xf]
      %s3423 = scalar_lea.vmem %s3415, 160 [#allocation2]
      %v3424 = vld [vmem:[%s3423] ss:$2 sm:$0xf]
      %s3425 = scalar_lea.vmem %s3415, 192 [#allocation2]
      %v3426 = vld [vmem:[%s3425] ss:$2 sm:$0xf]
      %s3427 = scalar_lea.vmem %s3415, 224 [#allocation2]
      %v3428 = vld [vmem:[%s3427] ss:$2 sm:$0xf]
      %s3429 = scalar_lea.vmem %s3415, 256 [#allocation2]
      %v3430 = vld [vmem:[%s3429] ss:$2 sm:$0xf]
      %s3431 = scalar_lea.vmem %s3415, 320 [#allocation2]
      %v3432 = vld [vmem:[%s3431] ss:$2 sm:$0xf]
      %s3433 = scalar_lea.vmem %s3415, 352 [#allocation2]
      %v3434 = vld [vmem:[%s3433] ss:$2 sm:$0xf]
      %s3435 = scalar_lea.vmem %s3415, 384 [#allocation2]
      %v3436 = vld [vmem:[%s3435] ss:$2 sm:$0xf]
      %s3437 = scalar_lea.vmem %s3415, 416 [#allocation2]
      %v3438 = vld [vmem:[%s3437] ss:$2 sm:$0xf]
      %s3439 = scalar_lea.vmem %s3415, 480 [#allocation2]
      %v3440 = vld [vmem:[%s3439] ss:$2 sm:$0xf]
      %s3441 = scalar_lea.vmem %s3415, 512 [#allocation2]
      %v3442 = vld [vmem:[%s3441] ss:$2 sm:$0xf]
      %s3443 = scalar_lea.vmem %s3415, 544 [#allocation2]
      %v3444 = vld [vmem:[%s3443] ss:$2 sm:$0xf]
      %s3445 = scalar_lea.vmem %s3415, 576 [#allocation2]
      %v3446 = vld [vmem:[%s3445] ss:$2 sm:$0xf]
      %v3447 = vmax.f32 %v3399, %v3416
      %v3448 = vmax.f32 %v3400, %v3418
      %v3449 = vmax.f32 %v3401, %v3420
      %v3450 = vmax.f32 %v3402, %v3422
      %v3451 = vmax.f32 %v3403, %v3424
      %v3452 = vmax.f32 %v3404, %v3426
      %v3453 = vmax.f32 %v3405, %v3428
      %v3454 = vmax.f32 %v3406, %v3430
      %v3455 = vmax.f32 %v3407, %v3432
      %v3456 = vmax.f32 %v3408, %v3434
      %v3457 = vmax.f32 %v3409, %v3436
      %v3458 = vmax.f32 %v3410, %v3438
      %v3459 = vmax.f32 %v3411, %v3440
      %v3460 = vmax.f32 %v3412, %v3442
      %v3461 = vmax.f32 %v3413, %v3444
      %v3462 = vmax.f32 %v3414, %v3446
      %s3463 = scalar_lea.vmem %s3415, 1 [#allocation2]
      %v3464 = vld [vmem:[%s3463] ss:$2 sm:$0xf]
      %s3465 = scalar_lea.vmem %s3415, 33 [#allocation2]
      %v3466 = vld [vmem:[%s3465] ss:$2 sm:$0xf]
      %s3467 = scalar_lea.vmem %s3415, 65 [#allocation2]
      %v3468 = vld [vmem:[%s3467] ss:$2 sm:$0xf]
      %s3469 = scalar_lea.vmem %s3415, 97 [#allocation2]
      %v3470 = vld [vmem:[%s3469] ss:$2 sm:$0xf]
      %s3471 = scalar_lea.vmem %s3415, 161 [#allocation2]
      %v3472 = vld [vmem:[%s3471] ss:$2 sm:$0xf]
      %s3473 = scalar_lea.vmem %s3415, 193 [#allocation2]
      %v3474 = vld [vmem:[%s3473] ss:$2 sm:$0xf]
      %s3475 = scalar_lea.vmem %s3415, 225 [#allocation2]
      %v3476 = vld [vmem:[%s3475] ss:$2 sm:$0xf]
      %s3477 = scalar_lea.vmem %s3415, 257 [#allocation2]
      %v3478 = vld [vmem:[%s3477] ss:$2 sm:$0xf]
      %s3479 = scalar_lea.vmem %s3415, 321 [#allocation2]
      %v3480 = vld [vmem:[%s3479] ss:$2 sm:$0xf]
      %s3481 = scalar_lea.vmem %s3415, 353 [#allocation2]
      %v3482 = vld [vmem:[%s3481] ss:$2 sm:$0xf]
      %s3483 = scalar_lea.vmem %s3415, 385 [#allocation2]
      %v3484 = vld [vmem:[%s3483] ss:$2 sm:$0xf]
      %s3485 = scalar_lea.vmem %s3415, 417 [#allocation2]
      %v3486 = vld [vmem:[%s3485] ss:$2 sm:$0xf]
      %s3487 = scalar_lea.vmem %s3415, 481 [#allocation2]
      %v3488 = vld [vmem:[%s3487] ss:$2 sm:$0xf]
      %s3489 = scalar_lea.vmem %s3415, 513 [#allocation2]
      %v3490 = vld [vmem:[%s3489] ss:$2 sm:$0xf]
      %s3491 = scalar_lea.vmem %s3415, 545 [#allocation2]
      %v3492 = vld [vmem:[%s3491] ss:$2 sm:$0xf]
      %s3493 = scalar_lea.vmem %s3415, 577 [#allocation2]
      %v3494 = vld [vmem:[%s3493] ss:$2 sm:$0xf]
      %v3495 = vmax.f32 %v3447, %v3464
      %v3496 = vmax.f32 %v3448, %v3466
      %v3497 = vmax.f32 %v3449, %v3468
      %v3498 = vmax.f32 %v3450, %v3470
      %v3499 = vmax.f32 %v3451, %v3472
      %v3500 = vmax.f32 %v3452, %v3474
      %v3501 = vmax.f32 %v3453, %v3476
      %v3502 = vmax.f32 %v3454, %v3478
      %v3503 = vmax.f32 %v3455, %v3480
      %v3504 = vmax.f32 %v3456, %v3482
      %v3505 = vmax.f32 %v3457, %v3484
      %v3506 = vmax.f32 %v3458, %v3486
      %v3507 = vmax.f32 %v3459, %v3488
      %v3508 = vmax.f32 %v3460, %v3490
      %v3509 = vmax.f32 %v3461, %v3492
      %v3510 = vmax.f32 %v3462, %v3494
      %s3511 = scalar_lea.vmem %s3415, 2 [#allocation2]
      %v3512 = vld [vmem:[%s3511] ss:$2 sm:$0xf]
      %s3513 = scalar_lea.vmem %s3415, 34 [#allocation2]
      %v3514 = vld [vmem:[%s3513] ss:$2 sm:$0xf]
      %s3515 = scalar_lea.vmem %s3415, 66 [#allocation2]
      %v3516 = vld [vmem:[%s3515] ss:$2 sm:$0xf]
      %s3517 = scalar_lea.vmem %s3415, 98 [#allocation2]
      %v3518 = vld [vmem:[%s3517] ss:$2 sm:$0xf]
      %s3519 = scalar_lea.vmem %s3415, 162 [#allocation2]
      %v3520 = vld [vmem:[%s3519] ss:$2 sm:$0xf]
      %s3521 = scalar_lea.vmem %s3415, 194 [#allocation2]
      %v3522 = vld [vmem:[%s3521] ss:$2 sm:$0xf]
      %s3523 = scalar_lea.vmem %s3415, 226 [#allocation2]
      %v3524 = vld [vmem:[%s3523] ss:$2 sm:$0xf]
      %s3525 = scalar_lea.vmem %s3415, 258 [#allocation2]
      %v3526 = vld [vmem:[%s3525] ss:$2 sm:$0xf]
      %s3527 = scalar_lea.vmem %s3415, 322 [#allocation2]
      %v3528 = vld [vmem:[%s3527] ss:$2 sm:$0xf]
      %s3529 = scalar_lea.vmem %s3415, 354 [#allocation2]
      %v3530 = vld [vmem:[%s3529] ss:$2 sm:$0xf]
      %s3531 = scalar_lea.vmem %s3415, 386 [#allocation2]
      %v3532 = vld [vmem:[%s3531] ss:$2 sm:$0xf]
      %s3533 = scalar_lea.vmem %s3415, 418 [#allocation2]
      %v3534 = vld [vmem:[%s3533] ss:$2 sm:$0xf]
      %s3535 = scalar_lea.vmem %s3415, 482 [#allocation2]
      %v3536 = vld [vmem:[%s3535] ss:$2 sm:$0xf]
      %s3537 = scalar_lea.vmem %s3415, 514 [#allocation2]
      %v3538 = vld [vmem:[%s3537] ss:$2 sm:$0xf]
      %s3539 = scalar_lea.vmem %s3415, 546 [#allocation2]
      %v3540 = vld [vmem:[%s3539] ss:$2 sm:$0xf]
      %s3541 = scalar_lea.vmem %s3415, 578 [#allocation2]
      %v3542 = vld [vmem:[%s3541] ss:$2 sm:$0xf]
      %v3543 = vmax.f32 %v3495, %v3512
      %v3544 = vmax.f32 %v3496, %v3514
      %v3545 = vmax.f32 %v3497, %v3516
      %v3546 = vmax.f32 %v3498, %v3518
      %v3547 = vmax.f32 %v3499, %v3520
      %v3548 = vmax.f32 %v3500, %v3522
      %v3549 = vmax.f32 %v3501, %v3524
      %v3550 = vmax.f32 %v3502, %v3526
      %v3551 = vmax.f32 %v3503, %v3528
      %v3552 = vmax.f32 %v3504, %v3530
      %v3553 = vmax.f32 %v3505, %v3532
      %v3554 = vmax.f32 %v3506, %v3534
      %v3555 = vmax.f32 %v3507, %v3536
      %v3556 = vmax.f32 %v3508, %v3538
      %v3557 = vmax.f32 %v3509, %v3540
      %v3558 = vmax.f32 %v3510, %v3542
      %v3559 = vpack.c.bf16 %v3543, %v3543
      %v3560 = vpack.c.bf16 %v3544, %v3544
      %v3561 = vpack.c.bf16 %v3545, %v3545
      %v3562 = vpack.c.bf16 %v3546, %v3546
      %v3563 = vpack.c.bf16 %v3547, %v3547
      %v3564 = vpack.c.bf16 %v3548, %v3548
      %v3565 = vpack.c.bf16 %v3549, %v3549
      %v3566 = vpack.c.bf16 %v3550, %v3550
      %v3567 = vpack.c.bf16 %v3551, %v3551
      %v3568 = vpack.c.bf16 %v3552, %v3552
      %v3569 = vpack.c.bf16 %v3553, %v3553
      %v3570 = vpack.c.bf16 %v3554, %v3554
      %v3571 = vpack.c.bf16 %v3555, %v3555
      %v3572 = vpack.c.bf16 %v3556, %v3556
      %v3573 = vpack.c.bf16 %v3557, %v3557
      %v3574 = vpack.c.bf16 %v3558, %v3558
      %3575 = vst [vmem:[%s248] sm:$0x3] %v3559
      %3576 = vst [vmem:[%s248 + $0x2] sm:$0x3] %v3560
      %3577 = vst [vmem:[%s248 + $0x4] sm:$0x3] %v3561
      %3578 = vst [vmem:[%s248 + $0x6] sm:$0x3] %v3562
      %3579 = vst [vmem:[%s248 + $0x8] sm:$0x3] %v3563
      %3580 = vst [vmem:[%s248 + $0xa] sm:$0x3] %v3564
      %3581 = vst [vmem:[%s248 + $0xc] sm:$0x3] %v3565
      %3582 = vst [vmem:[%s248 + $0xe] sm:$0x3] %v3566
      %3583 = vst [vmem:[%s248 + $0x10] sm:$0x3] %v3567
      %3584 = vst [vmem:[%s248 + $0x12] sm:$0x3] %v3568
      %3585 = vst [vmem:[%s248 + $0x14] sm:$0x3] %v3569
      %3586 = vst [vmem:[%s248 + $0x16] sm:$0x3] %v3570
      %3587 = vst [vmem:[%s248 + $0x18] sm:$0x3] %v3571
      %3588 = vst [vmem:[%s248 + $0x1a] sm:$0x3] %v3572
      %3589 = vst [vmem:[%s248 + $0x1c] sm:$0x3] %v3573
      %3590 = vst [vmem:[%s248 + $0x1e] sm:$0x3] %v3574
      %s3591 = smul.u32 4, %s21
      %p3592 = scmp.lt.s32.totalorder %s20, 1
      %s3593 = scalar_select %p3592, %s20, 1
      %p3594 = scmp.lt.s32.totalorder %s3591, 3
      %s3595 = scalar_select %p3594, %s3591, 3
      %s3596 = smul.addr %s3595, 4
      %s3597 = smul.addr %s3593, 16
      %s3598 = sadd.s32 %s3596, %s3597
      %s3599 = smul.addr %s3598, 2
      %s3600 = scalar_lea.vmem %s5, %s3599
      // Predicated region
      $region41: #{video_extractor_forward.2} parent=39 // pred_check
        %p3601 = pneg %p158
      $region42: #{video_extractor_forward.2} parent=39 // pred_check_branch
        %3603 = sbr.rel (%p3601) target = $region44
      $region43: #{video_extractor_forward.2} parent=39 // pred_region
        %s3604 = smul.u32 4, %s21
      $region44: #{video_extractor_forward.2} parent=39 // pred_fallthru
        _
    $region40: #{video_extractor_forward.2} parent=5 // pred_fallthru
      _
    %p3605 = scmp.le.s32.totalorder 2, %s11
    // Predicated region
    $region45: #{video_extractor_forward.2} parent=5 // pred_check
      %p3606 = pneg %p3605
    $region46: #{video_extractor_forward.2} parent=5 // pred_check_branch
      %3608 = sbr.rel (%p3606) target = $region48
    $region47: #{video_extractor_forward.2} parent=5 // pred_region
      %s3609 = ssub.s32 %s11, 2
      // Predicated region
      $region49: #{video_extractor_forward.2} parent=47 // pred_check
        %p3610 = pneg %p164
      $region50: #{video_extractor_forward.2} parent=47 // pred_check_branch
        %3612 = sbr.rel (%p3610) target = $region52
      $region51: #{video_extractor_forward.2} parent=47 // pred_region
        %s3613 = smul.u32 4, %s23
        %p3614 = scmp.lt.s32.totalorder %s22, 1
        %s3615 = scalar_select %p3614, %s22, 1
        %p3616 = scmp.lt.s32.totalorder %s3613, 3
        %s3617 = scalar_select %p3616, %s3613, 3
        %s3618 = smul.addr %s3617, 4
        %s3619 = smul.addr %s3615, 16
        %s3620 = sadd.s32 %s3618, %s3619
        %s3621 = smul.addr %s3620, 2
        %s3622 = scalar_lea.vmem %s5, %s3621
      $region52: #{video_extractor_forward.2} parent=47 // pred_fallthru
        _
    $region48: #{video_extractor_forward.2} parent=5 // pred_fallthru
      _
  $region6: #{video_extractor_forward.2} parent=0 // loop_footer
    %s15 = sadd.s32 1, %s11
  $region7: #{video_extractor_forward.2} parent=0 // loop_footer_branch
    %10 = sbr.rel target = $region3
  $region8: #{video_extractor_forward.2} parent=0 // loop_exit
    _

</llo_original>
